<compile_context>
chip_gen: v7x
topology: tpu7x:2x2x1
jax: 0.10.0
libtpu: 0.0.40
codegen_flags: <defaults>
</compile_context>

<pallas_src>
import functools

import jax
import jax.numpy as jnp
from jax import lax
from jax.experimental import pallas as pl
from jax.experimental.pallas import tpu as pltpu


# ----------------------------------------------------------------------------
# The fused kernel: one grid step == one image, everything stays in VMEM.
# ----------------------------------------------------------------------------
def _detect_kernel(xp_ref, wA_ref, sA_ref, bA_ref,
                   wB_ref, sB_ref, bB_ref,
                   wC_ref, sC_ref, bC_ref,
                   out_ref,
                   lhsA_ref, lhsBC_ref, hp_ref,
                   *, H, W):
    """DetectModule forward for one image.

    Stage A: fused [upconv | context.inconv]            Cin -> (Cup + Cq)
    Stage B: fused [context.upconv | context.downconv]  Cq  -> 2*Cq
    Stage C: context.downconv2                          Cq  -> Cq
    Output channel order: [upconv, context.upconv, context.downconv2].
    """
    HW = H * W
    cq = wC_ref.shape[1]
    cup = wA_ref.shape[1] - cq

    def gather_taps(window, lhs_ref, cin):
        # Assemble the K-fused im2col LHS (HW, 9*cin) in VMEM: tap t occupies
        # lane block [t*cin, (t+1)*cin).  Single K=9*cin matmul per conv.
        for t in range(9):
            ky, kx = t // 3, t % 3
            win = window(ky, kx)                              # (H, W, cin) f32
            lhs_ref[:, t * cin:(t + 1) * cin] = (
                win.reshape(HW, cin).astype(lhs_ref.dtype))

    def conv_bn_relu(lhs_ref, w_ref, s_ref, b_ref):
        # bf16 MXU operands, f32 accumulate, f32 BN affine + ReLU epilogue.
        acc = jnp.dot(lhs_ref[...], w_ref[...],
                      preferred_element_type=jnp.float32)
        return jnp.maximum(acc * s_ref[...] + b_ref[...], 0.0)

    def stash_padded(y):
        # y: (HW, cq) f32 -> zero-haloed (H+2, W+2, cq) for the next 3x3 conv.
        hp_ref[...] = jnp.zeros(hp_ref.shape, hp_ref.dtype)
        hp_ref[1:H + 1, 1:W + 1, :] = y.reshape(H, W, cq)

    # ---- stage A: input image -> [up | inconv] ------------------------------
    gather_taps(lambda ky, kx: xp_ref[0, ky:ky + H, kx:kx + W, :],
                lhsA_ref, xp_ref.shape[-1])
    y_a = conv_bn_relu(lhsA_ref, wA_ref, sA_ref, bA_ref)      # (HW, cup+cq)
    out_ref[0, :, 0:cup] = y_a[:, 0:cup]                      # DetectModule.up
    stash_padded(y_a[:, cup:cup + cq])                        # context.inconv

    # ---- stage B: inconv -> [context.up | context.down] ---------------------
    gather_taps(lambda ky, kx: hp_ref[ky:ky + H, kx:kx + W, :], lhsBC_ref, cq)
    y_b = conv_bn_relu(lhsBC_ref, wB_ref, sB_ref, bB_ref)     # (HW, 2*cq)
    out_ref[0, :, cup:cup + cq] = y_b[:, 0:cq]                # context.upconv
    stash_padded(y_b[:, cq:2 * cq])                           # context.downconv

    # ---- stage C: down -> down2 ---------------------------------------------
    gather_taps(lambda ky, kx: hp_ref[ky:ky + H, kx:kx + W, :], lhsBC_ref, cq)
    y_c = conv_bn_relu(lhsBC_ref, wC_ref, sC_ref, bC_ref)     # (HW, cq)
    out_ref[0, :, cup + cq:cup + 2 * cq] = y_c                # context.downconv2


# ----------------------------------------------------------------------------
# Public wrapper: NCHW in / NCHW out (matches the PyTorch module).
# ----------------------------------------------------------------------------
@jax.jit
def detect_forward(params, x_nchw):
    N, C, H, W = x_nchw.shape
    assert C % 4 == 0, "DetectModule expects in_channels divisible by 4"
    cq, cup = C // 4, C // 2
    HW = H * W

    x = jnp.transpose(x_nchw, (0, 2, 3, 1)).astype(jnp.float32)    # NHWC
    xp = jnp.pad(x, ((0, 0), (1, 1), (1, 1), (0, 0)))              # 1-px halo

    def flat(w):      # HWIO (3,3,cin,cout) -> (9*cin, cout), bf16 MXU operand
        return w.reshape(-1, w.shape[-1]).astype(jnp.bfloat16)

    def cat_bn(bn_a, bn_b):
        return (jnp.concatenate([bn_a[0], bn_b[0]]).reshape(1, -1),
                jnp.concatenate([bn_a[1], bn_b[1]]).reshape(1, -1))

    # Fuse sibling convs along Cout (shared input -> shared im2col LHS).
    wA = jnp.concatenate([flat(params['up']['w']),
                          flat(params['inconv']['w'])], axis=1)
    sA, bA = cat_bn(params['up']['bn'], params['inconv']['bn'])
    wB = jnp.concatenate([flat(params['ctx_up']['w']),
                          flat(params['ctx_down']['w'])], axis=1)
    sB, bB = cat_bn(params['ctx_up']['bn'], params['ctx_down']['bn'])
    wC = flat(params['ctx_down2']['w'])
    sC = params['ctx_down2']['bn'][0].reshape(1, -1)
    bC = params['ctx_down2']['bn'][1].reshape(1, -1)

    full2d = lambda n: (0, 0)
    out = pl.pallas_call(
        functools.partial(_detect_kernel, H=H, W=W),
        out_shape=jax.ShapeDtypeStruct((N, HW, C), jnp.float32),
        grid=(N,),
        in_specs=[
            pl.BlockSpec((1, H + 2, W + 2, C), lambda n: (n, 0, 0, 0)),
            pl.BlockSpec((9 * C, cup + cq), full2d),
            pl.BlockSpec((1, cup + cq), full2d),
            pl.BlockSpec((1, cup + cq), full2d),
            pl.BlockSpec((9 * cq, 2 * cq), full2d),
            pl.BlockSpec((1, 2 * cq), full2d),
            pl.BlockSpec((1, 2 * cq), full2d),
            pl.BlockSpec((9 * cq, cq), full2d),
            pl.BlockSpec((1, cq), full2d),
            pl.BlockSpec((1, cq), full2d),
        ],
        out_specs=pl.BlockSpec((1, HW, C), lambda n: (n, 0, 0)),
        scratch_shapes=[
            pltpu.VMEM((HW, 9 * C), jnp.bfloat16),        # stage-A K-fused LHS
            pltpu.VMEM((HW, 9 * cq), jnp.bfloat16),       # stage-B/C LHS (reused)
            pltpu.VMEM((H + 2, W + 2, cq), jnp.float32),  # haloed intermediate
        ],
        compiler_params=pltpu.CompilerParams(
            dimension_semantics=("parallel",)),           # v7x megacore over N
    )(xp, wA, sA, bA, wB, sB, bB, wC, sC, bC)

    return jnp.transpose(out.reshape(N, H, W, C), (0, 3, 1, 2))    # NCHW


# ----------------------------------------------------------------------------
# Parameters (deterministic synthetic init; BN folded to scale/bias)
# ----------------------------------------------------------------------------
def init_params(key, in_channels):
    cq, cup = in_channels // 4, in_channels // 2
    keys = iter(jax.random.split(key, 32))

    def conv_w(cin, cout):       # HWIO
        return (jax.random.normal(next(keys), (3, 3, cin, cout), jnp.float32)
                / jnp.sqrt(9.0 * cin))

    def bn(c):
        gamma = 1.0 + 0.1 * jax.random.normal(next(keys), (c,), jnp.float32)
        beta = 0.1 * jax.random.normal(next(keys), (c,), jnp.float32)
        mean = 0.1 * jax.random.normal(next(keys), (c,), jnp.float32)
        var = 1.0 + 0.5 * jax.random.uniform(next(keys), (c,), jnp.float32)
        scale = gamma / jnp.sqrt(var + 1e-5)
        bias = beta - mean * scale
        return scale, bias

    return dict(
        up=dict(w=conv_w(in_channels, cup), bn=bn(cup)),
        inconv=dict(w=conv_w(in_channels, cq), bn=bn(cq)),
        ctx_up=dict(w=conv_w(cq, cq), bn=bn(cq)),
        ctx_down=dict(w=conv_w(cq, cq), bn=bn(cq)),
        ctx_down2=dict(w=conv_w(cq, cq), bn=bn(cq)),
    )


# ----------------------------------------------------------------------------
# Pure-JAX reference (mirrors the bf16 MXU operands / f32 accumulate+epilogue)
# ----------------------------------------------------------------------------
def ref_forward(params, x_nchw):
    x = jnp.transpose(x_nchw, (0, 2, 3, 1)).astype(jnp.float32)

    def cba(h, w, bn_sb):
        scale, bias = bn_sb
        y = lax.conv_general_dilated(
            h.astype(jnp.bfloat16), w.astype(jnp.bfloat16),
            window_strides=(1, 1), padding='SAME',
            dimension_numbers=('NHWC', 'HWIO', 'NHWC'),
            preferred_element_type=jnp.float32)
        return jnp.maximum(y * scale + bias, 0.0)

    up = cba(x, params['up']['w'], params['up']['bn'])
    xin = cba(x, params['inconv']['w'], params['inconv']['bn'])
    cup = cba(xin, params['ctx_up']['w'], params['ctx_up']['bn'])
    down = cba(xin, params['ctx_down']['w'], params['ctx_down']['bn'])
    down2 = cba(down, params['ctx_down2']['w'], params['ctx_down2']['bn'])
    y = jnp.concatenate([up, cup, down2], axis=-1)
    return jnp.transpose(y, (0, 3, 1, 2))


if __name__ == "__main__":
    key = jax.random.PRNGKey(0)
    kx_, kp_ = jax.random.split(key)
    N, C, H, W = 2, 16, 16, 16
    x = jax.random.normal(kx_, (N, C, H, W), jnp.float32)          # NCHW input
    params = init_params(kp_, C)

    out = jax.block_until_ready(detect_forward(params, x))
    assert out.shape == (N, C, H, W), out.shape

    ref = jax.block_until_ready(ref_forward(params, x))
    err = float(jnp.max(jnp.abs(out - ref)))
    # bf16 MXU operands in both kernel and reference; residual differences are
    # f32 accumulation-order / bf16 re-rounding effects across the 3 stages.
    assert jnp.allclose(out, ref, rtol=1e-2, atol=1e-2), err

    print("KERNEL_OK")
</pallas_src>

<mosaic_0001>
module attributes {stable_mosaic.version = 11 : i64} {
  func.func @_detect_kernel(%arg0: i32, %arg1: memref<1x18x18x16xf32, #tpu.memory_space<vmem>>, %arg2: memref<144x12xbf16, #tpu.memory_space<vmem>>, %arg3: memref<1x12xf32, #tpu.memory_space<vmem>>, %arg4: memref<1x12xf32, #tpu.memory_space<vmem>>, %arg5: memref<36x8xbf16, #tpu.memory_space<vmem>>, %arg6: memref<1x8xf32, #tpu.memory_space<vmem>>, %arg7: memref<1x8xf32, #tpu.memory_space<vmem>>, %arg8: memref<36x4xbf16, #tpu.memory_space<vmem>>, %arg9: memref<1x4xf32, #tpu.memory_space<vmem>>, %arg10: memref<1x4xf32, #tpu.memory_space<vmem>>, %arg11: memref<1x256x16xf32, #tpu.memory_space<vmem>>, %arg12: memref<256x144xbf16, #tpu.memory_space<vmem>>, %arg13: memref<256x36xbf16, #tpu.memory_space<vmem>>, %arg14: memref<18x18x4xf32, #tpu.memory_space<vmem>>) attributes {dimension_semantics = [#tpu.dimension_semantics<parallel>], iteration_bounds = array<i64: 2>, scalar_prefetch = 0 : i64, scratch_operands = 3 : i64, tpu.core_type = #tpu.core_type<tc>, window_params = [{transform_indices = @transform_0, window_bounds = array<i64: 1, 18, 18, 16>}, {pipeline_mode = #tpu.pipeline_mode<synchronous>, transform_indices = @transform_1, window_bounds = array<i64: 144, 12>}, {pipeline_mode = #tpu.pipeline_mode<synchronous>, transform_indices = @transform_2, window_bounds = array<i64: 1, 12>}, {pipeline_mode = #tpu.pipeline_mode<synchronous>, transform_indices = @transform_3, window_bounds = array<i64: 1, 12>}, {pipeline_mode = #tpu.pipeline_mode<synchronous>, transform_indices = @transform_4, window_bounds = array<i64: 36, 8>}, {pipeline_mode = #tpu.pipeline_mode<synchronous>, transform_indices = @transform_5, window_bounds = array<i64: 1, 8>}, {pipeline_mode = #tpu.pipeline_mode<synchronous>, transform_indices = @transform_6, window_bounds = array<i64: 1, 8>}, {pipeline_mode = #tpu.pipeline_mode<synchronous>, transform_indices = @transform_7, window_bounds = array<i64: 36, 4>}, {pipeline_mode = #tpu.pipeline_mode<synchronous>, transform_indices = @transform_8, window_bounds = array<i64: 1, 4>}, {pipeline_mode = #tpu.pipeline_mode<synchronous>, transform_indices = @transform_9, window_bounds = array<i64: 1, 4>}, {transform_indices = @transform_10, window_bounds = array<i64: 1, 256, 16>}]} {
    %c0 = arith.constant 0 : index
    %c0_0 = arith.constant 0 : index
    %c0_1 = arith.constant 0 : index
    %c0_2 = arith.constant 0 : index
    %0 = vector.load %arg1[%c0, %c0_0, %c0_1, %c0_2] : memref<1x18x18x16xf32, #tpu.memory_space<vmem>>, vector<1x16x16x16xf32>
    %1 = vector.shape_cast %0 : vector<1x16x16x16xf32> to vector<16x16x16xf32>
    %2 = vector.shape_cast %1 : vector<16x16x16xf32> to vector<256x16xf32>
    %3 = arith.truncf %2 : vector<256x16xf32> to vector<256x16xbf16>
    %c0_3 = arith.constant 0 : index
    %c0_4 = arith.constant 0 : index
    %4 = vector.load %arg12[%c0_3, %c0_4] : memref<256x144xbf16, #tpu.memory_space<vmem>>, vector<256x16xbf16>
    tpu.vector_store %arg12[%c0_3, %c0_4], %3 {strides = array<i32>} : memref<256x144xbf16, #tpu.memory_space<vmem>>, vector<256x16xbf16>,
    %c0_5 = arith.constant 0 : index
    %c0_6 = arith.constant 0 : index
    %c1 = arith.constant 1 : index
    %c0_7 = arith.constant 0 : index
    %5 = vector.load %arg1[%c0_5, %c0_6, %c1, %c0_7] : memref<1x18x18x16xf32, #tpu.memory_space<vmem>>, vector<1x16x16x16xf32>
    %6 = vector.shape_cast %5 : vector<1x16x16x16xf32> to vector<16x16x16xf32>
    %7 = vector.shape_cast %6 : vector<16x16x16xf32> to vector<256x16xf32>
    %8 = arith.truncf %7 : vector<256x16xf32> to vector<256x16xbf16>
    %c0_8 = arith.constant 0 : index
    %c16 = arith.constant 16 : index
    %9 = vector.load %arg12[%c0_8, %c16] : memref<256x144xbf16, #tpu.memory_space<vmem>>, vector<256x16xbf16>
    tpu.vector_store %arg12[%c0_8, %c16], %8 {strides = array<i32>} : memref<256x144xbf16, #tpu.memory_space<vmem>>, vector<256x16xbf16>,
    %c0_9 = arith.constant 0 : index
    %c0_10 = arith.constant 0 : index
    %c2 = arith.constant 2 : index
    %c0_11 = arith.constant 0 : index
    %10 = vector.load %arg1[%c0_9, %c0_10, %c2, %c0_11] : memref<1x18x18x16xf32, #tpu.memory_space<vmem>>, vector<1x16x16x16xf32>
    %11 = vector.shape_cast %10 : vector<1x16x16x16xf32> to vector<16x16x16xf32>
    %12 = vector.shape_cast %11 : vector<16x16x16xf32> to vector<256x16xf32>
    %13 = arith.truncf %12 : vector<256x16xf32> to vector<256x16xbf16>
    %c0_12 = arith.constant 0 : index
    %c32 = arith.constant 32 : index
    %14 = vector.load %arg12[%c0_12, %c32] : memref<256x144xbf16, #tpu.memory_space<vmem>>, vector<256x16xbf16>
    tpu.vector_store %arg12[%c0_12, %c32], %13 {strides = array<i32>} : memref<256x144xbf16, #tpu.memory_space<vmem>>, vector<256x16xbf16>,
    %c0_13 = arith.constant 0 : index
    %c1_14 = arith.constant 1 : index
    %c0_15 = arith.constant 0 : index
    %c0_16 = arith.constant 0 : index
    %15 = vector.load %arg1[%c0_13, %c1_14, %c0_15, %c0_16] : memref<1x18x18x16xf32, #tpu.memory_space<vmem>>, vector<1x16x16x16xf32>
    %16 = vector.shape_cast %15 : vector<1x16x16x16xf32> to vector<16x16x16xf32>
    %17 = vector.shape_cast %16 : vector<16x16x16xf32> to vector<256x16xf32>
    %18 = arith.truncf %17 : vector<256x16xf32> to vector<256x16xbf16>
    %c0_17 = arith.constant 0 : index
    %c48 = arith.constant 48 : index
    %19 = vector.load %arg12[%c0_17, %c48] : memref<256x144xbf16, #tpu.memory_space<vmem>>, vector<256x16xbf16>
    tpu.vector_store %arg12[%c0_17, %c48], %18 {strides = array<i32>} : memref<256x144xbf16, #tpu.memory_space<vmem>>, vector<256x16xbf16>,
    %c0_18 = arith.constant 0 : index
    %c1_19 = arith.constant 1 : index
    %c1_20 = arith.constant 1 : index
    %c0_21 = arith.constant 0 : index
    %20 = vector.load %arg1[%c0_18, %c1_19, %c1_20, %c0_21] : memref<1x18x18x16xf32, #tpu.memory_space<vmem>>, vector<1x16x16x16xf32>
    %21 = vector.shape_cast %20 : vector<1x16x16x16xf32> to vector<16x16x16xf32>
    %22 = vector.shape_cast %21 : vector<16x16x16xf32> to vector<256x16xf32>
    %23 = arith.truncf %22 : vector<256x16xf32> to vector<256x16xbf16>
    %c0_22 = arith.constant 0 : index
    %c64 = arith.constant 64 : index
    %24 = vector.load %arg12[%c0_22, %c64] : memref<256x144xbf16, #tpu.memory_space<vmem>>, vector<256x16xbf16>
    tpu.vector_store %arg12[%c0_22, %c64], %23 {strides = array<i32>} : memref<256x144xbf16, #tpu.memory_space<vmem>>, vector<256x16xbf16>,
    %c0_23 = arith.constant 0 : index
    %c1_24 = arith.constant 1 : index
    %c2_25 = arith.constant 2 : index
    %c0_26 = arith.constant 0 : index
    %25 = vector.load %arg1[%c0_23, %c1_24, %c2_25, %c0_26] : memref<1x18x18x16xf32, #tpu.memory_space<vmem>>, vector<1x16x16x16xf32>
    %26 = vector.shape_cast %25 : vector<1x16x16x16xf32> to vector<16x16x16xf32>
    %27 = vector.shape_cast %26 : vector<16x16x16xf32> to vector<256x16xf32>
    %28 = arith.truncf %27 : vector<256x16xf32> to vector<256x16xbf16>
    %c0_27 = arith.constant 0 : index
    %c80 = arith.constant 80 : index
    %29 = vector.load %arg12[%c0_27, %c80] : memref<256x144xbf16, #tpu.memory_space<vmem>>, vector<256x16xbf16>
    tpu.vector_store %arg12[%c0_27, %c80], %28 {strides = array<i32>} : memref<256x144xbf16, #tpu.memory_space<vmem>>, vector<256x16xbf16>,
    %c0_28 = arith.constant 0 : index
    %c2_29 = arith.constant 2 : index
    %c0_30 = arith.constant 0 : index
    %c0_31 = arith.constant 0 : index
    %30 = vector.load %arg1[%c0_28, %c2_29, %c0_30, %c0_31] : memref<1x18x18x16xf32, #tpu.memory_space<vmem>>, vector<1x16x16x16xf32>
    %31 = vector.shape_cast %30 : vector<1x16x16x16xf32> to vector<16x16x16xf32>
    %32 = vector.shape_cast %31 : vector<16x16x16xf32> to vector<256x16xf32>
    %33 = arith.truncf %32 : vector<256x16xf32> to vector<256x16xbf16>
    %c0_32 = arith.constant 0 : index
    %c96 = arith.constant 96 : index
    %34 = vector.load %arg12[%c0_32, %c96] : memref<256x144xbf16, #tpu.memory_space<vmem>>, vector<256x16xbf16>
    tpu.vector_store %arg12[%c0_32, %c96], %33 {strides = array<i32>} : memref<256x144xbf16, #tpu.memory_space<vmem>>, vector<256x16xbf16>,
    %c0_33 = arith.constant 0 : index
    %c2_34 = arith.constant 2 : index
    %c1_35 = arith.constant 1 : index
    %c0_36 = arith.constant 0 : index
    %35 = vector.load %arg1[%c0_33, %c2_34, %c1_35, %c0_36] : memref<1x18x18x16xf32, #tpu.memory_space<vmem>>, vector<1x16x16x16xf32>
    %36 = vector.shape_cast %35 : vector<1x16x16x16xf32> to vector<16x16x16xf32>
    %37 = vector.shape_cast %36 : vector<16x16x16xf32> to vector<256x16xf32>
    %38 = arith.truncf %37 : vector<256x16xf32> to vector<256x16xbf16>
    %c0_37 = arith.constant 0 : index
    %c112 = arith.constant 112 : index
    %39 = vector.load %arg12[%c0_37, %c112] : memref<256x144xbf16, #tpu.memory_space<vmem>>, vector<256x16xbf16>
    tpu.vector_store %arg12[%c0_37, %c112], %38 {strides = array<i32>} : memref<256x144xbf16, #tpu.memory_space<vmem>>, vector<256x16xbf16>,
    %c0_38 = arith.constant 0 : index
    %c2_39 = arith.constant 2 : index
    %c2_40 = arith.constant 2 : index
    %c0_41 = arith.constant 0 : index
    %40 = vector.load %arg1[%c0_38, %c2_39, %c2_40, %c0_41] : memref<1x18x18x16xf32, #tpu.memory_space<vmem>>, vector<1x16x16x16xf32>
    %41 = vector.shape_cast %40 : vector<1x16x16x16xf32> to vector<16x16x16xf32>
    %42 = vector.shape_cast %41 : vector<16x16x16xf32> to vector<256x16xf32>
    %43 = arith.truncf %42 : vector<256x16xf32> to vector<256x16xbf16>
    %c0_42 = arith.constant 0 : index
    %c128 = arith.constant 128 : index
    %44 = vector.load %arg12[%c0_42, %c128] : memref<256x144xbf16, #tpu.memory_space<vmem>>, vector<256x16xbf16>
    tpu.vector_store %arg12[%c0_42, %c128], %43 {strides = array<i32>} : memref<256x144xbf16, #tpu.memory_space<vmem>>, vector<256x16xbf16>,
    %c0_43 = arith.constant 0 : index
    %c0_44 = arith.constant 0 : index
    %45 = vector.load %arg12[%c0_43, %c0_44] : memref<256x144xbf16, #tpu.memory_space<vmem>>, vector<256x144xbf16>
    %c0_45 = arith.constant 0 : index
    %c0_46 = arith.constant 0 : index
    %46 = vector.load %arg2[%c0_45, %c0_46] : memref<144x12xbf16, #tpu.memory_space<vmem>>, vector<144x12xbf16>
    %cst = arith.constant dense<0.000000e+00> : vector<256x12xf32>
    %47 = tpu.matmul %45, %46, %cst {dimension_numbers = #tpu.dot_dimension_numbers<[1], [0], [0], [1], [0, 0, 1, 1], [], []>} : vector<256x144xbf16>, vector<144x12xbf16>, vector<256x12xf32> -> vector<256x12xf32>
    %c0_47 = arith.constant 0 : index
    %c0_48 = arith.constant 0 : index
    %48 = vector.load %arg3[%c0_47, %c0_48] : memref<1x12xf32, #tpu.memory_space<vmem>>, vector<1x12xf32>
    %49 = vector.broadcast %48 : vector<1x12xf32> to vector<256x12xf32>
    %50 = arith.mulf %47, %49 : vector<256x12xf32>
    %c0_49 = arith.constant 0 : index
    %c0_50 = arith.constant 0 : index
    %51 = vector.load %arg4[%c0_49, %c0_50] : memref<1x12xf32, #tpu.memory_space<vmem>>, vector<1x12xf32>
    %52 = vector.broadcast %51 : vector<1x12xf32> to vector<256x12xf32>
    %53 = arith.addf %50, %52 : vector<256x12xf32>
    %cst_51 = arith.constant 0.000000e+00 : f32
    %54 = vector.broadcast %cst_51 : f32 to vector<256x12xf32>
    %55 = arith.maximumf %53, %54 : vector<256x12xf32>
    %56 = vector.extract_strided_slice %55 {offsets = [0, 0], sizes = [256, 8], strides = [1, 1]} : vector<256x12xf32> to vector<256x8xf32>
    %c0_52 = arith.constant 0 : index
    %c0_53 = arith.constant 0 : index
    %c0_54 = arith.constant 0 : index
    %57 = vector.load %arg11[%c0_52, %c0_53, %c0_54] : memref<1x256x16xf32, #tpu.memory_space<vmem>>, vector<1x256x8xf32>
    %58 = vector.shape_cast %57 : vector<1x256x8xf32> to vector<256x8xf32>
    %59 = vector.shape_cast %56 : vector<256x8xf32> to vector<1x256x8xf32>
    tpu.vector_store %arg11[%c0_52, %c0_53, %c0_54], %59 {strides = array<i32>} : memref<1x256x16xf32, #tpu.memory_space<vmem>>, vector<1x256x8xf32>,
    %60 = vector.extract_strided_slice %55 {offsets = [0, 8], sizes = [256, 4], strides = [1, 1]} : vector<256x12xf32> to vector<256x4xf32>
    %cst_55 = arith.constant 0.000000e+00 : f32
    %61 = vector.broadcast %cst_55 : f32 to vector<18x18x4xf32>
    %c0_56 = arith.constant 0 : index
    %c0_57 = arith.constant 0 : index
    %c0_58 = arith.constant 0 : index
    %62 = vector.load %arg14[%c0_56, %c0_57, %c0_58] : memref<18x18x4xf32, #tpu.memory_space<vmem>>, vector<18x18x4xf32>
    tpu.vector_store %arg14[%c0_56, %c0_57, %c0_58], %61 {strides = array<i32>} : memref<18x18x4xf32, #tpu.memory_space<vmem>>, vector<18x18x4xf32>,
    %63 = vector.shape_cast %60 : vector<256x4xf32> to vector<16x16x4xf32>
    %c1_59 = arith.constant 1 : index
    %c1_60 = arith.constant 1 : index
    %c0_61 = arith.constant 0 : index
    %64 = vector.load %arg14[%c1_59, %c1_60, %c0_61] : memref<18x18x4xf32, #tpu.memory_space<vmem>>, vector<16x16x4xf32>
    tpu.vector_store %arg14[%c1_59, %c1_60, %c0_61], %63 {strides = array<i32>} : memref<18x18x4xf32, #tpu.memory_space<vmem>>, vector<16x16x4xf32>,
    %c0_62 = arith.constant 0 : index
    %c0_63 = arith.constant 0 : index
    %c0_64 = arith.constant 0 : index
    %65 = vector.load %arg14[%c0_62, %c0_63, %c0_64] : memref<18x18x4xf32, #tpu.memory_space<vmem>>, vector<16x16x4xf32>
    %66 = vector.shape_cast %65 : vector<16x16x4xf32> to vector<256x4xf32>
    %67 = arith.truncf %66 : vector<256x4xf32> to vector<256x4xbf16>
    %c0_65 = arith.constant 0 : index
    %c0_66 = arith.constant 0 : index
    %68 = vector.load %arg13[%c0_65, %c0_66] : memref<256x36xbf16, #tpu.memory_space<vmem>>, vector<256x4xbf16>
    tpu.vector_store %arg13[%c0_65, %c0_66], %67 {strides = array<i32>} : memref<256x36xbf16, #tpu.memory_space<vmem>>, vector<256x4xbf16>,
    %c0_67 = arith.constant 0 : index
    %c1_68 = arith.constant 1 : index
    %c0_69 = arith.constant 0 : index
    %69 = vector.load %arg14[%c0_67, %c1_68, %c0_69] : memref<18x18x4xf32, #tpu.memory_space<vmem>>, vector<16x16x4xf32>
    %70 = vector.shape_cast %69 : vector<16x16x4xf32> to vector<256x4xf32>
    %71 = arith.truncf %70 : vector<256x4xf32> to vector<256x4xbf16>
    %c0_70 = arith.constant 0 : index
    %c4 = arith.constant 4 : index
    %72 = vector.load %arg13[%c0_70, %c4] : memref<256x36xbf16, #tpu.memory_space<vmem>>, vector<256x4xbf16>
    tpu.vector_store %arg13[%c0_70, %c4], %71 {strides = array<i32>} : memref<256x36xbf16, #tpu.memory_space<vmem>>, vector<256x4xbf16>,
    %c0_71 = arith.constant 0 : index
    %c2_72 = arith.constant 2 : index
    %c0_73 = arith.constant 0 : index
    %73 = vector.load %arg14[%c0_71, %c2_72, %c0_73] : memref<18x18x4xf32, #tpu.memory_space<vmem>>, vector<16x16x4xf32>
    %74 = vector.shape_cast %73 : vector<16x16x4xf32> to vector<256x4xf32>
    %75 = arith.truncf %74 : vector<256x4xf32> to vector<256x4xbf16>
    %c0_74 = arith.constant 0 : index
    %c8 = arith.constant 8 : index
    %76 = vector.load %arg13[%c0_74, %c8] : memref<256x36xbf16, #tpu.memory_space<vmem>>, vector<256x4xbf16>
    tpu.vector_store %arg13[%c0_74, %c8], %75 {strides = array<i32>} : memref<256x36xbf16, #tpu.memory_space<vmem>>, vector<256x4xbf16>,
    %c1_75 = arith.constant 1 : index
    %c0_76 = arith.constant 0 : index
    %c0_77 = arith.constant 0 : index
    %77 = vector.load %arg14[%c1_75, %c0_76, %c0_77] : memref<18x18x4xf32, #tpu.memory_space<vmem>>, vector<16x16x4xf32>
    %78 = vector.shape_cast %77 : vector<16x16x4xf32> to vector<256x4xf32>
    %79 = arith.truncf %78 : vector<256x4xf32> to vector<256x4xbf16>
    %c0_78 = arith.constant 0 : index
    %c12 = arith.constant 12 : index
    %80 = vector.load %arg13[%c0_78, %c12] : memref<256x36xbf16, #tpu.memory_space<vmem>>, vector<256x4xbf16>
    tpu.vector_store %arg13[%c0_78, %c12], %79 {strides = array<i32>} : memref<256x36xbf16, #tpu.memory_space<vmem>>, vector<256x4xbf16>,
    %c1_79 = arith.constant 1 : index
    %c1_80 = arith.constant 1 : index
    %c0_81 = arith.constant 0 : index
    %81 = vector.load %arg14[%c1_79, %c1_80, %c0_81] : memref<18x18x4xf32, #tpu.memory_space<vmem>>, vector<16x16x4xf32>
    %82 = vector.shape_cast %81 : vector<16x16x4xf32> to vector<256x4xf32>
    %83 = arith.truncf %82 : vector<256x4xf32> to vector<256x4xbf16>
    %c0_82 = arith.constant 0 : index
    %c16_83 = arith.constant 16 : index
    %84 = vector.load %arg13[%c0_82, %c16_83] : memref<256x36xbf16, #tpu.memory_space<vmem>>, vector<256x4xbf16>
    tpu.vector_store %arg13[%c0_82, %c16_83], %83 {strides = array<i32>} : memref<256x36xbf16, #tpu.memory_space<vmem>>, vector<256x4xbf16>,
    %c1_84 = arith.constant 1 : index
    %c2_85 = arith.constant 2 : index
    %c0_86 = arith.constant 0 : index
    %85 = vector.load %arg14[%c1_84, %c2_85, %c0_86] : memref<18x18x4xf32, #tpu.memory_space<vmem>>, vector<16x16x4xf32>
    %86 = vector.shape_cast %85 : vector<16x16x4xf32> to vector<256x4xf32>
    %87 = arith.truncf %86 : vector<256x4xf32> to vector<256x4xbf16>
    %c0_87 = arith.constant 0 : index
    %c20 = arith.constant 20 : index
    %88 = vector.load %arg13[%c0_87, %c20] : memref<256x36xbf16, #tpu.memory_space<vmem>>, vector<256x4xbf16>
    tpu.vector_store %arg13[%c0_87, %c20], %87 {strides = array<i32>} : memref<256x36xbf16, #tpu.memory_space<vmem>>, vector<256x4xbf16>,
    %c2_88 = arith.constant 2 : index
    %c0_89 = arith.constant 0 : index
    %c0_90 = arith.constant 0 : index
    %89 = vector.load %arg14[%c2_88, %c0_89, %c0_90] : memref<18x18x4xf32, #tpu.memory_space<vmem>>, vector<16x16x4xf32>
    %90 = vector.shape_cast %89 : vector<16x16x4xf32> to vector<256x4xf32>
    %91 = arith.truncf %90 : vector<256x4xf32> to vector<256x4xbf16>
    %c0_91 = arith.constant 0 : index
    %c24 = arith.constant 24 : index
    %92 = vector.load %arg13[%c0_91, %c24] : memref<256x36xbf16, #tpu.memory_space<vmem>>, vector<256x4xbf16>
    tpu.vector_store %arg13[%c0_91, %c24], %91 {strides = array<i32>} : memref<256x36xbf16, #tpu.memory_space<vmem>>, vector<256x4xbf16>,
    %c2_92 = arith.constant 2 : index
    %c1_93 = arith.constant 1 : index
    %c0_94 = arith.constant 0 : index
    %93 = vector.load %arg14[%c2_92, %c1_93, %c0_94] : memref<18x18x4xf32, #tpu.memory_space<vmem>>, vector<16x16x4xf32>
    %94 = vector.shape_cast %93 : vector<16x16x4xf32> to vector<256x4xf32>
    %95 = arith.truncf %94 : vector<256x4xf32> to vector<256x4xbf16>
    %c0_95 = arith.constant 0 : index
    %c28 = arith.constant 28 : index
    %96 = vector.load %arg13[%c0_95, %c28] : memref<256x36xbf16, #tpu.memory_space<vmem>>, vector<256x4xbf16>
    tpu.vector_store %arg13[%c0_95, %c28], %95 {strides = array<i32>} : memref<256x36xbf16, #tpu.memory_space<vmem>>, vector<256x4xbf16>,
    %c2_96 = arith.constant 2 : index
    %c2_97 = arith.constant 2 : index
    %c0_98 = arith.constant 0 : index
    %97 = vector.load %arg14[%c2_96, %c2_97, %c0_98] : memref<18x18x4xf32, #tpu.memory_space<vmem>>, vector<16x16x4xf32>
    %98 = vector.shape_cast %97 : vector<16x16x4xf32> to vector<256x4xf32>
    %99 = arith.truncf %98 : vector<256x4xf32> to vector<256x4xbf16>
    %c0_99 = arith.constant 0 : index
    %c32_100 = arith.constant 32 : index
    %100 = vector.load %arg13[%c0_99, %c32_100] : memref<256x36xbf16, #tpu.memory_space<vmem>>, vector<256x4xbf16>
    tpu.vector_store %arg13[%c0_99, %c32_100], %99 {strides = array<i32>} : memref<256x36xbf16, #tpu.memory_space<vmem>>, vector<256x4xbf16>,
    %c0_101 = arith.constant 0 : index
    %c0_102 = arith.constant 0 : index
    %101 = vector.load %arg13[%c0_101, %c0_102] : memref<256x36xbf16, #tpu.memory_space<vmem>>, vector<256x36xbf16>
    %c0_103 = arith.constant 0 : index
    %c0_104 = arith.constant 0 : index
    %102 = vector.load %arg5[%c0_103, %c0_104] : memref<36x8xbf16, #tpu.memory_space<vmem>>, vector<36x8xbf16>
    %cst_105 = arith.constant dense<0.000000e+00> : vector<256x8xf32>
    %103 = tpu.matmul %101, %102, %cst_105 {dimension_numbers = #tpu.dot_dimension_numbers<[1], [0], [0], [1], [0, 0, 1, 1], [], []>} : vector<256x36xbf16>, vector<36x8xbf16>, vector<256x8xf32> -> vector<256x8xf32>
    %c0_106 = arith.constant 0 : index
    %c0_107 = arith.constant 0 : index
    %104 = vector.load %arg6[%c0_106, %c0_107] : memref<1x8xf32, #tpu.memory_space<vmem>>, vector<1x8xf32>
    %105 = vector.broadcast %104 : vector<1x8xf32> to vector<256x8xf32>
    %106 = arith.mulf %103, %105 : vector<256x8xf32>
    %c0_108 = arith.constant 0 : index
    %c0_109 = arith.constant 0 : index
    %107 = vector.load %arg7[%c0_108, %c0_109] : memref<1x8xf32, #tpu.memory_space<vmem>>, vector<1x8xf32>
    %108 = vector.broadcast %107 : vector<1x8xf32> to vector<256x8xf32>
    %109 = arith.addf %106, %108 : vector<256x8xf32>
    %cst_110 = arith.constant 0.000000e+00 : f32
    %110 = vector.broadcast %cst_110 : f32 to vector<256x8xf32>
    %111 = arith.maximumf %109, %110 : vector<256x8xf32>
    %112 = vector.extract_strided_slice %111 {offsets = [0, 0], sizes = [256, 4], strides = [1, 1]} : vector<256x8xf32> to vector<256x4xf32>
    %c0_111 = arith.constant 0 : index
    %c0_112 = arith.constant 0 : index
    %c8_113 = arith.constant 8 : index
    %113 = vector.load %arg11[%c0_111, %c0_112, %c8_113] : memref<1x256x16xf32, #tpu.memory_space<vmem>>, vector<1x256x4xf32>
    %114 = vector.shape_cast %113 : vector<1x256x4xf32> to vector<256x4xf32>
    %115 = vector.shape_cast %112 : vector<256x4xf32> to vector<1x256x4xf32>
    tpu.vector_store %arg11[%c0_111, %c0_112, %c8_113], %115 {strides = array<i32>} : memref<1x256x16xf32, #tpu.memory_space<vmem>>, vector<1x256x4xf32>,
    %116 = vector.extract_strided_slice %111 {offsets = [0, 4], sizes = [256, 4], strides = [1, 1]} : vector<256x8xf32> to vector<256x4xf32>
    %cst_114 = arith.constant 0.000000e+00 : f32
    %117 = vector.broadcast %cst_114 : f32 to vector<18x18x4xf32>
    %c0_115 = arith.constant 0 : index
    %c0_116 = arith.constant 0 : index
    %c0_117 = arith.constant 0 : index
    %118 = vector.load %arg14[%c0_115, %c0_116, %c0_117] : memref<18x18x4xf32, #tpu.memory_space<vmem>>, vector<18x18x4xf32>
    tpu.vector_store %arg14[%c0_115, %c0_116, %c0_117], %117 {strides = array<i32>} : memref<18x18x4xf32, #tpu.memory_space<vmem>>, vector<18x18x4xf32>,
    %119 = vector.shape_cast %116 : vector<256x4xf32> to vector<16x16x4xf32>
    %c1_118 = arith.constant 1 : index
    %c1_119 = arith.constant 1 : index
    %c0_120 = arith.constant 0 : index
    %120 = vector.load %arg14[%c1_118, %c1_119, %c0_120] : memref<18x18x4xf32, #tpu.memory_space<vmem>>, vector<16x16x4xf32>
    tpu.vector_store %arg14[%c1_118, %c1_119, %c0_120], %119 {strides = array<i32>} : memref<18x18x4xf32, #tpu.memory_space<vmem>>, vector<16x16x4xf32>,
    %c0_121 = arith.constant 0 : index
    %c0_122 = arith.constant 0 : index
    %c0_123 = arith.constant 0 : index
    %121 = vector.load %arg14[%c0_121, %c0_122, %c0_123] : memref<18x18x4xf32, #tpu.memory_space<vmem>>, vector<16x16x4xf32>
    %122 = vector.shape_cast %121 : vector<16x16x4xf32> to vector<256x4xf32>
    %123 = arith.truncf %122 : vector<256x4xf32> to vector<256x4xbf16>
    %c0_124 = arith.constant 0 : index
    %c0_125 = arith.constant 0 : index
    %124 = vector.load %arg13[%c0_124, %c0_125] : memref<256x36xbf16, #tpu.memory_space<vmem>>, vector<256x4xbf16>
    tpu.vector_store %arg13[%c0_124, %c0_125], %123 {strides = array<i32>} : memref<256x36xbf16, #tpu.memory_space<vmem>>, vector<256x4xbf16>,
    %c0_126 = arith.constant 0 : index
    %c1_127 = arith.constant 1 : index
    %c0_128 = arith.constant 0 : index
    %125 = vector.load %arg14[%c0_126, %c1_127, %c0_128] : memref<18x18x4xf32, #tpu.memory_space<vmem>>, vector<16x16x4xf32>
    %126 = vector.shape_cast %125 : vector<16x16x4xf32> to vector<256x4xf32>
    %127 = arith.truncf %126 : vector<256x4xf32> to vector<256x4xbf16>
    %c0_129 = arith.constant 0 : index
    %c4_130 = arith.constant 4 : index
    %128 = vector.load %arg13[%c0_129, %c4_130] : memref<256x36xbf16, #tpu.memory_space<vmem>>, vector<256x4xbf16>
    tpu.vector_store %arg13[%c0_129, %c4_130], %127 {strides = array<i32>} : memref<256x36xbf16, #tpu.memory_space<vmem>>, vector<256x4xbf16>,
    %c0_131 = arith.constant 0 : index
    %c2_132 = arith.constant 2 : index
    %c0_133 = arith.constant 0 : index
    %129 = vector.load %arg14[%c0_131, %c2_132, %c0_133] : memref<18x18x4xf32, #tpu.memory_space<vmem>>, vector<16x16x4xf32>
    %130 = vector.shape_cast %129 : vector<16x16x4xf32> to vector<256x4xf32>
    %131 = arith.truncf %130 : vector<256x4xf32> to vector<256x4xbf16>
    %c0_134 = arith.constant 0 : index
    %c8_135 = arith.constant 8 : index
    %132 = vector.load %arg13[%c0_134, %c8_135] : memref<256x36xbf16, #tpu.memory_space<vmem>>, vector<256x4xbf16>
    tpu.vector_store %arg13[%c0_134, %c8_135], %131 {strides = array<i32>} : memref<256x36xbf16, #tpu.memory_space<vmem>>, vector<256x4xbf16>,
    %c1_136 = arith.constant 1 : index
    %c0_137 = arith.constant 0 : index
    %c0_138 = arith.constant 0 : index
    %133 = vector.load %arg14[%c1_136, %c0_137, %c0_138] : memref<18x18x4xf32, #tpu.memory_space<vmem>>, vector<16x16x4xf32>
    %134 = vector.shape_cast %133 : vector<16x16x4xf32> to vector<256x4xf32>
    %135 = arith.truncf %134 : vector<256x4xf32> to vector<256x4xbf16>
    %c0_139 = arith.constant 0 : index
    %c12_140 = arith.constant 12 : index
    %136 = vector.load %arg13[%c0_139, %c12_140] : memref<256x36xbf16, #tpu.memory_space<vmem>>, vector<256x4xbf16>
    tpu.vector_store %arg13[%c0_139, %c12_140], %135 {strides = array<i32>} : memref<256x36xbf16, #tpu.memory_space<vmem>>, vector<256x4xbf16>,
    %c1_141 = arith.constant 1 : index
    %c1_142 = arith.constant 1 : index
    %c0_143 = arith.constant 0 : index
    %137 = vector.load %arg14[%c1_141, %c1_142, %c0_143] : memref<18x18x4xf32, #tpu.memory_space<vmem>>, vector<16x16x4xf32>
    %138 = vector.shape_cast %137 : vector<16x16x4xf32> to vector<256x4xf32>
    %139 = arith.truncf %138 : vector<256x4xf32> to vector<256x4xbf16>
    %c0_144 = arith.constant 0 : index
    %c16_145 = arith.constant 16 : index
    %140 = vector.load %arg13[%c0_144, %c16_145] : memref<256x36xbf16, #tpu.memory_space<vmem>>, vector<256x4xbf16>
    tpu.vector_store %arg13[%c0_144, %c16_145], %139 {strides = array<i32>} : memref<256x36xbf16, #tpu.memory_space<vmem>>, vector<256x4xbf16>,
    %c1_146 = arith.constant 1 : index
    %c2_147 = arith.constant 2 : index
    %c0_148 = arith.constant 0 : index
    %141 = vector.load %arg14[%c1_146, %c2_147, %c0_148] : memref<18x18x4xf32, #tpu.memory_space<vmem>>, vector<16x16x4xf32>
    %142 = vector.shape_cast %141 : vector<16x16x4xf32> to vector<256x4xf32>
    %143 = arith.truncf %142 : vector<256x4xf32> to vector<256x4xbf16>
    %c0_149 = arith.constant 0 : index
    %c20_150 = arith.constant 20 : index
    %144 = vector.load %arg13[%c0_149, %c20_150] : memref<256x36xbf16, #tpu.memory_space<vmem>>, vector<256x4xbf16>
    tpu.vector_store %arg13[%c0_149, %c20_150], %143 {strides = array<i32>} : memref<256x36xbf16, #tpu.memory_space<vmem>>, vector<256x4xbf16>,
    %c2_151 = arith.constant 2 : index
    %c0_152 = arith.constant 0 : index
    %c0_153 = arith.constant 0 : index
    %145 = vector.load %arg14[%c2_151, %c0_152, %c0_153] : memref<18x18x4xf32, #tpu.memory_space<vmem>>, vector<16x16x4xf32>
    %146 = vector.shape_cast %145 : vector<16x16x4xf32> to vector<256x4xf32>
    %147 = arith.truncf %146 : vector<256x4xf32> to vector<256x4xbf16>
    %c0_154 = arith.constant 0 : index
    %c24_155 = arith.constant 24 : index
    %148 = vector.load %arg13[%c0_154, %c24_155] : memref<256x36xbf16, #tpu.memory_space<vmem>>, vector<256x4xbf16>
    tpu.vector_store %arg13[%c0_154, %c24_155], %147 {strides = array<i32>} : memref<256x36xbf16, #tpu.memory_space<vmem>>, vector<256x4xbf16>,
    %c2_156 = arith.constant 2 : index
    %c1_157 = arith.constant 1 : index
    %c0_158 = arith.constant 0 : index
    %149 = vector.load %arg14[%c2_156, %c1_157, %c0_158] : memref<18x18x4xf32, #tpu.memory_space<vmem>>, vector<16x16x4xf32>
    %150 = vector.shape_cast %149 : vector<16x16x4xf32> to vector<256x4xf32>
    %151 = arith.truncf %150 : vector<256x4xf32> to vector<256x4xbf16>
    %c0_159 = arith.constant 0 : index
    %c28_160 = arith.constant 28 : index
    %152 = vector.load %arg13[%c0_159, %c28_160] : memref<256x36xbf16, #tpu.memory_space<vmem>>, vector<256x4xbf16>
    tpu.vector_store %arg13[%c0_159, %c28_160], %151 {strides = array<i32>} : memref<256x36xbf16, #tpu.memory_space<vmem>>, vector<256x4xbf16>,
    %c2_161 = arith.constant 2 : index
    %c2_162 = arith.constant 2 : index
    %c0_163 = arith.constant 0 : index
    %153 = vector.load %arg14[%c2_161, %c2_162, %c0_163] : memref<18x18x4xf32, #tpu.memory_space<vmem>>, vector<16x16x4xf32>
    %154 = vector.shape_cast %153 : vector<16x16x4xf32> to vector<256x4xf32>
    %155 = arith.truncf %154 : vector<256x4xf32> to vector<256x4xbf16>
    %c0_164 = arith.constant 0 : index
    %c32_165 = arith.constant 32 : index
    %156 = vector.load %arg13[%c0_164, %c32_165] : memref<256x36xbf16, #tpu.memory_space<vmem>>, vector<256x4xbf16>
    tpu.vector_store %arg13[%c0_164, %c32_165], %155 {strides = array<i32>} : memref<256x36xbf16, #tpu.memory_space<vmem>>, vector<256x4xbf16>,
    %c0_166 = arith.constant 0 : index
    %c0_167 = arith.constant 0 : index
    %157 = vector.load %arg13[%c0_166, %c0_167] : memref<256x36xbf16, #tpu.memory_space<vmem>>, vector<256x36xbf16>
    %c0_168 = arith.constant 0 : index
    %c0_169 = arith.constant 0 : index
    %158 = vector.load %arg8[%c0_168, %c0_169] : memref<36x4xbf16, #tpu.memory_space<vmem>>, vector<36x4xbf16>
    %cst_170 = arith.constant dense<0.000000e+00> : vector<256x4xf32>
    %159 = tpu.matmul %157, %158, %cst_170 {dimension_numbers = #tpu.dot_dimension_numbers<[1], [0], [0], [1], [0, 0, 1, 1], [], []>} : vector<256x36xbf16>, vector<36x4xbf16>, vector<256x4xf32> -> vector<256x4xf32>
    %c0_171 = arith.constant 0 : index
    %c0_172 = arith.constant 0 : index
    %160 = vector.load %arg9[%c0_171, %c0_172] : memref<1x4xf32, #tpu.memory_space<vmem>>, vector<1x4xf32>
    %161 = vector.broadcast %160 : vector<1x4xf32> to vector<256x4xf32>
    %162 = arith.mulf %159, %161 : vector<256x4xf32>
    %c0_173 = arith.constant 0 : index
    %c0_174 = arith.constant 0 : index
    %163 = vector.load %arg10[%c0_173, %c0_174] : memref<1x4xf32, #tpu.memory_space<vmem>>, vector<1x4xf32>
    %164 = vector.broadcast %163 : vector<1x4xf32> to vector<256x4xf32>
    %165 = arith.addf %162, %164 : vector<256x4xf32>
    %cst_175 = arith.constant 0.000000e+00 : f32
    %166 = vector.broadcast %cst_175 : f32 to vector<256x4xf32>
    %167 = arith.maximumf %165, %166 : vector<256x4xf32>
    %c0_176 = arith.constant 0 : index
    %c0_177 = arith.constant 0 : index
    %c12_178 = arith.constant 12 : index
    %168 = vector.load %arg11[%c0_176, %c0_177, %c12_178] : memref<1x256x16xf32, #tpu.memory_space<vmem>>, vector<1x256x4xf32>
    %169 = vector.shape_cast %168 : vector<1x256x4xf32> to vector<256x4xf32>
    %170 = vector.shape_cast %167 : vector<256x4xf32> to vector<1x256x4xf32>
    tpu.vector_store %arg11[%c0_176, %c0_177, %c12_178], %170 {strides = array<i32>} : memref<1x256x16xf32, #tpu.memory_space<vmem>>, vector<1x256x4xf32>,
    return
  }
  func.func @transform_0(%arg0: i32) -> (i32, i32, i32, i32) {
    %c0_i32 = arith.constant 0 : i32
    %c0_i32_0 = arith.constant 0 : i32
    %c0_i32_1 = arith.constant 0 : i32
    %c0_i32_2 = arith.constant 0 : i32
    return %arg0, %c0_i32, %c0_i32_0, %c0_i32_1 : i32, i32, i32, i32
  }
  func.func @transform_1(%arg0: i32) -> (i32, i32) {
    %c0_i32 = arith.constant 0 : i32
    %c0_i32_0 = arith.constant 0 : i32
    %c0_i32_1 = arith.constant 0 : i32
    return %c0_i32, %c0_i32_0 : i32, i32
  }
  func.func @transform_2(%arg0: i32) -> (i32, i32) {
    %c0_i32 = arith.constant 0 : i32
    %c0_i32_0 = arith.constant 0 : i32
    %c0_i32_1 = arith.constant 0 : i32
    return %c0_i32, %c0_i32_0 : i32, i32
  }
  func.func @transform_3(%arg0: i32) -> (i32, i32) {
    %c0_i32 = arith.constant 0 : i32
    %c0_i32_0 = arith.constant 0 : i32
    %c0_i32_1 = arith.constant 0 : i32
    return %c0_i32, %c0_i32_0 : i32, i32
  }
  func.func @transform_4(%arg0: i32) -> (i32, i32) {
    %c0_i32 = arith.constant 0 : i32
    %c0_i32_0 = arith.constant 0 : i32
    %c0_i32_1 = arith.constant 0 : i32
    return %c0_i32, %c0_i32_0 : i32, i32
  }
  func.func @transform_5(%arg0: i32) -> (i32, i32) {
    %c0_i32 = arith.constant 0 : i32
    %c0_i32_0 = arith.constant 0 : i32
    %c0_i32_1 = arith.constant 0 : i32
    return %c0_i32, %c0_i32_0 : i32, i32
  }
  func.func @transform_6(%arg0: i32) -> (i32, i32) {
    %c0_i32 = arith.constant 0 : i32
    %c0_i32_0 = arith.constant 0 : i32
    %c0_i32_1 = arith.constant 0 : i32
    return %c0_i32, %c0_i32_0 : i32, i32
  }
  func.func @transform_7(%arg0: i32) -> (i32, i32) {
    %c0_i32 = arith.constant 0 : i32
    %c0_i32_0 = arith.constant 0 : i32
    %c0_i32_1 = arith.constant 0 : i32
    return %c0_i32, %c0_i32_0 : i32, i32
  }
  func.func @transform_8(%arg0: i32) -> (i32, i32) {
    %c0_i32 = arith.constant 0 : i32
    %c0_i32_0 = arith.constant 0 : i32
    %c0_i32_1 = arith.constant 0 : i32
    return %c0_i32, %c0_i32_0 : i32, i32
  }
  func.func @transform_9(%arg0: i32) -> (i32, i32) {
    %c0_i32 = arith.constant 0 : i32
    %c0_i32_0 = arith.constant 0 : i32
    %c0_i32_1 = arith.constant 0 : i32
    return %c0_i32, %c0_i32_0 : i32, i32
  }
  func.func @transform_10(%arg0: i32) -> (i32, i32, i32) {
    %c0_i32 = arith.constant 0 : i32
    %c0_i32_0 = arith.constant 0 : i32
    %c0_i32_1 = arith.constant 0 : i32
    return %arg0, %c0_i32, %c0_i32_0 : i32, i32, i32
  }
}

</mosaic_0001>

<llo_original>
// kernel: detect_forward.1
$region0: #{detect_forward.1}
  #allocation0 [shape = 'u32[]', space=smem, size = 0x4, offset = 0x4, fixed_abs, tag = 'smem constant byte address 0x4 - core index']
  #allocation1 [shape = 'u32[144,128]{1,0:T(1,128)}', space=vmem, size = 0x12000, scoped, tag = 'internal scratch']
  #allocation2 [shape = 'bf16[256,144]{1,0:T(16,128)(2,1)}', space=vmem, size = 0x20000, scoped, tag = 'scratch operand']
  #allocation3 [shape = 'bf16[256,36]{1,0:T(16,128)(2,1)}', space=vmem, size = 0x10000, scoped, tag = 'scratch operand']
  #allocation4 [shape = 'f32[18,18,4]{2,1,0:T(8,128)}', space=vmem, size = 0x36000, scoped, tag = 'scratch operand']
  %s0 = inlined_call_operand.vmem [shape: f32[2,18,18,16], index: 0, kind: input, shape index: {}]
  %s1 = inlined_call_operand.vmem [shape: bf16[144,12], index: 1, kind: input, shape index: {}]
  %s2 = inlined_call_operand.vmem [shape: f32[1,12], index: 2, kind: input, shape index: {}]
  %s3 = inlined_call_operand.vmem [shape: f32[1,12], index: 3, kind: input, shape index: {}]
  %s4 = inlined_call_operand.vmem [shape: bf16[36,8], index: 4, kind: input, shape index: {}]
  %s5 = inlined_call_operand.vmem [shape: f32[1,8], index: 5, kind: input, shape index: {}]
  %s6 = inlined_call_operand.vmem [shape: f32[1,8], index: 6, kind: input, shape index: {}]
  %s7 = inlined_call_operand.vmem [shape: bf16[36,4], index: 7, kind: input, shape index: {}]
  %s8 = inlined_call_operand.vmem [shape: f32[1,4], index: 8, kind: input, shape index: {}]
  %s9 = inlined_call_operand.vmem [shape: f32[1,4], index: 9, kind: input, shape index: {}]
  %s10 = inlined_call_operand.vmem [shape: f32[2,256,16], index: 10, kind: output, shape index: {}]
  %s11 = sld [smem:[#allocation0]]
  $region73: #{detect_forward.1} parent=0
    _
  %s13 = ssub.s32 1, %s11
  %s14 = scalar_select 0, %s13, %s11
  loop: start=0, step=1, limit=4
  $region2: #{detect_forward.1} parent=0 // loop_pre_header
    _
  $region3: #{detect_forward.1} parent=0 // loop_header
    %s16 = sphi 0, %s20
    %p17 = scmp.ge.s32.totalorder %s16, 4
    %s26 = sphi 0, %s28
    %s29 = sphi 0, %s26
    %s30 = sphi 0, %s29
    %s46 = sphi 0, %s30
    %s50 = sphi 0, %s50
    %s52 = sphi 0, %s50
    %s53 = sphi 0, %s52
    %s67 = sphi 0, %s53
    %s71 = sphi 0, %s71
    %s73 = sphi 0, %s71
    %s74 = sphi 0, %s73
    %s88 = sphi 0, %s74
    %s92 = sphi 0, %s92
    %s94 = sphi 0, %s92
    %s95 = sphi 0, %s94
    %s109 = sphi 0, %s95
    %s113 = sphi 0, %s113
    %s115 = sphi 0, %s113
    %s116 = sphi 0, %s115
    %s130 = sphi 0, %s116
    %s134 = sphi 0, %s134
    %s136 = sphi 0, %s134
    %s137 = sphi 0, %s136
    %s151 = sphi 0, %s137
    %s155 = sphi 0, %s155
    %s157 = sphi 0, %s155
    %s158 = sphi 0, %s157
    %s172 = sphi 0, %s158
    %s176 = sphi 0, %s176
    %s178 = sphi 0, %s176
    %s179 = sphi 0, %s178
    %s193 = sphi 0, %s179
    %s197 = sphi 0, %s197
    %s199 = sphi 0, %s197
    %s200 = sphi 0, %s199
    %s214 = sphi 0, %s200
    %s218 = sphi 0, %s218
    %s220 = sphi 0, %s218
    %s221 = sphi 0, %s220
    %s235 = sphi 0, %s221
    %s241 = sphi 0, %s243
    %s244 = sphi 0, %s241
    %s245 = sphi 0, %s244
    %s261 = sphi 0, %s245
  $region4: #{detect_forward.1} parent=0 // loop_header_branch
    %19 = sbr.rel (%p17) target = $region8
  $region5: #{detect_forward.1} parent=0 // loop_body
    %s21 = ssub.s32 %s16, 1
    %s22 = ssub.s32 %s16, 2
    %s23 = sadd.s32 %s16, 1
    %s24 = ssub.s32 %s16, %s23
    %p25 = scmp.eq.s32.totalorder %s24, 0
    %s27 = sadd.s32 %s26, 1
    %s28 = scalar_select %p25, %s26, %s27
    %p31 = pneg %p25
    %p32 = scmp.eq.s32.totalorder %s16, 1
    %p33 = por %p31, %p32
    %p34 = scmp.ne.s32.totalorder %s26, %s29
    %p35 = scmp.eq.s32.totalorder %s16, 0
    %p36 = por %p34, %p35
    %p37 = scmp.ne.s32.totalorder %s26, %s29
    %p38 = scmp.eq.s32.totalorder %s21, 1
    %p39 = por %p37, %p38
    %p40 = scmp.ne.s32.totalorder %s29, %s30
    %p41 = scmp.eq.s32.totalorder %s21, 0
    %p42 = por %p40, %p41
    %p43 = scmp.ne.s32.totalorder %s29, %s30
    %p44 = scmp.eq.s32.totalorder %s22, 1
    %p45 = por %p43, %p44
    %p47 = scmp.ne.s32.totalorder %s30, %s46
    %p48 = scmp.eq.s32.totalorder %s22, 0
    %p49 = por %p47, %p48
    %s51 = sadd.s32 %s50, 1
    %p54 = scmp.eq.s32.totalorder %s16, 1
    %p55 = scmp.ne.s32.totalorder %s50, %s52
    %p56 = scmp.eq.s32.totalorder %s16, 0
    %p57 = por %p55, %p56
    %p58 = scmp.ne.s32.totalorder %s50, %s52
    %p59 = scmp.eq.s32.totalorder %s21, 1
    %p60 = por %p58, %p59
    %p61 = scmp.ne.s32.totalorder %s52, %s53
    %p62 = scmp.eq.s32.totalorder %s21, 0
    %p63 = por %p61, %p62
    %p64 = scmp.ne.s32.totalorder %s52, %s53
    %p65 = scmp.eq.s32.totalorder %s22, 1
    %p66 = por %p64, %p65
    %p68 = scmp.ne.s32.totalorder %s53, %s67
    %p69 = scmp.eq.s32.totalorder %s22, 0
    %p70 = por %p68, %p69
    %s72 = sadd.s32 %s71, 1
    %p75 = scmp.eq.s32.totalorder %s16, 1
    %p76 = scmp.ne.s32.totalorder %s71, %s73
    %p77 = scmp.eq.s32.totalorder %s16, 0
    %p78 = por %p76, %p77
    %p79 = scmp.ne.s32.totalorder %s71, %s73
    %p80 = scmp.eq.s32.totalorder %s21, 1
    %p81 = por %p79, %p80
    %p82 = scmp.ne.s32.totalorder %s73, %s74
    %p83 = scmp.eq.s32.totalorder %s21, 0
    %p84 = por %p82, %p83
    %p85 = scmp.ne.s32.totalorder %s73, %s74
    %p86 = scmp.eq.s32.totalorder %s22, 1
    %p87 = por %p85, %p86
    %p89 = scmp.ne.s32.totalorder %s74, %s88
    %p90 = scmp.eq.s32.totalorder %s22, 0
    %p91 = por %p89, %p90
    %s93 = sadd.s32 %s92, 1
    %p96 = scmp.eq.s32.totalorder %s16, 1
    %p97 = scmp.ne.s32.totalorder %s92, %s94
    %p98 = scmp.eq.s32.totalorder %s16, 0
    %p99 = por %p97, %p98
    %p100 = scmp.ne.s32.totalorder %s92, %s94
    %p101 = scmp.eq.s32.totalorder %s21, 1
    %p102 = por %p100, %p101
    %p103 = scmp.ne.s32.totalorder %s94, %s95
    %p104 = scmp.eq.s32.totalorder %s21, 0
    %p105 = por %p103, %p104
    %p106 = scmp.ne.s32.totalorder %s94, %s95
    %p107 = scmp.eq.s32.totalorder %s22, 1
    %p108 = por %p106, %p107
    %p110 = scmp.ne.s32.totalorder %s95, %s109
    %p111 = scmp.eq.s32.totalorder %s22, 0
    %p112 = por %p110, %p111
    %s114 = sadd.s32 %s113, 1
    %p117 = scmp.eq.s32.totalorder %s16, 1
    %p118 = scmp.ne.s32.totalorder %s113, %s115
    %p119 = scmp.eq.s32.totalorder %s16, 0
    %p120 = por %p118, %p119
    %p121 = scmp.ne.s32.totalorder %s113, %s115
    %p122 = scmp.eq.s32.totalorder %s21, 1
    %p123 = por %p121, %p122
    %p124 = scmp.ne.s32.totalorder %s115, %s116
    %p125 = scmp.eq.s32.totalorder %s21, 0
    %p126 = por %p124, %p125
    %p127 = scmp.ne.s32.totalorder %s115, %s116
    %p128 = scmp.eq.s32.totalorder %s22, 1
    %p129 = por %p127, %p128
    %p131 = scmp.ne.s32.totalorder %s116, %s130
    %p132 = scmp.eq.s32.totalorder %s22, 0
    %p133 = por %p131, %p132
    %s135 = sadd.s32 %s134, 1
    %p138 = scmp.eq.s32.totalorder %s16, 1
    %p139 = scmp.ne.s32.totalorder %s134, %s136
    %p140 = scmp.eq.s32.totalorder %s16, 0
    %p141 = por %p139, %p140
    %p142 = scmp.ne.s32.totalorder %s134, %s136
    %p143 = scmp.eq.s32.totalorder %s21, 1
    %p144 = por %p142, %p143
    %p145 = scmp.ne.s32.totalorder %s136, %s137
    %p146 = scmp.eq.s32.totalorder %s21, 0
    %p147 = por %p145, %p146
    %p148 = scmp.ne.s32.totalorder %s136, %s137
    %p149 = scmp.eq.s32.totalorder %s22, 1
    %p150 = por %p148, %p149
    %p152 = scmp.ne.s32.totalorder %s137, %s151
    %p153 = scmp.eq.s32.totalorder %s22, 0
    %p154 = por %p152, %p153
    %s156 = sadd.s32 %s155, 1
    %p159 = scmp.eq.s32.totalorder %s16, 1
    %p160 = scmp.ne.s32.totalorder %s155, %s157
    %p161 = scmp.eq.s32.totalorder %s16, 0
    %p162 = por %p160, %p161
    %p163 = scmp.ne.s32.totalorder %s155, %s157
    %p164 = scmp.eq.s32.totalorder %s21, 1
    %p165 = por %p163, %p164
    %p166 = scmp.ne.s32.totalorder %s157, %s158
    %p167 = scmp.eq.s32.totalorder %s21, 0
    %p168 = por %p166, %p167
    %p169 = scmp.ne.s32.totalorder %s157, %s158
    %p170 = scmp.eq.s32.totalorder %s22, 1
    %p171 = por %p169, %p170
    %p173 = scmp.ne.s32.totalorder %s158, %s172
    %p174 = scmp.eq.s32.totalorder %s22, 0
    %p175 = por %p173, %p174
    %s177 = sadd.s32 %s176, 1
    %p180 = scmp.eq.s32.totalorder %s16, 1
    %p181 = scmp.ne.s32.totalorder %s176, %s178
    %p182 = scmp.eq.s32.totalorder %s16, 0
    %p183 = por %p181, %p182
    %p184 = scmp.ne.s32.totalorder %s176, %s178
    %p185 = scmp.eq.s32.totalorder %s21, 1
    %p186 = por %p184, %p185
    %p187 = scmp.ne.s32.totalorder %s178, %s179
    %p188 = scmp.eq.s32.totalorder %s21, 0
    %p189 = por %p187, %p188
    %p190 = scmp.ne.s32.totalorder %s178, %s179
    %p191 = scmp.eq.s32.totalorder %s22, 1
    %p192 = por %p190, %p191
    %p194 = scmp.ne.s32.totalorder %s179, %s193
    %p195 = scmp.eq.s32.totalorder %s22, 0
    %p196 = por %p194, %p195
    %s198 = sadd.s32 %s197, 1
    %p201 = scmp.eq.s32.totalorder %s16, 1
    %p202 = scmp.ne.s32.totalorder %s197, %s199
    %p203 = scmp.eq.s32.totalorder %s16, 0
    %p204 = por %p202, %p203
    %p205 = scmp.ne.s32.totalorder %s197, %s199
    %p206 = scmp.eq.s32.totalorder %s21, 1
    %p207 = por %p205, %p206
    %p208 = scmp.ne.s32.totalorder %s199, %s200
    %p209 = scmp.eq.s32.totalorder %s21, 0
    %p210 = por %p208, %p209
    %p211 = scmp.ne.s32.totalorder %s199, %s200
    %p212 = scmp.eq.s32.totalorder %s22, 1
    %p213 = por %p211, %p212
    %p215 = scmp.ne.s32.totalorder %s200, %s214
    %p216 = scmp.eq.s32.totalorder %s22, 0
    %p217 = por %p215, %p216
    %s219 = sadd.s32 %s218, 1
    %p222 = scmp.eq.s32.totalorder %s16, 1
    %p223 = scmp.ne.s32.totalorder %s218, %s220
    %p224 = scmp.eq.s32.totalorder %s16, 0
    %p225 = por %p223, %p224
    %p226 = scmp.ne.s32.totalorder %s218, %s220
    %p227 = scmp.eq.s32.totalorder %s21, 1
    %p228 = por %p226, %p227
    %p229 = scmp.ne.s32.totalorder %s220, %s221
    %p230 = scmp.eq.s32.totalorder %s21, 0
    %p231 = por %p229, %p230
    %p232 = scmp.ne.s32.totalorder %s220, %s221
    %p233 = scmp.eq.s32.totalorder %s22, 1
    %p234 = por %p232, %p233
    %p236 = scmp.ne.s32.totalorder %s221, %s235
    %p237 = scmp.eq.s32.totalorder %s22, 0
    %p238 = por %p236, %p237
    %s239 = ssub.s32 %s16, %s23
    %p240 = scmp.eq.s32.totalorder %s239, 0
    %s242 = sadd.s32 %s241, 1
    %s243 = scalar_select %p240, %s241, %s242
    %p246 = pneg %p240
    %p247 = scmp.eq.s32.totalorder %s16, 1
    %p248 = por %p246, %p247
    %p249 = scmp.ne.s32.totalorder %s241, %s244
    %p250 = scmp.eq.s32.totalorder %s16, 0
    %p251 = por %p249, %p250
    %p252 = scmp.ne.s32.totalorder %s241, %s244
    %p253 = scmp.eq.s32.totalorder %s21, 1
    %p254 = por %p252, %p253
    %p255 = scmp.ne.s32.totalorder %s244, %s245
    %p256 = scmp.eq.s32.totalorder %s21, 0
    %p257 = por %p255, %p256
    %p258 = scmp.ne.s32.totalorder %s244, %s245
    %p259 = scmp.eq.s32.totalorder %s22, 1
    %p260 = por %p258, %p259
    %p262 = scmp.ne.s32.totalorder %s245, %s261
    %p263 = scmp.eq.s32.totalorder %s22, 0
    %p264 = por %p262, %p263
    %p265 = scmp.le.s32.totalorder 1, %s16
    %p266 = scmp.lt.s32.totalorder %s16, 3
    %p267 = pnand %p265, %p266
    %p268 = pneg %p267
    // Predicated region
    $region9: #{detect_forward.1} parent=5 // pred_check
      _
    $region10: #{detect_forward.1} parent=5 // pred_check_branch
      %270 = sbr.rel (%p267) target = $region12
    $region11: #{detect_forward.1} parent=5 // pred_region
      %s271 = ssub.s32 %s16, 1
      // Predicated region
      $region13: #{detect_forward.1} parent=11 // pred_check
        %p272 = pneg %p63
      $region14: #{detect_forward.1} parent=11 // pred_check_branch
        %274 = sbr.rel (%p272) target = $region16
      $region15: #{detect_forward.1} parent=11 // pred_region
        _
      $region16: #{detect_forward.1} parent=11 // pred_fallthru
        _
      // Predicated region
      $region17: #{detect_forward.1} parent=11 // pred_check
        %p275 = pneg %p84
      $region18: #{detect_forward.1} parent=11 // pred_check_branch
        %277 = sbr.rel (%p275) target = $region20
      $region19: #{detect_forward.1} parent=11 // pred_region
        _
      $region20: #{detect_forward.1} parent=11 // pred_fallthru
        _
      // Predicated region
      $region21: #{detect_forward.1} parent=11 // pred_check
        %p278 = pneg %p105
      $region22: #{detect_forward.1} parent=11 // pred_check_branch
        %280 = sbr.rel (%p278) target = $region24
      $region23: #{detect_forward.1} parent=11 // pred_region
        _
      $region24: #{detect_forward.1} parent=11 // pred_fallthru
        _
      // Predicated region
      $region25: #{detect_forward.1} parent=11 // pred_check
        %p281 = pneg %p126
      $region26: #{detect_forward.1} parent=11 // pred_check_branch
        %283 = sbr.rel (%p281) target = $region28
      $region27: #{detect_forward.1} parent=11 // pred_region
        _
      $region28: #{detect_forward.1} parent=11 // pred_fallthru
        _
      // Predicated region
      $region29: #{detect_forward.1} parent=11 // pred_check
        %p284 = pneg %p147
      $region30: #{detect_forward.1} parent=11 // pred_check_branch
        %286 = sbr.rel (%p284) target = $region32
      $region31: #{detect_forward.1} parent=11 // pred_region
        _
      $region32: #{detect_forward.1} parent=11 // pred_fallthru
        _
      // Predicated region
      $region33: #{detect_forward.1} parent=11 // pred_check
        %p287 = pneg %p168
      $region34: #{detect_forward.1} parent=11 // pred_check_branch
        %289 = sbr.rel (%p287) target = $region36
      $region35: #{detect_forward.1} parent=11 // pred_region
        _
      $region36: #{detect_forward.1} parent=11 // pred_fallthru
        _
      // Predicated region
      $region37: #{detect_forward.1} parent=11 // pred_check
        %p290 = pneg %p189
      $region38: #{detect_forward.1} parent=11 // pred_check_branch
        %292 = sbr.rel (%p290) target = $region40
      $region39: #{detect_forward.1} parent=11 // pred_region
        _
      $region40: #{detect_forward.1} parent=11 // pred_fallthru
        _
      // Predicated region
      $region41: #{detect_forward.1} parent=11 // pred_check
        %p293 = pneg %p210
      $region42: #{detect_forward.1} parent=11 // pred_check_branch
        %295 = sbr.rel (%p293) target = $region44
      $region43: #{detect_forward.1} parent=11 // pred_region
        _
      $region44: #{detect_forward.1} parent=11 // pred_fallthru
        _
      // Predicated region
      $region45: #{detect_forward.1} parent=11 // pred_check
        %p296 = pneg %p231
      $region46: #{detect_forward.1} parent=11 // pred_check_branch
        %298 = sbr.rel (%p296) target = $region48
      $region47: #{detect_forward.1} parent=11 // pred_region
        _
      $region48: #{detect_forward.1} parent=11 // pred_fallthru
        _
    $region12: #{detect_forward.1} parent=5 // pred_fallthru
      _
    %p299 = scmp.lt.s32.totalorder %s16, 2
    // Predicated region
    $region49: #{detect_forward.1} parent=5 // pred_check
      %p300 = pneg %p299
    $region50: #{detect_forward.1} parent=5 // pred_check_branch
      %302 = sbr.rel (%p300) target = $region52
    $region51: #{detect_forward.1} parent=5 // pred_region
      // Predicated region
      $region53: #{detect_forward.1} parent=51 // pred_check
        %p303 = pneg %p36
      $region54: #{detect_forward.1} parent=51 // pred_check_branch
        %305 = sbr.rel (%p303) target = $region56
      $region55: #{detect_forward.1} parent=51 // pred_region
        %p306 = scmp.lt.s32.totalorder %s16, 1
        %s307 = scalar_select %p306, %s16, 1
        %s308 = smul.addr %s307, 54
        %s309 = smul.addr %s308, 8
        %s310 = scalar_lea.vmem %s0, %s309
      $region56: #{detect_forward.1} parent=51 // pred_fallthru
        _
    $region52: #{detect_forward.1} parent=5 // pred_fallthru
      _
    %p311 = scmp.le.s32.totalorder 1, %s16
    %p312 = scmp.lt.s32.totalorder %s16, 3
    %p313 = pnand %p311, %p312
    %p314 = pneg %p313
    // Predicated region
    $region57: #{detect_forward.1} parent=5 // pred_check
      _
    $region58: #{detect_forward.1} parent=5 // pred_check_branch
      %316 = sbr.rel (%p313) target = $region60
    $region59: #{detect_forward.1} parent=5 // pred_region
      %s317 = ssub.s32 %s16, 1
      %p318 = scmp.lt.s32.totalorder %s21, 1
      %s319 = scalar_select %p318, %s21, 1
      %s320 = smul.addr %s319, 54
      %s321 = smul.addr %s320, 8
      %s322 = scalar_lea.vmem %s0, %s321
      %p323 = pneg %p42
      %p324 = pneg %p39
      %p325 = pneg %p63
      %p326 = pneg %p60
      %p327 = pneg %p84
      %p328 = pneg %p81
      %p329 = pneg %p105
      %p330 = pneg %p102
      %p331 = pneg %p126
      %p332 = pneg %p123
      %p333 = pneg %p147
      %p334 = pneg %p144
      %p335 = pneg %p168
      %p336 = pneg %p165
      %p337 = pneg %p189
      %p338 = pneg %p186
      %p339 = pneg %p210
      %p340 = pneg %p207
      %p341 = pneg %p231
      %p342 = pneg %p228
      %p343 = pneg %p257
      %p344 = pneg %p254
      %p345 = scmp.lt.s32.totalorder %s21, 1
      %s346 = scalar_select %p345, %s21, 1
      %s347 = smul.addr %s346, 32
      %s348 = smul.addr %s347, 8
      %s349 = scalar_lea.vmem %s10, %s348
      %p350 = scmp.lt.s32.totalorder %s21, 1
      %s351 = scalar_select %p350, %s21, 1
      %s352 = smul.addr %s351, 54
      %s353 = smul.addr %s352, 8
      %s354 = scalar_lea.vmem %s0, %s353
      %p355 = scmp.lt.s32.totalorder %s21, 1
      %s356 = scalar_select %p355, %s21, 1
      %s357 = smul.addr %s356, 32
      %s358 = smul.addr %s357, 8
      %s359 = scalar_lea.vmem %s10, %s358
      %v361 = vld [vmem:[%s354] sm:$0xff]
      %v362 = vld [vmem:[%s354 + $0x8] sm:$0xff]
      %v363 = vld [vmem:[%s354 + $0x18] sm:$0xff]
      %v364 = vld [vmem:[%s354 + $0x20] sm:$0xff]
      %v365 = vld [vmem:[%s354 + $0x30] sm:$0xff]
      %v366 = vld [vmem:[%s354 + $0x38] sm:$0xff]
      %v367 = vld [vmem:[%s354 + $0x48] sm:$0xff]
      %v368 = vld [vmem:[%s354 + $0x50] sm:$0xff]
      %v369 = vld [vmem:[%s354 + $0x60] sm:$0xff]
      %v370 = vld [vmem:[%s354 + $0x68] sm:$0xff]
      %v371 = vld [vmem:[%s354 + $0x78] sm:$0xff]
      %v372 = vld [vmem:[%s354 + $0x80] sm:$0xff]
      %v373 = vld [vmem:[%s354 + $0x90] sm:$0xff]
      %v374 = vld [vmem:[%s354 + $0x98] sm:$0xff]
      %v375 = vld [vmem:[%s354 + $0xa8] sm:$0xff]
      %v376 = vld [vmem:[%s354 + $0xb0] sm:$0xff]
      %v377 = vld [vmem:[%s354 + $0xc0] sm:$0xff]
      %v378 = vld [vmem:[%s354 + $0xc8] sm:$0xff]
      %v379 = vld [vmem:[%s354 + $0xd8] sm:$0xff]
      %v380 = vld [vmem:[%s354 + $0xe0] sm:$0xff]
      %v381 = vld [vmem:[%s354 + $0xf0] sm:$0xff]
      %v382 = vld [vmem:[%s354 + $0xf8] sm:$0xff]
      %v383 = vld [vmem:[%s354 + $0x108] sm:$0xff]
      %v384 = vld [vmem:[%s354 + $0x110] sm:$0xff]
      %v385 = vld [vmem:[%s354 + $0x120] sm:$0xff]
      %v386 = vld [vmem:[%s354 + $0x128] sm:$0xff]
      %v387 = vld [vmem:[%s354 + $0x138] sm:$0xff]
      %v388 = vld [vmem:[%s354 + $0x140] sm:$0xff]
      %v389 = vld [vmem:[%s354 + $0x150] sm:$0xff]
      %v390 = vld [vmem:[%s354 + $0x158] sm:$0xff]
      %v391 = vld [vmem:[%s354 + $0x168] sm:$0xff]
      %v392 = vld [vmem:[%s354 + $0x170] sm:$0xff]
      %v393 = vpack.c.bf16 %v362, %v361
      %v394 = vpack.c.bf16 %v364, %v363
      %v395 = vpack.c.bf16 %v366, %v365
      %v396 = vpack.c.bf16 %v368, %v367
      %v397 = vpack.c.bf16 %v370, %v369
      %v398 = vpack.c.bf16 %v372, %v371
      %v399 = vpack.c.bf16 %v374, %v373
      %v400 = vpack.c.bf16 %v376, %v375
      %v401 = vpack.c.bf16 %v378, %v377
      %v402 = vpack.c.bf16 %v380, %v379
      %v403 = vpack.c.bf16 %v382, %v381
      %v404 = vpack.c.bf16 %v384, %v383
      %v405 = vpack.c.bf16 %v386, %v385
      %v406 = vpack.c.bf16 %v388, %v387
      %v407 = vpack.c.bf16 %v390, %v389
      %v408 = vpack.c.bf16 %v392, %v391
      %vm409 = vcmask 130048
      %410 = vst.msk [vmem:[#allocation2] sm:$0xff] %vm409, %v393
      %411 = vst.msk [vmem:[#allocation2 + $0x10] sm:$0xff] %vm409, %v394
      %412 = vst.msk [vmem:[#allocation2 + $0x20] sm:$0xff] %vm409, %v395
      %413 = vst.msk [vmem:[#allocation2 + $0x30] sm:$0xff] %vm409, %v396
      %414 = vst.msk [vmem:[#allocation2 + $0x40] sm:$0xff] %vm409, %v397
      %415 = vst.msk [vmem:[#allocation2 + $0x50] sm:$0xff] %vm409, %v398
      %416 = vst.msk [vmem:[#allocation2 + $0x60] sm:$0xff] %vm409, %v399
      %417 = vst.msk [vmem:[#allocation2 + $0x70] sm:$0xff] %vm409, %v400
      %418 = vst.msk [vmem:[#allocation2 + $0x80] sm:$0xff] %vm409, %v401
      %419 = vst.msk [vmem:[#allocation2 + $0x90] sm:$0xff] %vm409, %v402
      %420 = vst.msk [vmem:[#allocation2 + $0xa0] sm:$0xff] %vm409, %v403
      %421 = vst.msk [vmem:[#allocation2 + $0xb0] sm:$0xff] %vm409, %v404
      %422 = vst.msk [vmem:[#allocation2 + $0xc0] sm:$0xff] %vm409, %v405
      %423 = vst.msk [vmem:[#allocation2 + $0xd0] sm:$0xff] %vm409, %v406
      %424 = vst.msk [vmem:[#allocation2 + $0xe0] sm:$0xff] %vm409, %v407
      %425 = vst.msk [vmem:[#allocation2 + $0xf0] sm:$0xff] %vm409, %v408
      %v426 = vld [vmem:[%s354 + $0x1] sm:$0xff]
      %v427 = vld [vmem:[%s354 + $0x9] sm:$0xff]
      %v428 = vld [vmem:[%s354 + $0x19] sm:$0xff]
      %v429 = vld [vmem:[%s354 + $0x21] sm:$0xff]
      %v430 = vld [vmem:[%s354 + $0x31] sm:$0xff]
      %v431 = vld [vmem:[%s354 + $0x39] sm:$0xff]
      %v432 = vld [vmem:[%s354 + $0x49] sm:$0xff]
      %v433 = vld [vmem:[%s354 + $0x51] sm:$0xff]
      %v434 = vld [vmem:[%s354 + $0x61] sm:$0xff]
      %v435 = vld [vmem:[%s354 + $0x69] sm:$0xff]
      %v436 = vld [vmem:[%s354 + $0x79] sm:$0xff]
      %v437 = vld [vmem:[%s354 + $0x81] sm:$0xff]
      %v438 = vld [vmem:[%s354 + $0x91] sm:$0xff]
      %v439 = vld [vmem:[%s354 + $0x99] sm:$0xff]
      %v440 = vld [vmem:[%s354 + $0xa9] sm:$0xff]
      %v441 = vld [vmem:[%s354 + $0xb1] sm:$0xff]
      %v442 = vld [vmem:[%s354 + $0xc1] sm:$0xff]
      %v443 = vld [vmem:[%s354 + $0xc9] sm:$0xff]
      %v444 = vld [vmem:[%s354 + $0xd9] sm:$0xff]
      %v445 = vld [vmem:[%s354 + $0xe1] sm:$0xff]
      %v446 = vld [vmem:[%s354 + $0xf1] sm:$0xff]
      %v447 = vld [vmem:[%s354 + $0xf9] sm:$0xff]
      %v448 = vld [vmem:[%s354 + $0x109] sm:$0xff]
      %v449 = vld [vmem:[%s354 + $0x111] sm:$0xff]
      %v450 = vld [vmem:[%s354 + $0x121] sm:$0xff]
      %v451 = vld [vmem:[%s354 + $0x129] sm:$0xff]
      %v452 = vld [vmem:[%s354 + $0x139] sm:$0xff]
      %v453 = vld [vmem:[%s354 + $0x141] sm:$0xff]
      %v454 = vld [vmem:[%s354 + $0x151] sm:$0xff]
      %v455 = vld [vmem:[%s354 + $0x159] sm:$0xff]
      %v456 = vld [vmem:[%s354 + $0x169] sm:$0xff]
      %v457 = vld [vmem:[%s354 + $0x171] sm:$0xff]
      %v458 = vpack.c.bf16 %v427, %v426
      %v459 = vpack.c.bf16 %v429, %v428
      %v460 = vpack.c.bf16 %v431, %v430
      %v461 = vpack.c.bf16 %v433, %v432
      %v462 = vpack.c.bf16 %v435, %v434
      %v463 = vpack.c.bf16 %v437, %v436
      %v464 = vpack.c.bf16 %v439, %v438
      %v465 = vpack.c.bf16 %v441, %v440
      %v466 = vpack.c.bf16 %v443, %v442
      %v467 = vpack.c.bf16 %v445, %v444
      %v468 = vpack.c.bf16 %v447, %v446
      %v469 = vpack.c.bf16 %v449, %v448
      %v470 = vpack.c.bf16 %v451, %v450
      %v471 = vpack.c.bf16 %v453, %v452
      %v472 = vpack.c.bf16 %v455, %v454
      %v473 = vpack.c.bf16 %v457, %v456
      %490 = vrot.lane.b32.xlu0 %v458, 16
      %v491 = vpop.permute.xlu0 %490
      %492 = vrot.lane.b32.xlu0 %v459, 16
      %v493 = vpop.permute.xlu0 %492
      %494 = vrot.lane.b32.xlu0 %v460, 16
      %v495 = vpop.permute.xlu0 %494
      %496 = vrot.lane.b32.xlu0 %v461, 16
      %v497 = vpop.permute.xlu0 %496
      %498 = vrot.lane.b32.xlu0 %v462, 16
      %v499 = vpop.permute.xlu0 %498
      %500 = vrot.lane.b32.xlu0 %v463, 16
      %v501 = vpop.permute.xlu0 %500
      %502 = vrot.lane.b32.xlu0 %v464, 16
      %v503 = vpop.permute.xlu0 %502
      %504 = vrot.lane.b32.xlu0 %v465, 16
      %v505 = vpop.permute.xlu0 %504
      %506 = vrot.lane.b32.xlu0 %v466, 16
      %v507 = vpop.permute.xlu0 %506
      %508 = vrot.lane.b32.xlu0 %v467, 16
      %v509 = vpop.permute.xlu0 %508
      %510 = vrot.lane.b32.xlu0 %v468, 16
      %v511 = vpop.permute.xlu0 %510
      %512 = vrot.lane.b32.xlu0 %v469, 16
      %v513 = vpop.permute.xlu0 %512
      %514 = vrot.lane.b32.xlu0 %v470, 16
      %v515 = vpop.permute.xlu0 %514
      %516 = vrot.lane.b32.xlu0 %v471, 16
      %v517 = vpop.permute.xlu0 %516
      %518 = vrot.lane.b32.xlu0 %v472, 16
      %v519 = vpop.permute.xlu0 %518
      %520 = vrot.lane.b32.xlu0 %v473, 16
      %v521 = vpop.permute.xlu0 %520
      %vm538 = vcmask 261248
      %539 = vst.msk [vmem:[#allocation2] sm:$0xff] %vm538, %v491
      %540 = vst.msk [vmem:[#allocation2 + $0x10] sm:$0xff] %vm538, %v493
      %541 = vst.msk [vmem:[#allocation2 + $0x20] sm:$0xff] %vm538, %v495
      %542 = vst.msk [vmem:[#allocation2 + $0x30] sm:$0xff] %vm538, %v497
      %543 = vst.msk [vmem:[#allocation2 + $0x40] sm:$0xff] %vm538, %v499
      %544 = vst.msk [vmem:[#allocation2 + $0x50] sm:$0xff] %vm538, %v501
      %545 = vst.msk [vmem:[#allocation2 + $0x60] sm:$0xff] %vm538, %v503
      %546 = vst.msk [vmem:[#allocation2 + $0x70] sm:$0xff] %vm538, %v505
      %547 = vst.msk [vmem:[#allocation2 + $0x80] sm:$0xff] %vm538, %v507
      %548 = vst.msk [vmem:[#allocation2 + $0x90] sm:$0xff] %vm538, %v509
      %549 = vst.msk [vmem:[#allocation2 + $0xa0] sm:$0xff] %vm538, %v511
      %550 = vst.msk [vmem:[#allocation2 + $0xb0] sm:$0xff] %vm538, %v513
      %551 = vst.msk [vmem:[#allocation2 + $0xc0] sm:$0xff] %vm538, %v515
      %552 = vst.msk [vmem:[#allocation2 + $0xd0] sm:$0xff] %vm538, %v517
      %553 = vst.msk [vmem:[#allocation2 + $0xe0] sm:$0xff] %vm538, %v519
      %554 = vst.msk [vmem:[#allocation2 + $0xf0] sm:$0xff] %vm538, %v521
      %v555 = vld [vmem:[%s354 + $0x2] sm:$0xff]
      %v556 = vld [vmem:[%s354 + $0xa] sm:$0xff]
      %v557 = vld [vmem:[%s354 + $0x1a] sm:$0xff]
      %v558 = vld [vmem:[%s354 + $0x22] sm:$0xff]
      %v559 = vld [vmem:[%s354 + $0x32] sm:$0xff]
      %v560 = vld [vmem:[%s354 + $0x3a] sm:$0xff]
      %v561 = vld [vmem:[%s354 + $0x4a] sm:$0xff]
      %v562 = vld [vmem:[%s354 + $0x52] sm:$0xff]
      %v563 = vld [vmem:[%s354 + $0x62] sm:$0xff]
      %v564 = vld [vmem:[%s354 + $0x6a] sm:$0xff]
      %v565 = vld [vmem:[%s354 + $0x7a] sm:$0xff]
      %v566 = vld [vmem:[%s354 + $0x82] sm:$0xff]
      %v567 = vld [vmem:[%s354 + $0x92] sm:$0xff]
      %v568 = vld [vmem:[%s354 + $0x9a] sm:$0xff]
      %v569 = vld [vmem:[%s354 + $0xaa] sm:$0xff]
      %v570 = vld [vmem:[%s354 + $0xb2] sm:$0xff]
      %v571 = vld [vmem:[%s354 + $0xc2] sm:$0xff]
      %v572 = vld [vmem:[%s354 + $0xca] sm:$0xff]
      %v573 = vld [vmem:[%s354 + $0xda] sm:$0xff]
      %v574 = vld [vmem:[%s354 + $0xe2] sm:$0xff]
      %v575 = vld [vmem:[%s354 + $0xf2] sm:$0xff]
      %v576 = vld [vmem:[%s354 + $0xfa] sm:$0xff]
      %v577 = vld [vmem:[%s354 + $0x10a] sm:$0xff]
      %v578 = vld [vmem:[%s354 + $0x112] sm:$0xff]
      %v579 = vld [vmem:[%s354 + $0x122] sm:$0xff]
      %v580 = vld [vmem:[%s354 + $0x12a] sm:$0xff]
      %v581 = vld [vmem:[%s354 + $0x13a] sm:$0xff]
      %v582 = vld [vmem:[%s354 + $0x142] sm:$0xff]
      %v583 = vld [vmem:[%s354 + $0x152] sm:$0xff]
      %v584 = vld [vmem:[%s354 + $0x15a] sm:$0xff]
      %v585 = vld [vmem:[%s354 + $0x16a] sm:$0xff]
      %v586 = vld [vmem:[%s354 + $0x172] sm:$0xff]
      %v587 = vpack.c.bf16 %v556, %v555
      %v588 = vpack.c.bf16 %v558, %v557
      %v589 = vpack.c.bf16 %v560, %v559
      %v590 = vpack.c.bf16 %v562, %v561
      %v591 = vpack.c.bf16 %v564, %v563
      %v592 = vpack.c.bf16 %v566, %v565
      %v593 = vpack.c.bf16 %v568, %v567
      %v594 = vpack.c.bf16 %v570, %v569
      %v595 = vpack.c.bf16 %v572, %v571
      %v596 = vpack.c.bf16 %v574, %v573
      %v597 = vpack.c.bf16 %v576, %v575
      %v598 = vpack.c.bf16 %v578, %v577
      %v599 = vpack.c.bf16 %v580, %v579
      %v600 = vpack.c.bf16 %v582, %v581
      %v601 = vpack.c.bf16 %v584, %v583
      %v602 = vpack.c.bf16 %v586, %v585
      %619 = vrot.lane.b32.xlu0 %v587, 32
      %v620 = vpop.permute.xlu0 %619
      %621 = vrot.lane.b32.xlu0 %v588, 32
      %v622 = vpop.permute.xlu0 %621
      %623 = vrot.lane.b32.xlu0 %v589, 32
      %v624 = vpop.permute.xlu0 %623
      %625 = vrot.lane.b32.xlu0 %v590, 32
      %v626 = vpop.permute.xlu0 %625
      %627 = vrot.lane.b32.xlu0 %v591, 32
      %v628 = vpop.permute.xlu0 %627
      %629 = vrot.lane.b32.xlu0 %v592, 32
      %v630 = vpop.permute.xlu0 %629
      %631 = vrot.lane.b32.xlu0 %v593, 32
      %v632 = vpop.permute.xlu0 %631
      %633 = vrot.lane.b32.xlu0 %v594, 32
      %v634 = vpop.permute.xlu0 %633
      %635 = vrot.lane.b32.xlu0 %v595, 32
      %v636 = vpop.permute.xlu0 %635
      %637 = vrot.lane.b32.xlu0 %v596, 32
      %v638 = vpop.permute.xlu0 %637
      %639 = vrot.lane.b32.xlu0 %v597, 32
      %v640 = vpop.permute.xlu0 %639
      %641 = vrot.lane.b32.xlu0 %v598, 32
      %v642 = vpop.permute.xlu0 %641
      %643 = vrot.lane.b32.xlu0 %v599, 32
      %v644 = vpop.permute.xlu0 %643
      %645 = vrot.lane.b32.xlu0 %v600, 32
      %v646 = vpop.permute.xlu0 %645
      %647 = vrot.lane.b32.xlu0 %v601, 32
      %v648 = vpop.permute.xlu0 %647
      %649 = vrot.lane.b32.xlu0 %v602, 32
      %v650 = vpop.permute.xlu0 %649
      %vm667 = vcmask 392448
      %668 = vst.msk [vmem:[#allocation2] sm:$0xff] %vm667, %v620
      %669 = vst.msk [vmem:[#allocation2 + $0x10] sm:$0xff] %vm667, %v622
      %670 = vst.msk [vmem:[#allocation2 + $0x20] sm:$0xff] %vm667, %v624
      %671 = vst.msk [vmem:[#allocation2 + $0x30] sm:$0xff] %vm667, %v626
      %672 = vst.msk [vmem:[#allocation2 + $0x40] sm:$0xff] %vm667, %v628
      %673 = vst.msk [vmem:[#allocation2 + $0x50] sm:$0xff] %vm667, %v630
      %674 = vst.msk [vmem:[#allocation2 + $0x60] sm:$0xff] %vm667, %v632
      %675 = vst.msk [vmem:[#allocation2 + $0x70] sm:$0xff] %vm667, %v634
      %676 = vst.msk [vmem:[#allocation2 + $0x80] sm:$0xff] %vm667, %v636
      %677 = vst.msk [vmem:[#allocation2 + $0x90] sm:$0xff] %vm667, %v638
      %678 = vst.msk [vmem:[#allocation2 + $0xa0] sm:$0xff] %vm667, %v640
      %679 = vst.msk [vmem:[#allocation2 + $0xb0] sm:$0xff] %vm667, %v642
      %680 = vst.msk [vmem:[#allocation2 + $0xc0] sm:$0xff] %vm667, %v644
      %681 = vst.msk [vmem:[#allocation2 + $0xd0] sm:$0xff] %vm667, %v646
      %682 = vst.msk [vmem:[#allocation2 + $0xe0] sm:$0xff] %vm667, %v648
      %683 = vst.msk [vmem:[#allocation2 + $0xf0] sm:$0xff] %vm667, %v650
      %s684 = scalar_lea.vmem %s354, 24
      %v685 = vld [vmem:[%s684] sm:$0xff]
      %v686 = vld [vmem:[%s684 + $0x8] sm:$0xff]
      %v687 = vld [vmem:[%s684 + $0x18] sm:$0xff]
      %v688 = vld [vmem:[%s684 + $0x20] sm:$0xff]
      %v689 = vld [vmem:[%s684 + $0x30] sm:$0xff]
      %v690 = vld [vmem:[%s684 + $0x38] sm:$0xff]
      %v691 = vld [vmem:[%s684 + $0x48] sm:$0xff]
      %v692 = vld [vmem:[%s684 + $0x50] sm:$0xff]
      %v693 = vld [vmem:[%s684 + $0x60] sm:$0xff]
      %v694 = vld [vmem:[%s684 + $0x68] sm:$0xff]
      %v695 = vld [vmem:[%s684 + $0x78] sm:$0xff]
      %v696 = vld [vmem:[%s684 + $0x80] sm:$0xff]
      %v697 = vld [vmem:[%s684 + $0x90] sm:$0xff]
      %v698 = vld [vmem:[%s684 + $0x98] sm:$0xff]
      %v699 = vld [vmem:[%s684 + $0xa8] sm:$0xff]
      %v700 = vld [vmem:[%s684 + $0xb0] sm:$0xff]
      %v701 = vld [vmem:[%s684 + $0xc0] sm:$0xff]
      %v702 = vld [vmem:[%s684 + $0xc8] sm:$0xff]
      %v703 = vld [vmem:[%s684 + $0xd8] sm:$0xff]
      %v704 = vld [vmem:[%s684 + $0xe0] sm:$0xff]
      %v705 = vld [vmem:[%s684 + $0xf0] sm:$0xff]
      %v706 = vld [vmem:[%s684 + $0xf8] sm:$0xff]
      %v707 = vld [vmem:[%s684 + $0x108] sm:$0xff]
      %v708 = vld [vmem:[%s684 + $0x110] sm:$0xff]
      %v709 = vld [vmem:[%s684 + $0x120] sm:$0xff]
      %v710 = vld [vmem:[%s684 + $0x128] sm:$0xff]
      %v711 = vld [vmem:[%s684 + $0x138] sm:$0xff]
      %v712 = vld [vmem:[%s684 + $0x140] sm:$0xff]
      %v713 = vld [vmem:[%s684 + $0x150] sm:$0xff]
      %v714 = vld [vmem:[%s684 + $0x158] sm:$0xff]
      %v715 = vld [vmem:[%s684 + $0x168] sm:$0xff]
      %v716 = vld [vmem:[%s684 + $0x170] sm:$0xff]
      %v717 = vpack.c.bf16 %v686, %v685
      %v718 = vpack.c.bf16 %v688, %v687
      %v719 = vpack.c.bf16 %v690, %v689
      %v720 = vpack.c.bf16 %v692, %v691
      %v721 = vpack.c.bf16 %v694, %v693
      %v722 = vpack.c.bf16 %v696, %v695
      %v723 = vpack.c.bf16 %v698, %v697
      %v724 = vpack.c.bf16 %v700, %v699
      %v725 = vpack.c.bf16 %v702, %v701
      %v726 = vpack.c.bf16 %v704, %v703
      %v727 = vpack.c.bf16 %v706, %v705
      %v728 = vpack.c.bf16 %v708, %v707
      %v729 = vpack.c.bf16 %v710, %v709
      %v730 = vpack.c.bf16 %v712, %v711
      %v731 = vpack.c.bf16 %v714, %v713
      %v732 = vpack.c.bf16 %v716, %v715
      %749 = vrot.lane.b32.xlu0 %v717, 48
      %v750 = vpop.permute.xlu0 %749
      %751 = vrot.lane.b32.xlu0 %v718, 48
      %v752 = vpop.permute.xlu0 %751
      %753 = vrot.lane.b32.xlu0 %v719, 48
      %v754 = vpop.permute.xlu0 %753
      %755 = vrot.lane.b32.xlu0 %v720, 48
      %v756 = vpop.permute.xlu0 %755
      %757 = vrot.lane.b32.xlu0 %v721, 48
      %v758 = vpop.permute.xlu0 %757
      %759 = vrot.lane.b32.xlu0 %v722, 48
      %v760 = vpop.permute.xlu0 %759
      %761 = vrot.lane.b32.xlu0 %v723, 48
      %v762 = vpop.permute.xlu0 %761
      %763 = vrot.lane.b32.xlu0 %v724, 48
      %v764 = vpop.permute.xlu0 %763
      %765 = vrot.lane.b32.xlu0 %v725, 48
      %v766 = vpop.permute.xlu0 %765
      %767 = vrot.lane.b32.xlu0 %v726, 48
      %v768 = vpop.permute.xlu0 %767
      %769 = vrot.lane.b32.xlu0 %v727, 48
      %v770 = vpop.permute.xlu0 %769
      %771 = vrot.lane.b32.xlu0 %v728, 48
      %v772 = vpop.permute.xlu0 %771
      %773 = vrot.lane.b32.xlu0 %v729, 48
      %v774 = vpop.permute.xlu0 %773
      %775 = vrot.lane.b32.xlu0 %v730, 48
      %v776 = vpop.permute.xlu0 %775
      %777 = vrot.lane.b32.xlu0 %v731, 48
      %v778 = vpop.permute.xlu0 %777
      %779 = vrot.lane.b32.xlu0 %v732, 48
      %v780 = vpop.permute.xlu0 %779
      %vm797 = vcmask 523648
      %798 = vst.msk [vmem:[#allocation2] sm:$0xff] %vm797, %v750
      %799 = vst.msk [vmem:[#allocation2 + $0x10] sm:$0xff] %vm797, %v752
      %800 = vst.msk [vmem:[#allocation2 + $0x20] sm:$0xff] %vm797, %v754
      %801 = vst.msk [vmem:[#allocation2 + $0x30] sm:$0xff] %vm797, %v756
      %802 = vst.msk [vmem:[#allocation2 + $0x40] sm:$0xff] %vm797, %v758
      %803 = vst.msk [vmem:[#allocation2 + $0x50] sm:$0xff] %vm797, %v760
      %804 = vst.msk [vmem:[#allocation2 + $0x60] sm:$0xff] %vm797, %v762
      %805 = vst.msk [vmem:[#allocation2 + $0x70] sm:$0xff] %vm797, %v764
      %806 = vst.msk [vmem:[#allocation2 + $0x80] sm:$0xff] %vm797, %v766
      %807 = vst.msk [vmem:[#allocation2 + $0x90] sm:$0xff] %vm797, %v768
      %808 = vst.msk [vmem:[#allocation2 + $0xa0] sm:$0xff] %vm797, %v770
      %809 = vst.msk [vmem:[#allocation2 + $0xb0] sm:$0xff] %vm797, %v772
      %810 = vst.msk [vmem:[#allocation2 + $0xc0] sm:$0xff] %vm797, %v774
      %811 = vst.msk [vmem:[#allocation2 + $0xd0] sm:$0xff] %vm797, %v776
      %812 = vst.msk [vmem:[#allocation2 + $0xe0] sm:$0xff] %vm797, %v778
      %813 = vst.msk [vmem:[#allocation2 + $0xf0] sm:$0xff] %vm797, %v780
      %v814 = vld [vmem:[%s684 + $0x1] sm:$0xff]
      %v815 = vld [vmem:[%s684 + $0x9] sm:$0xff]
      %v816 = vld [vmem:[%s684 + $0x19] sm:$0xff]
      %v817 = vld [vmem:[%s684 + $0x21] sm:$0xff]
      %v818 = vld [vmem:[%s684 + $0x31] sm:$0xff]
      %v819 = vld [vmem:[%s684 + $0x39] sm:$0xff]
      %v820 = vld [vmem:[%s684 + $0x49] sm:$0xff]
      %v821 = vld [vmem:[%s684 + $0x51] sm:$0xff]
      %v822 = vld [vmem:[%s684 + $0x61] sm:$0xff]
      %v823 = vld [vmem:[%s684 + $0x69] sm:$0xff]
      %v824 = vld [vmem:[%s684 + $0x79] sm:$0xff]
      %v825 = vld [vmem:[%s684 + $0x81] sm:$0xff]
      %v826 = vld [vmem:[%s684 + $0x91] sm:$0xff]
      %v827 = vld [vmem:[%s684 + $0x99] sm:$0xff]
      %v828 = vld [vmem:[%s684 + $0xa9] sm:$0xff]
      %v829 = vld [vmem:[%s684 + $0xb1] sm:$0xff]
      %v830 = vld [vmem:[%s684 + $0xc1] sm:$0xff]
      %v831 = vld [vmem:[%s684 + $0xc9] sm:$0xff]
      %v832 = vld [vmem:[%s684 + $0xd9] sm:$0xff]
      %v833 = vld [vmem:[%s684 + $0xe1] sm:$0xff]
      %v834 = vld [vmem:[%s684 + $0xf1] sm:$0xff]
      %v835 = vld [vmem:[%s684 + $0xf9] sm:$0xff]
      %v836 = vld [vmem:[%s684 + $0x109] sm:$0xff]
      %v837 = vld [vmem:[%s684 + $0x111] sm:$0xff]
      %v838 = vld [vmem:[%s684 + $0x121] sm:$0xff]
      %v839 = vld [vmem:[%s684 + $0x129] sm:$0xff]
      %v840 = vld [vmem:[%s684 + $0x139] sm:$0xff]
      %v841 = vld [vmem:[%s684 + $0x141] sm:$0xff]
      %v842 = vld [vmem:[%s684 + $0x151] sm:$0xff]
      %v843 = vld [vmem:[%s684 + $0x159] sm:$0xff]
      %v844 = vld [vmem:[%s684 + $0x169] sm:$0xff]
      %v845 = vld [vmem:[%s684 + $0x171] sm:$0xff]
      %v846 = vpack.c.bf16 %v815, %v814
      %v847 = vpack.c.bf16 %v817, %v816
      %v848 = vpack.c.bf16 %v819, %v818
      %v849 = vpack.c.bf16 %v821, %v820
      %v850 = vpack.c.bf16 %v823, %v822
      %v851 = vpack.c.bf16 %v825, %v824
      %v852 = vpack.c.bf16 %v827, %v826
      %v853 = vpack.c.bf16 %v829, %v828
      %v854 = vpack.c.bf16 %v831, %v830
      %v855 = vpack.c.bf16 %v833, %v832
      %v856 = vpack.c.bf16 %v835, %v834
      %v857 = vpack.c.bf16 %v837, %v836
      %v858 = vpack.c.bf16 %v839, %v838
      %v859 = vpack.c.bf16 %v841, %v840
      %v860 = vpack.c.bf16 %v843, %v842
      %v861 = vpack.c.bf16 %v845, %v844
      %878 = vrot.lane.b32.xlu0 %v846, 64
      %v879 = vpop.permute.xlu0 %878
      %880 = vrot.lane.b32.xlu0 %v847, 64
      %v881 = vpop.permute.xlu0 %880
      %882 = vrot.lane.b32.xlu0 %v848, 64
      %v883 = vpop.permute.xlu0 %882
      %884 = vrot.lane.b32.xlu0 %v849, 64
      %v885 = vpop.permute.xlu0 %884
      %886 = vrot.lane.b32.xlu0 %v850, 64
      %v887 = vpop.permute.xlu0 %886
      %888 = vrot.lane.b32.xlu0 %v851, 64
      %v889 = vpop.permute.xlu0 %888
      %890 = vrot.lane.b32.xlu0 %v852, 64
      %v891 = vpop.permute.xlu0 %890
      %892 = vrot.lane.b32.xlu0 %v853, 64
      %v893 = vpop.permute.xlu0 %892
      %894 = vrot.lane.b32.xlu0 %v854, 64
      %v895 = vpop.permute.xlu0 %894
      %896 = vrot.lane.b32.xlu0 %v855, 64
      %v897 = vpop.permute.xlu0 %896
      %898 = vrot.lane.b32.xlu0 %v856, 64
      %v899 = vpop.permute.xlu0 %898
      %900 = vrot.lane.b32.xlu0 %v857, 64
      %v901 = vpop.permute.xlu0 %900
      %902 = vrot.lane.b32.xlu0 %v858, 64
      %v903 = vpop.permute.xlu0 %902
      %904 = vrot.lane.b32.xlu0 %v859, 64
      %v905 = vpop.permute.xlu0 %904
      %906 = vrot.lane.b32.xlu0 %v860, 64
      %v907 = vpop.permute.xlu0 %906
      %908 = vrot.lane.b32.xlu0 %v861, 64
      %v909 = vpop.permute.xlu0 %908
      %vm926 = vcmask 654848
      %927 = vst.msk [vmem:[#allocation2] sm:$0xff] %vm926, %v879
      %928 = vst.msk [vmem:[#allocation2 + $0x10] sm:$0xff] %vm926, %v881
      %929 = vst.msk [vmem:[#allocation2 + $0x20] sm:$0xff] %vm926, %v883
      %930 = vst.msk [vmem:[#allocation2 + $0x30] sm:$0xff] %vm926, %v885
      %931 = vst.msk [vmem:[#allocation2 + $0x40] sm:$0xff] %vm926, %v887
      %932 = vst.msk [vmem:[#allocation2 + $0x50] sm:$0xff] %vm926, %v889
      %933 = vst.msk [vmem:[#allocation2 + $0x60] sm:$0xff] %vm926, %v891
      %934 = vst.msk [vmem:[#allocation2 + $0x70] sm:$0xff] %vm926, %v893
      %935 = vst.msk [vmem:[#allocation2 + $0x80] sm:$0xff] %vm926, %v895
      %936 = vst.msk [vmem:[#allocation2 + $0x90] sm:$0xff] %vm926, %v897
      %937 = vst.msk [vmem:[#allocation2 + $0xa0] sm:$0xff] %vm926, %v899
      %938 = vst.msk [vmem:[#allocation2 + $0xb0] sm:$0xff] %vm926, %v901
      %939 = vst.msk [vmem:[#allocation2 + $0xc0] sm:$0xff] %vm926, %v903
      %940 = vst.msk [vmem:[#allocation2 + $0xd0] sm:$0xff] %vm926, %v905
      %941 = vst.msk [vmem:[#allocation2 + $0xe0] sm:$0xff] %vm926, %v907
      %942 = vst.msk [vmem:[#allocation2 + $0xf0] sm:$0xff] %vm926, %v909
      %v943 = vld [vmem:[%s684 + $0x2] sm:$0xff]
      %v944 = vld [vmem:[%s684 + $0xa] sm:$0xff]
      %v945 = vld [vmem:[%s684 + $0x1a] sm:$0xff]
      %v946 = vld [vmem:[%s684 + $0x22] sm:$0xff]
      %v947 = vld [vmem:[%s684 + $0x32] sm:$0xff]
      %v948 = vld [vmem:[%s684 + $0x3a] sm:$0xff]
      %v949 = vld [vmem:[%s684 + $0x4a] sm:$0xff]
      %v950 = vld [vmem:[%s684 + $0x52] sm:$0xff]
      %v951 = vld [vmem:[%s684 + $0x62] sm:$0xff]
      %v952 = vld [vmem:[%s684 + $0x6a] sm:$0xff]
      %v953 = vld [vmem:[%s684 + $0x7a] sm:$0xff]
      %v954 = vld [vmem:[%s684 + $0x82] sm:$0xff]
      %v955 = vld [vmem:[%s684 + $0x92] sm:$0xff]
      %v956 = vld [vmem:[%s684 + $0x9a] sm:$0xff]
      %v957 = vld [vmem:[%s684 + $0xaa] sm:$0xff]
      %v958 = vld [vmem:[%s684 + $0xb2] sm:$0xff]
      %v959 = vld [vmem:[%s684 + $0xc2] sm:$0xff]
      %v960 = vld [vmem:[%s684 + $0xca] sm:$0xff]
      %v961 = vld [vmem:[%s684 + $0xda] sm:$0xff]
      %v962 = vld [vmem:[%s684 + $0xe2] sm:$0xff]
      %v963 = vld [vmem:[%s684 + $0xf2] sm:$0xff]
      %v964 = vld [vmem:[%s684 + $0xfa] sm:$0xff]
      %v965 = vld [vmem:[%s684 + $0x10a] sm:$0xff]
      %v966 = vld [vmem:[%s684 + $0x112] sm:$0xff]
      %v967 = vld [vmem:[%s684 + $0x122] sm:$0xff]
      %v968 = vld [vmem:[%s684 + $0x12a] sm:$0xff]
      %v969 = vld [vmem:[%s684 + $0x13a] sm:$0xff]
      %v970 = vld [vmem:[%s684 + $0x142] sm:$0xff]
      %v971 = vld [vmem:[%s684 + $0x152] sm:$0xff]
      %v972 = vld [vmem:[%s684 + $0x15a] sm:$0xff]
      %v973 = vld [vmem:[%s684 + $0x16a] sm:$0xff]
      %v974 = vld [vmem:[%s684 + $0x172] sm:$0xff]
      %v975 = vpack.c.bf16 %v944, %v943
      %v976 = vpack.c.bf16 %v946, %v945
      %v977 = vpack.c.bf16 %v948, %v947
      %v978 = vpack.c.bf16 %v950, %v949
      %v979 = vpack.c.bf16 %v952, %v951
      %v980 = vpack.c.bf16 %v954, %v953
      %v981 = vpack.c.bf16 %v956, %v955
      %v982 = vpack.c.bf16 %v958, %v957
      %v983 = vpack.c.bf16 %v960, %v959
      %v984 = vpack.c.bf16 %v962, %v961
      %v985 = vpack.c.bf16 %v964, %v963
      %v986 = vpack.c.bf16 %v966, %v965
      %v987 = vpack.c.bf16 %v968, %v967
      %v988 = vpack.c.bf16 %v970, %v969
      %v989 = vpack.c.bf16 %v972, %v971
      %v990 = vpack.c.bf16 %v974, %v973
      %1007 = vrot.lane.b32.xlu0 %v975, 80
      %v1008 = vpop.permute.xlu0 %1007
      %1009 = vrot.lane.b32.xlu0 %v976, 80
      %v1010 = vpop.permute.xlu0 %1009
      %1011 = vrot.lane.b32.xlu0 %v977, 80
      %v1012 = vpop.permute.xlu0 %1011
      %1013 = vrot.lane.b32.xlu0 %v978, 80
      %v1014 = vpop.permute.xlu0 %1013
      %1015 = vrot.lane.b32.xlu0 %v979, 80
      %v1016 = vpop.permute.xlu0 %1015
      %1017 = vrot.lane.b32.xlu0 %v980, 80
      %v1018 = vpop.permute.xlu0 %1017
      %1019 = vrot.lane.b32.xlu0 %v981, 80
      %v1020 = vpop.permute.xlu0 %1019
      %1021 = vrot.lane.b32.xlu0 %v982, 80
      %v1022 = vpop.permute.xlu0 %1021
      %1023 = vrot.lane.b32.xlu0 %v983, 80
      %v1024 = vpop.permute.xlu0 %1023
      %1025 = vrot.lane.b32.xlu0 %v984, 80
      %v1026 = vpop.permute.xlu0 %1025
      %1027 = vrot.lane.b32.xlu0 %v985, 80
      %v1028 = vpop.permute.xlu0 %1027
      %1029 = vrot.lane.b32.xlu0 %v986, 80
      %v1030 = vpop.permute.xlu0 %1029
      %1031 = vrot.lane.b32.xlu0 %v987, 80
      %v1032 = vpop.permute.xlu0 %1031
      %1033 = vrot.lane.b32.xlu0 %v988, 80
      %v1034 = vpop.permute.xlu0 %1033
      %1035 = vrot.lane.b32.xlu0 %v989, 80
      %v1036 = vpop.permute.xlu0 %1035
      %1037 = vrot.lane.b32.xlu0 %v990, 80
      %v1038 = vpop.permute.xlu0 %1037
      %vm1055 = vcmask 786048
      %1056 = vst.msk [vmem:[#allocation2] sm:$0xff] %vm1055, %v1008
      %1057 = vst.msk [vmem:[#allocation2 + $0x10] sm:$0xff] %vm1055, %v1010
      %1058 = vst.msk [vmem:[#allocation2 + $0x20] sm:$0xff] %vm1055, %v1012
      %1059 = vst.msk [vmem:[#allocation2 + $0x30] sm:$0xff] %vm1055, %v1014
      %1060 = vst.msk [vmem:[#allocation2 + $0x40] sm:$0xff] %vm1055, %v1016
      %1061 = vst.msk [vmem:[#allocation2 + $0x50] sm:$0xff] %vm1055, %v1018
      %1062 = vst.msk [vmem:[#allocation2 + $0x60] sm:$0xff] %vm1055, %v1020
      %1063 = vst.msk [vmem:[#allocation2 + $0x70] sm:$0xff] %vm1055, %v1022
      %1064 = vst.msk [vmem:[#allocation2 + $0x80] sm:$0xff] %vm1055, %v1024
      %1065 = vst.msk [vmem:[#allocation2 + $0x90] sm:$0xff] %vm1055, %v1026
      %1066 = vst.msk [vmem:[#allocation2 + $0xa0] sm:$0xff] %vm1055, %v1028
      %1067 = vst.msk [vmem:[#allocation2 + $0xb0] sm:$0xff] %vm1055, %v1030
      %1068 = vst.msk [vmem:[#allocation2 + $0xc0] sm:$0xff] %vm1055, %v1032
      %1069 = vst.msk [vmem:[#allocation2 + $0xd0] sm:$0xff] %vm1055, %v1034
      %1070 = vst.msk [vmem:[#allocation2 + $0xe0] sm:$0xff] %vm1055, %v1036
      %1071 = vst.msk [vmem:[#allocation2 + $0xf0] sm:$0xff] %vm1055, %v1038
      %s1072 = scalar_lea.vmem %s354, 48
      %v1073 = vld [vmem:[%s1072] sm:$0xff]
      %v1074 = vld [vmem:[%s1072 + $0x8] sm:$0xff]
      %v1075 = vld [vmem:[%s1072 + $0x18] sm:$0xff]
      %v1076 = vld [vmem:[%s1072 + $0x20] sm:$0xff]
      %v1077 = vld [vmem:[%s1072 + $0x30] sm:$0xff]
      %v1078 = vld [vmem:[%s1072 + $0x38] sm:$0xff]
      %v1079 = vld [vmem:[%s1072 + $0x48] sm:$0xff]
      %v1080 = vld [vmem:[%s1072 + $0x50] sm:$0xff]
      %v1081 = vld [vmem:[%s1072 + $0x60] sm:$0xff]
      %v1082 = vld [vmem:[%s1072 + $0x68] sm:$0xff]
      %v1083 = vld [vmem:[%s1072 + $0x78] sm:$0xff]
      %v1084 = vld [vmem:[%s1072 + $0x80] sm:$0xff]
      %v1085 = vld [vmem:[%s1072 + $0x90] sm:$0xff]
      %v1086 = vld [vmem:[%s1072 + $0x98] sm:$0xff]
      %v1087 = vld [vmem:[%s1072 + $0xa8] sm:$0xff]
      %v1088 = vld [vmem:[%s1072 + $0xb0] sm:$0xff]
      %v1089 = vld [vmem:[%s1072 + $0xc0] sm:$0xff]
      %v1090 = vld [vmem:[%s1072 + $0xc8] sm:$0xff]
      %v1091 = vld [vmem:[%s1072 + $0xd8] sm:$0xff]
      %v1092 = vld [vmem:[%s1072 + $0xe0] sm:$0xff]
      %v1093 = vld [vmem:[%s1072 + $0xf0] sm:$0xff]
      %v1094 = vld [vmem:[%s1072 + $0xf8] sm:$0xff]
      %v1095 = vld [vmem:[%s1072 + $0x108] sm:$0xff]
      %v1096 = vld [vmem:[%s1072 + $0x110] sm:$0xff]
      %v1097 = vld [vmem:[%s1072 + $0x120] sm:$0xff]
      %v1098 = vld [vmem:[%s1072 + $0x128] sm:$0xff]
      %v1099 = vld [vmem:[%s1072 + $0x138] sm:$0xff]
      %v1100 = vld [vmem:[%s1072 + $0x140] sm:$0xff]
      %v1101 = vld [vmem:[%s1072 + $0x150] sm:$0xff]
      %v1102 = vld [vmem:[%s1072 + $0x158] sm:$0xff]
      %v1103 = vld [vmem:[%s1072 + $0x168] sm:$0xff]
      %v1104 = vld [vmem:[%s1072 + $0x170] sm:$0xff]
      %v1105 = vpack.c.bf16 %v1074, %v1073
      %v1106 = vpack.c.bf16 %v1076, %v1075
      %v1107 = vpack.c.bf16 %v1078, %v1077
      %v1108 = vpack.c.bf16 %v1080, %v1079
      %v1109 = vpack.c.bf16 %v1082, %v1081
      %v1110 = vpack.c.bf16 %v1084, %v1083
      %v1111 = vpack.c.bf16 %v1086, %v1085
      %v1112 = vpack.c.bf16 %v1088, %v1087
      %v1113 = vpack.c.bf16 %v1090, %v1089
      %v1114 = vpack.c.bf16 %v1092, %v1091
      %v1115 = vpack.c.bf16 %v1094, %v1093
      %v1116 = vpack.c.bf16 %v1096, %v1095
      %v1117 = vpack.c.bf16 %v1098, %v1097
      %v1118 = vpack.c.bf16 %v1100, %v1099
      %v1119 = vpack.c.bf16 %v1102, %v1101
      %v1120 = vpack.c.bf16 %v1104, %v1103
      %1137 = vrot.lane.b32.xlu0 %v1105, 96
      %v1138 = vpop.permute.xlu0 %1137
      %1139 = vrot.lane.b32.xlu0 %v1106, 96
      %v1140 = vpop.permute.xlu0 %1139
      %1141 = vrot.lane.b32.xlu0 %v1107, 96
      %v1142 = vpop.permute.xlu0 %1141
      %1143 = vrot.lane.b32.xlu0 %v1108, 96
      %v1144 = vpop.permute.xlu0 %1143
      %1145 = vrot.lane.b32.xlu0 %v1109, 96
      %v1146 = vpop.permute.xlu0 %1145
      %1147 = vrot.lane.b32.xlu0 %v1110, 96
      %v1148 = vpop.permute.xlu0 %1147
      %1149 = vrot.lane.b32.xlu0 %v1111, 96
      %v1150 = vpop.permute.xlu0 %1149
      %1151 = vrot.lane.b32.xlu0 %v1112, 96
      %v1152 = vpop.permute.xlu0 %1151
      %1153 = vrot.lane.b32.xlu0 %v1113, 96
      %v1154 = vpop.permute.xlu0 %1153
      %1155 = vrot.lane.b32.xlu0 %v1114, 96
      %v1156 = vpop.permute.xlu0 %1155
      %1157 = vrot.lane.b32.xlu0 %v1115, 96
      %v1158 = vpop.permute.xlu0 %1157
      %1159 = vrot.lane.b32.xlu0 %v1116, 96
      %v1160 = vpop.permute.xlu0 %1159
      %1161 = vrot.lane.b32.xlu0 %v1117, 96
      %v1162 = vpop.permute.xlu0 %1161
      %1163 = vrot.lane.b32.xlu0 %v1118, 96
      %v1164 = vpop.permute.xlu0 %1163
      %1165 = vrot.lane.b32.xlu0 %v1119, 96
      %v1166 = vpop.permute.xlu0 %1165
      %1167 = vrot.lane.b32.xlu0 %v1120, 96
      %v1168 = vpop.permute.xlu0 %1167
      %vm1185 = vcmask 917248
      %1186 = vst.msk [vmem:[#allocation2] sm:$0xff] %vm1185, %v1138
      %1187 = vst.msk [vmem:[#allocation2 + $0x10] sm:$0xff] %vm1185, %v1140
      %1188 = vst.msk [vmem:[#allocation2 + $0x20] sm:$0xff] %vm1185, %v1142
      %1189 = vst.msk [vmem:[#allocation2 + $0x30] sm:$0xff] %vm1185, %v1144
      %1190 = vst.msk [vmem:[#allocation2 + $0x40] sm:$0xff] %vm1185, %v1146
      %1191 = vst.msk [vmem:[#allocation2 + $0x50] sm:$0xff] %vm1185, %v1148
      %1192 = vst.msk [vmem:[#allocation2 + $0x60] sm:$0xff] %vm1185, %v1150
      %1193 = vst.msk [vmem:[#allocation2 + $0x70] sm:$0xff] %vm1185, %v1152
      %1194 = vst.msk [vmem:[#allocation2 + $0x80] sm:$0xff] %vm1185, %v1154
      %1195 = vst.msk [vmem:[#allocation2 + $0x90] sm:$0xff] %vm1185, %v1156
      %1196 = vst.msk [vmem:[#allocation2 + $0xa0] sm:$0xff] %vm1185, %v1158
      %1197 = vst.msk [vmem:[#allocation2 + $0xb0] sm:$0xff] %vm1185, %v1160
      %1198 = vst.msk [vmem:[#allocation2 + $0xc0] sm:$0xff] %vm1185, %v1162
      %1199 = vst.msk [vmem:[#allocation2 + $0xd0] sm:$0xff] %vm1185, %v1164
      %1200 = vst.msk [vmem:[#allocation2 + $0xe0] sm:$0xff] %vm1185, %v1166
      %1201 = vst.msk [vmem:[#allocation2 + $0xf0] sm:$0xff] %vm1185, %v1168
      %v1202 = vld [vmem:[%s1072 + $0x1] sm:$0xff]
      %v1203 = vld [vmem:[%s1072 + $0x9] sm:$0xff]
      %v1204 = vld [vmem:[%s1072 + $0x19] sm:$0xff]
      %v1205 = vld [vmem:[%s1072 + $0x21] sm:$0xff]
      %v1206 = vld [vmem:[%s1072 + $0x31] sm:$0xff]
      %v1207 = vld [vmem:[%s1072 + $0x39] sm:$0xff]
      %v1208 = vld [vmem:[%s1072 + $0x49] sm:$0xff]
      %v1209 = vld [vmem:[%s1072 + $0x51] sm:$0xff]
      %v1210 = vld [vmem:[%s1072 + $0x61] sm:$0xff]
      %v1211 = vld [vmem:[%s1072 + $0x69] sm:$0xff]
      %v1212 = vld [vmem:[%s1072 + $0x79] sm:$0xff]
      %v1213 = vld [vmem:[%s1072 + $0x81] sm:$0xff]
      %v1214 = vld [vmem:[%s1072 + $0x91] sm:$0xff]
      %v1215 = vld [vmem:[%s1072 + $0x99] sm:$0xff]
      %v1216 = vld [vmem:[%s1072 + $0xa9] sm:$0xff]
      %v1217 = vld [vmem:[%s1072 + $0xb1] sm:$0xff]
      %v1218 = vld [vmem:[%s1072 + $0xc1] sm:$0xff]
      %v1219 = vld [vmem:[%s1072 + $0xc9] sm:$0xff]
      %v1220 = vld [vmem:[%s1072 + $0xd9] sm:$0xff]
      %v1221 = vld [vmem:[%s1072 + $0xe1] sm:$0xff]
      %v1222 = vld [vmem:[%s1072 + $0xf1] sm:$0xff]
      %v1223 = vld [vmem:[%s1072 + $0xf9] sm:$0xff]
      %v1224 = vld [vmem:[%s1072 + $0x109] sm:$0xff]
      %v1225 = vld [vmem:[%s1072 + $0x111] sm:$0xff]
      %v1226 = vld [vmem:[%s1072 + $0x121] sm:$0xff]
      %v1227 = vld [vmem:[%s1072 + $0x129] sm:$0xff]
      %v1228 = vld [vmem:[%s1072 + $0x139] sm:$0xff]
      %v1229 = vld [vmem:[%s1072 + $0x141] sm:$0xff]
      %v1230 = vld [vmem:[%s1072 + $0x151] sm:$0xff]
      %v1231 = vld [vmem:[%s1072 + $0x159] sm:$0xff]
      %v1232 = vld [vmem:[%s1072 + $0x169] sm:$0xff]
      %v1233 = vld [vmem:[%s1072 + $0x171] sm:$0xff]
      %v1234 = vpack.c.bf16 %v1203, %v1202
      %v1235 = vpack.c.bf16 %v1205, %v1204
      %v1236 = vpack.c.bf16 %v1207, %v1206
      %v1237 = vpack.c.bf16 %v1209, %v1208
      %v1238 = vpack.c.bf16 %v1211, %v1210
      %v1239 = vpack.c.bf16 %v1213, %v1212
      %v1240 = vpack.c.bf16 %v1215, %v1214
      %v1241 = vpack.c.bf16 %v1217, %v1216
      %v1242 = vpack.c.bf16 %v1219, %v1218
      %v1243 = vpack.c.bf16 %v1221, %v1220
      %v1244 = vpack.c.bf16 %v1223, %v1222
      %v1245 = vpack.c.bf16 %v1225, %v1224
      %v1246 = vpack.c.bf16 %v1227, %v1226
      %v1247 = vpack.c.bf16 %v1229, %v1228
      %v1248 = vpack.c.bf16 %v1231, %v1230
      %v1249 = vpack.c.bf16 %v1233, %v1232
      %1266 = vrot.lane.b32.xlu0 %v1234, 112
      %v1267 = vpop.permute.xlu0 %1266
      %1268 = vrot.lane.b32.xlu0 %v1235, 112
      %v1269 = vpop.permute.xlu0 %1268
      %1270 = vrot.lane.b32.xlu0 %v1236, 112
      %v1271 = vpop.permute.xlu0 %1270
      %1272 = vrot.lane.b32.xlu0 %v1237, 112
      %v1273 = vpop.permute.xlu0 %1272
      %1274 = vrot.lane.b32.xlu0 %v1238, 112
      %v1275 = vpop.permute.xlu0 %1274
      %1276 = vrot.lane.b32.xlu0 %v1239, 112
      %v1277 = vpop.permute.xlu0 %1276
      %1278 = vrot.lane.b32.xlu0 %v1240, 112
      %v1279 = vpop.permute.xlu0 %1278
      %1280 = vrot.lane.b32.xlu0 %v1241, 112
      %v1281 = vpop.permute.xlu0 %1280
      %1282 = vrot.lane.b32.xlu0 %v1242, 112
      %v1283 = vpop.permute.xlu0 %1282
      %1284 = vrot.lane.b32.xlu0 %v1243, 112
      %v1285 = vpop.permute.xlu0 %1284
      %1286 = vrot.lane.b32.xlu0 %v1244, 112
      %v1287 = vpop.permute.xlu0 %1286
      %1288 = vrot.lane.b32.xlu0 %v1245, 112
      %v1289 = vpop.permute.xlu0 %1288
      %1290 = vrot.lane.b32.xlu0 %v1246, 112
      %v1291 = vpop.permute.xlu0 %1290
      %1292 = vrot.lane.b32.xlu0 %v1247, 112
      %v1293 = vpop.permute.xlu0 %1292
      %1294 = vrot.lane.b32.xlu0 %v1248, 112
      %v1295 = vpop.permute.xlu0 %1294
      %1296 = vrot.lane.b32.xlu0 %v1249, 112
      %v1297 = vpop.permute.xlu0 %1296
      %vm1314 = vcmask 1048448
      %1315 = vst.msk [vmem:[#allocation2] sm:$0xff] %vm1314, %v1267
      %1316 = vst.msk [vmem:[#allocation2 + $0x10] sm:$0xff] %vm1314, %v1269
      %1317 = vst.msk [vmem:[#allocation2 + $0x20] sm:$0xff] %vm1314, %v1271
      %1318 = vst.msk [vmem:[#allocation2 + $0x30] sm:$0xff] %vm1314, %v1273
      %1319 = vst.msk [vmem:[#allocation2 + $0x40] sm:$0xff] %vm1314, %v1275
      %1320 = vst.msk [vmem:[#allocation2 + $0x50] sm:$0xff] %vm1314, %v1277
      %1321 = vst.msk [vmem:[#allocation2 + $0x60] sm:$0xff] %vm1314, %v1279
      %1322 = vst.msk [vmem:[#allocation2 + $0x70] sm:$0xff] %vm1314, %v1281
      %1323 = vst.msk [vmem:[#allocation2 + $0x80] sm:$0xff] %vm1314, %v1283
      %1324 = vst.msk [vmem:[#allocation2 + $0x90] sm:$0xff] %vm1314, %v1285
      %1325 = vst.msk [vmem:[#allocation2 + $0xa0] sm:$0xff] %vm1314, %v1287
      %1326 = vst.msk [vmem:[#allocation2 + $0xb0] sm:$0xff] %vm1314, %v1289
      %1327 = vst.msk [vmem:[#allocation2 + $0xc0] sm:$0xff] %vm1314, %v1291
      %1328 = vst.msk [vmem:[#allocation2 + $0xd0] sm:$0xff] %vm1314, %v1293
      %1329 = vst.msk [vmem:[#allocation2 + $0xe0] sm:$0xff] %vm1314, %v1295
      %1330 = vst.msk [vmem:[#allocation2 + $0xf0] sm:$0xff] %vm1314, %v1297
      %v1331 = vld [vmem:[%s1072 + $0x2] sm:$0xff]
      %v1332 = vld [vmem:[%s1072 + $0xa] sm:$0xff]
      %v1333 = vld [vmem:[%s1072 + $0x1a] sm:$0xff]
      %v1334 = vld [vmem:[%s1072 + $0x22] sm:$0xff]
      %v1335 = vld [vmem:[%s1072 + $0x32] sm:$0xff]
      %v1336 = vld [vmem:[%s1072 + $0x3a] sm:$0xff]
      %v1337 = vld [vmem:[%s1072 + $0x4a] sm:$0xff]
      %v1338 = vld [vmem:[%s1072 + $0x52] sm:$0xff]
      %v1339 = vld [vmem:[%s1072 + $0x62] sm:$0xff]
      %v1340 = vld [vmem:[%s1072 + $0x6a] sm:$0xff]
      %v1341 = vld [vmem:[%s1072 + $0x7a] sm:$0xff]
      %v1342 = vld [vmem:[%s1072 + $0x82] sm:$0xff]
      %v1343 = vld [vmem:[%s1072 + $0x92] sm:$0xff]
      %v1344 = vld [vmem:[%s1072 + $0x9a] sm:$0xff]
      %v1345 = vld [vmem:[%s1072 + $0xaa] sm:$0xff]
      %v1346 = vld [vmem:[%s1072 + $0xb2] sm:$0xff]
      %v1347 = vld [vmem:[%s1072 + $0xc2] sm:$0xff]
      %v1348 = vld [vmem:[%s1072 + $0xca] sm:$0xff]
      %v1349 = vld [vmem:[%s1072 + $0xda] sm:$0xff]
      %v1350 = vld [vmem:[%s1072 + $0xe2] sm:$0xff]
      %v1351 = vld [vmem:[%s1072 + $0xf2] sm:$0xff]
      %v1352 = vld [vmem:[%s1072 + $0xfa] sm:$0xff]
      %v1353 = vld [vmem:[%s1072 + $0x10a] sm:$0xff]
      %v1354 = vld [vmem:[%s1072 + $0x112] sm:$0xff]
      %v1355 = vld [vmem:[%s1072 + $0x122] sm:$0xff]
      %v1356 = vld [vmem:[%s1072 + $0x12a] sm:$0xff]
      %v1357 = vld [vmem:[%s1072 + $0x13a] sm:$0xff]
      %v1358 = vld [vmem:[%s1072 + $0x142] sm:$0xff]
      %v1359 = vld [vmem:[%s1072 + $0x152] sm:$0xff]
      %v1360 = vld [vmem:[%s1072 + $0x15a] sm:$0xff]
      %v1361 = vld [vmem:[%s1072 + $0x16a] sm:$0xff]
      %v1362 = vld [vmem:[%s1072 + $0x172] sm:$0xff]
      %v1363 = vpack.c.bf16 %v1332, %v1331
      %v1364 = vpack.c.bf16 %v1334, %v1333
      %v1365 = vpack.c.bf16 %v1336, %v1335
      %v1366 = vpack.c.bf16 %v1338, %v1337
      %v1367 = vpack.c.bf16 %v1340, %v1339
      %v1368 = vpack.c.bf16 %v1342, %v1341
      %v1369 = vpack.c.bf16 %v1344, %v1343
      %v1370 = vpack.c.bf16 %v1346, %v1345
      %v1371 = vpack.c.bf16 %v1348, %v1347
      %v1372 = vpack.c.bf16 %v1350, %v1349
      %v1373 = vpack.c.bf16 %v1352, %v1351
      %v1374 = vpack.c.bf16 %v1354, %v1353
      %v1375 = vpack.c.bf16 %v1356, %v1355
      %v1376 = vpack.c.bf16 %v1358, %v1357
      %v1377 = vpack.c.bf16 %v1360, %v1359
      %v1378 = vpack.c.bf16 %v1362, %v1361
      %1379 = vst.msk [vmem:[#allocation2 + $0x8] sm:$0xff] %vm409, %v1363
      %1380 = vst.msk [vmem:[#allocation2 + $0x18] sm:$0xff] %vm409, %v1364
      %1381 = vst.msk [vmem:[#allocation2 + $0x28] sm:$0xff] %vm409, %v1365
      %1382 = vst.msk [vmem:[#allocation2 + $0x38] sm:$0xff] %vm409, %v1366
      %1383 = vst.msk [vmem:[#allocation2 + $0x48] sm:$0xff] %vm409, %v1367
      %1384 = vst.msk [vmem:[#allocation2 + $0x58] sm:$0xff] %vm409, %v1368
      %1385 = vst.msk [vmem:[#allocation2 + $0x68] sm:$0xff] %vm409, %v1369
      %1386 = vst.msk [vmem:[#allocation2 + $0x78] sm:$0xff] %vm409, %v1370
      %1387 = vst.msk [vmem:[#allocation2 + $0x88] sm:$0xff] %vm409, %v1371
      %1388 = vst.msk [vmem:[#allocation2 + $0x98] sm:$0xff] %vm409, %v1372
      %1389 = vst.msk [vmem:[#allocation2 + $0xa8] sm:$0xff] %vm409, %v1373
      %1390 = vst.msk [vmem:[#allocation2 + $0xb8] sm:$0xff] %vm409, %v1374
      %1391 = vst.msk [vmem:[#allocation2 + $0xc8] sm:$0xff] %vm409, %v1375
      %1392 = vst.msk [vmem:[#allocation2 + $0xd8] sm:$0xff] %vm409, %v1376
      %1393 = vst.msk [vmem:[#allocation2 + $0xe8] sm:$0xff] %vm409, %v1377
      %1394 = vst.msk [vmem:[#allocation2 + $0xf8] sm:$0xff] %vm409, %v1378
      %v1395 = vld [vmem:[#allocation2] sm:$0xff]
      %v1396 = vld [vmem:[#allocation2 + $0x8] sm:$0xff]
      %v1397 = vld [vmem:[#allocation2 + $0x10] sm:$0xff]
      %v1398 = vld [vmem:[#allocation2 + $0x18] sm:$0xff]
      %v1399 = vld [vmem:[#allocation2 + $0x20] sm:$0xff]
      %v1400 = vld [vmem:[#allocation2 + $0x28] sm:$0xff]
      %v1401 = vld [vmem:[#allocation2 + $0x30] sm:$0xff]
      %v1402 = vld [vmem:[#allocation2 + $0x38] sm:$0xff]
      %v1403 = vld [vmem:[#allocation2 + $0x40] sm:$0xff]
      %v1404 = vld [vmem:[#allocation2 + $0x48] sm:$0xff]
      %v1405 = vld [vmem:[#allocation2 + $0x50] sm:$0xff]
      %v1406 = vld [vmem:[#allocation2 + $0x58] sm:$0xff]
      %v1407 = vld [vmem:[#allocation2 + $0x60] sm:$0xff]
      %v1408 = vld [vmem:[#allocation2 + $0x68] sm:$0xff]
      %v1409 = vld [vmem:[#allocation2 + $0x70] sm:$0xff]
      %v1410 = vld [vmem:[#allocation2 + $0x78] sm:$0xff]
      %v1411 = vld [vmem:[#allocation2 + $0x80] sm:$0xff]
      %v1412 = vld [vmem:[#allocation2 + $0x88] sm:$0xff]
      %v1413 = vld [vmem:[#allocation2 + $0x90] sm:$0xff]
      %v1414 = vld [vmem:[#allocation2 + $0x98] sm:$0xff]
      %v1415 = vld [vmem:[#allocation2 + $0xa0] sm:$0xff]
      %v1416 = vld [vmem:[#allocation2 + $0xa8] sm:$0xff]
      %v1417 = vld [vmem:[#allocation2 + $0xb0] sm:$0xff]
      %v1418 = vld [vmem:[#allocation2 + $0xb8] sm:$0xff]
      %v1419 = vld [vmem:[#allocation2 + $0xc0] sm:$0xff]
      %v1420 = vld [vmem:[#allocation2 + $0xc8] sm:$0xff]
      %v1421 = vld [vmem:[#allocation2 + $0xd0] sm:$0xff]
      %v1422 = vld [vmem:[#allocation2 + $0xd8] sm:$0xff]
      %v1423 = vld [vmem:[#allocation2 + $0xe0] sm:$0xff]
      %v1424 = vld [vmem:[#allocation2 + $0xe8] sm:$0xff]
      %v1425 = vld [vmem:[#allocation2 + $0xf0] sm:$0xff]
      %v1426 = vld [vmem:[#allocation2 + $0xf8] sm:$0xff]
      %v1427 = vld [vmem:[%s1] sm:$0xf]
      %v1428 = vld [vmem:[%s1 + $0x4] sm:$0xf]
      %v1429 = vld [vmem:[%s1 + $0x8] sm:$0xf]
      %v1430 = vld [vmem:[%s1 + $0xc] sm:$0xf]
      %v1431 = vld [vmem:[%s1 + $0x10] sm:$0xf]
      %v1432 = vld [vmem:[%s1 + $0x14] sm:$0xf]
      %v1433 = vld [vmem:[%s1 + $0x18] sm:$0xf]
      %v1434 = vld [vmem:[%s1 + $0x1c] sm:$0xf]
      %v1435 = vld [vmem:[%s1 + $0x20] sm:$0xf]
      %v1436 = vld [vmem:[%s1 + $0x24] sm:$0xf]
      %v1437 = vld [vmem:[%s1 + $0x28] sm:$0xf]
      %v1438 = vld [vmem:[%s1 + $0x2c] sm:$0xf]
      %v1439 = vld [vmem:[%s1 + $0x30] sm:$0xf]
      %v1440 = vld [vmem:[%s1 + $0x34] sm:$0xf]
      %v1441 = vld [vmem:[%s1 + $0x38] sm:$0xf]
      %v1442 = vld [vmem:[%s1 + $0x3c] sm:$0xf]
      %v1443 = vld [vmem:[%s1 + $0x40] sm:$0xf]
      %v1444 = vld [vmem:[%s1 + $0x44] sm:$0xf]
      %v1463 = vunpack.c.l.b16 %v1427
      %v1464 = vunpack.c.l.b16 %v1428
      %v1465 = vunpack.c.l.b16 %v1429
      %v1466 = vunpack.c.l.b16 %v1430
      %v1467 = vunpack.c.l.b16 %v1431
      %v1468 = vunpack.c.l.b16 %v1432
      %v1469 = vunpack.c.l.b16 %v1433
      %v1470 = vunpack.c.l.b16 %v1434
      %v1471 = vunpack.c.l.b16 %v1435
      %v1472 = vunpack.c.l.b16 %v1436
      %v1473 = vunpack.c.l.b16 %v1437
      %v1474 = vunpack.c.l.b16 %v1438
      %v1475 = vunpack.c.l.b16 %v1439
      %v1476 = vunpack.c.l.b16 %v1440
      %v1477 = vunpack.c.l.b16 %v1441
      %v1478 = vunpack.c.l.b16 %v1442
      %v1479 = vunpack.c.l.b16 %v1443
      %v1480 = vunpack.c.l.b16 %v1444
      %v1481 = vpack.c.b16 %v1464, %v1463
      %v1482 = vpack.c.b16 %v1466, %v1465
      %v1483 = vpack.c.b16 %v1468, %v1467
      %v1484 = vpack.c.b16 %v1470, %v1469
      %v1485 = vpack.c.b16 %v1472, %v1471
      %v1486 = vpack.c.b16 %v1474, %v1473
      %v1487 = vpack.c.b16 %v1476, %v1475
      %v1488 = vpack.c.b16 %v1478, %v1477
      %v1489 = vpack.c.b16 %v1480, %v1479
      %v1500 = vsel %vm409, %v1396, 0
      %v1503 = vsel %vm409, %v1398, 0
      %v1506 = vsel %vm409, %v1400, 0
      %v1509 = vsel %vm409, %v1402, 0
      %v1512 = vsel %vm409, %v1404, 0
      %v1515 = vsel %vm409, %v1406, 0
      %v1518 = vsel %vm409, %v1408, 0
      %v1521 = vsel %vm409, %v1410, 0
      %v1524 = vsel %vm409, %v1412, 0
      %v1527 = vsel %vm409, %v1414, 0
      %v1530 = vsel %vm409, %v1416, 0
      %v1533 = vsel %vm409, %v1418, 0
      %v1536 = vsel %vm409, %v1420, 0
      %v1539 = vsel %vm409, %v1422, 0
      %v1542 = vsel %vm409, %v1424, 0
      %v1545 = vsel %vm409, %v1426, 0
      %1547 = vmatprep.subr.bf16.mxu0 0
      %1548 = vmatpush1.bf16.msra.mxu0 %v1481
      %1549 = vmatprep.subr.bf16.mxu0 0
      %1550 = vmatpush1.bf16.msra.mxu0 %v1482
      %1551 = vmatprep.subr.bf16.mxu0 0
      %1552 = vmatpush1.bf16.msra.mxu0 %v1483
      %1553 = vmatprep.subr.bf16.mxu0 0
      %1554 = vmatpush1.bf16.msra.mxu0 %v1484
      %1555 = vmatprep.subr.bf16.mxu0 0
      %1556 = vmatpush1.bf16.msra.mxu0 %v1485
      %1557 = vmatprep.subr.bf16.mxu0 0
      %1558 = vmatpush1.bf16.msra.mxu0 %v1486
      %1559 = vmatprep.subr.bf16.mxu0 0
      %1560 = vmatpush1.bf16.msra.mxu0 %v1487
      %1561 = vmatprep.subr.bf16.mxu0 0
      %1562 = vmatpush1.bf16.msra.mxu0 %v1488
      %1563 = vmatprep.subr.bf16.mxu0 0
      %1564 = vmatpush1.bf16.msra.mxu0 %v1489
      %1565 = vmatprep.subr.bf16.mxu0 0
      %1566 = vmatpush1.bf16.msra.mxu0 0
      %1567 = vmatprep.subr.bf16.mxu0 0
      %1568 = vmatpush1.bf16.msra.mxu0 0
      %1569 = vmatprep.subr.bf16.mxu0 0
      %1570 = vmatpush1.bf16.msra.mxu0 0
      %1571 = vmatprep.subr.bf16.mxu0 0
      %1572 = vmatpush1.bf16.msra.mxu0 0
      %1573 = vmatprep.subr.bf16.mxu0 0
      %1574 = vmatpush1.bf16.msra.mxu0 0
      %1575 = vmatprep.subr.bf16.mxu0 0
      %1576 = vmatpush1.bf16.msra.mxu0 0
      %1577 = vmatprep.subr.bf16.mxu0 0
      %1578 = vmatpush1.bf16.msra.mxu0 0
      %1579 = vmatprep.mubr.bf16.mxu0 %v1500
      %1580 = vmatmul.mubr.bf16.gmra.mrb[0].mxu0 %v1395
      %v1581 = vpop.f32.mrb[0].mxu0
      %v1582 = vadd.f32 0.0, %v1581
      %v1583 = vpop.f32.mrb[0].mxu0
      %v1584 = vpop.f32.mrb[0].mxu0
      %v1585 = vadd.f32 0.0, %v1584
      %v1586 = vpop.f32.mrb[0].mxu0
      %1587 = vmatprep.mubr.bf16.mxu0 %v1503
      %1588 = vmatmul.mubr.bf16.gmra.mrb[0].mxu0 %v1397
      %v1589 = vpop.f32.mrb[0].mxu0
      %v1590 = vadd.f32 0.0, %v1589
      %v1591 = vpop.f32.mrb[0].mxu0
      %v1592 = vpop.f32.mrb[0].mxu0
      %v1593 = vadd.f32 0.0, %v1592
      %v1594 = vpop.f32.mrb[0].mxu0
      %1595 = vmatprep.mubr.bf16.mxu0 %v1506
      %1596 = vmatmul.mubr.bf16.gmra.mrb[0].mxu0 %v1399
      %v1597 = vpop.f32.mrb[0].mxu0
      %v1598 = vadd.f32 0.0, %v1597
      %v1599 = vpop.f32.mrb[0].mxu0
      %v1600 = vpop.f32.mrb[0].mxu0
      %v1601 = vadd.f32 0.0, %v1600
      %v1602 = vpop.f32.mrb[0].mxu0
      %1603 = vmatprep.mubr.bf16.mxu0 %v1509
      %1604 = vmatmul.mubr.bf16.gmra.mrb[0].mxu0 %v1401
      %v1605 = vpop.f32.mrb[0].mxu0
      %v1606 = vadd.f32 0.0, %v1605
      %v1607 = vpop.f32.mrb[0].mxu0
      %v1608 = vpop.f32.mrb[0].mxu0
      %v1609 = vadd.f32 0.0, %v1608
      %v1610 = vpop.f32.mrb[0].mxu0
      %1611 = vmatprep.mubr.bf16.mxu0 %v1512
      %1612 = vmatmul.mubr.bf16.gmra.mrb[0].mxu0 %v1403
      %v1613 = vpop.f32.mrb[0].mxu0
      %v1614 = vadd.f32 0.0, %v1613
      %v1615 = vpop.f32.mrb[0].mxu0
      %v1616 = vpop.f32.mrb[0].mxu0
      %v1617 = vadd.f32 0.0, %v1616
      %v1618 = vpop.f32.mrb[0].mxu0
      %1619 = vmatprep.mubr.bf16.mxu0 %v1515
      %1620 = vmatmul.mubr.bf16.gmra.mrb[0].mxu0 %v1405
      %v1621 = vpop.f32.mrb[0].mxu0
      %v1622 = vadd.f32 0.0, %v1621
      %v1623 = vpop.f32.mrb[0].mxu0
      %v1624 = vpop.f32.mrb[0].mxu0
      %v1625 = vadd.f32 0.0, %v1624
      %v1626 = vpop.f32.mrb[0].mxu0
      %1627 = vmatprep.mubr.bf16.mxu0 %v1518
      %1628 = vmatmul.mubr.bf16.gmra.mrb[0].mxu0 %v1407
      %v1629 = vpop.f32.mrb[0].mxu0
      %v1630 = vadd.f32 0.0, %v1629
      %v1631 = vpop.f32.mrb[0].mxu0
      %v1632 = vpop.f32.mrb[0].mxu0
      %v1633 = vadd.f32 0.0, %v1632
      %v1634 = vpop.f32.mrb[0].mxu0
      %1635 = vmatprep.mubr.bf16.mxu0 %v1521
      %1636 = vmatmul.mubr.bf16.gmra.mrb[0].mxu0 %v1409
      %v1637 = vpop.f32.mrb[0].mxu0
      %v1638 = vadd.f32 0.0, %v1637
      %v1639 = vpop.f32.mrb[0].mxu0
      %v1640 = vpop.f32.mrb[0].mxu0
      %v1641 = vadd.f32 0.0, %v1640
      %v1642 = vpop.f32.mrb[0].mxu0
      %1643 = vmatprep.mubr.bf16.mxu0 %v1524
      %1644 = vmatmul.mubr.bf16.gmra.mrb[0].mxu0 %v1411
      %v1645 = vpop.f32.mrb[0].mxu0
      %v1646 = vadd.f32 0.0, %v1645
      %v1647 = vpop.f32.mrb[0].mxu0
      %v1648 = vpop.f32.mrb[0].mxu0
      %v1649 = vadd.f32 0.0, %v1648
      %v1650 = vpop.f32.mrb[0].mxu0
      %1651 = vmatprep.mubr.bf16.mxu0 %v1527
      %1652 = vmatmul.mubr.bf16.gmra.mrb[0].mxu0 %v1413
      %v1653 = vpop.f32.mrb[0].mxu0
      %v1654 = vadd.f32 0.0, %v1653
      %v1655 = vpop.f32.mrb[0].mxu0
      %v1656 = vpop.f32.mrb[0].mxu0
      %v1657 = vadd.f32 0.0, %v1656
      %v1658 = vpop.f32.mrb[0].mxu0
      %1659 = vmatprep.mubr.bf16.mxu0 %v1530
      %1660 = vmatmul.mubr.bf16.gmra.mrb[0].mxu0 %v1415
      %v1661 = vpop.f32.mrb[0].mxu0
      %v1662 = vadd.f32 0.0, %v1661
      %v1663 = vpop.f32.mrb[0].mxu0
      %v1664 = vpop.f32.mrb[0].mxu0
      %v1665 = vadd.f32 0.0, %v1664
      %v1666 = vpop.f32.mrb[0].mxu0
      %1667 = vmatprep.mubr.bf16.mxu0 %v1533
      %1668 = vmatmul.mubr.bf16.gmra.mrb[0].mxu0 %v1417
      %v1669 = vpop.f32.mrb[0].mxu0
      %v1670 = vadd.f32 0.0, %v1669
      %v1671 = vpop.f32.mrb[0].mxu0
      %v1672 = vpop.f32.mrb[0].mxu0
      %v1673 = vadd.f32 0.0, %v1672
      %v1674 = vpop.f32.mrb[0].mxu0
      %1675 = vmatprep.mubr.bf16.mxu0 %v1536
      %1676 = vmatmul.mubr.bf16.gmra.mrb[0].mxu0 %v1419
      %v1677 = vpop.f32.mrb[0].mxu0
      %v1678 = vadd.f32 0.0, %v1677
      %v1679 = vpop.f32.mrb[0].mxu0
      %v1680 = vpop.f32.mrb[0].mxu0
      %v1681 = vadd.f32 0.0, %v1680
      %v1682 = vpop.f32.mrb[0].mxu0
      %1683 = vmatprep.mubr.bf16.mxu0 %v1539
      %1684 = vmatmul.mubr.bf16.gmra.mrb[0].mxu0 %v1421
      %v1685 = vpop.f32.mrb[0].mxu0
      %v1686 = vadd.f32 0.0, %v1685
      %v1687 = vpop.f32.mrb[0].mxu0
      %v1688 = vpop.f32.mrb[0].mxu0
      %v1689 = vadd.f32 0.0, %v1688
      %v1690 = vpop.f32.mrb[0].mxu0
      %1691 = vmatprep.mubr.bf16.mxu0 %v1542
      %1692 = vmatmul.mubr.bf16.gmra.mrb[0].mxu0 %v1423
      %v1693 = vpop.f32.mrb[0].mxu0
      %v1694 = vadd.f32 0.0, %v1693
      %v1695 = vpop.f32.mrb[0].mxu0
      %v1696 = vpop.f32.mrb[0].mxu0
      %v1697 = vadd.f32 0.0, %v1696
      %v1698 = vpop.f32.mrb[0].mxu0
      %1699 = vmatprep.mubr.bf16.mxu0 %v1545
      %1700 = vmatmul.mubr.bf16.gmra.mrb[0].mxu0 %v1425
      %v1701 = vpop.f32.mrb[0].mxu0
      %v1702 = vadd.f32 0.0, %v1701
      %v1703 = vpop.f32.mrb[0].mxu0
      %v1704 = vpop.f32.mrb[0].mxu0
      %v1705 = vadd.f32 0.0, %v1704
      %v1706 = vpop.f32.mrb[0].mxu0
      %1707 = vdwg.mxu0
      %v1708 = vld [vmem:[%s2] sm:$0x1]
      %v1710 = vlaneseq
      %v1711 = vshrl.u32 %v1710, 7
      %v1712 = vsub.s32 0, %v1711
      %v1713 = vrot.slane %v1708, %v1712
      %v1715 = vmul.f32 %v1582, %v1713
      %v1716 = vmul.f32 %v1585, %v1713
      %v1717 = vmul.f32 %v1590, %v1713
      %v1718 = vmul.f32 %v1593, %v1713
      %v1719 = vmul.f32 %v1598, %v1713
      %v1720 = vmul.f32 %v1601, %v1713
      %v1721 = vmul.f32 %v1606, %v1713
      %v1722 = vmul.f32 %v1609, %v1713
      %v1723 = vmul.f32 %v1614, %v1713
      %v1724 = vmul.f32 %v1617, %v1713
      %v1725 = vmul.f32 %v1622, %v1713
      %v1726 = vmul.f32 %v1625, %v1713
      %v1727 = vmul.f32 %v1630, %v1713
      %v1728 = vmul.f32 %v1633, %v1713
      %v1729 = vmul.f32 %v1638, %v1713
      %v1730 = vmul.f32 %v1641, %v1713
      %v1731 = vmul.f32 %v1646, %v1713
      %v1732 = vmul.f32 %v1649, %v1713
      %v1733 = vmul.f32 %v1654, %v1713
      %v1734 = vmul.f32 %v1657, %v1713
      %v1735 = vmul.f32 %v1662, %v1713
      %v1736 = vmul.f32 %v1665, %v1713
      %v1737 = vmul.f32 %v1670, %v1713
      %v1738 = vmul.f32 %v1673, %v1713
      %v1739 = vmul.f32 %v1678, %v1713
      %v1740 = vmul.f32 %v1681, %v1713
      %v1741 = vmul.f32 %v1686, %v1713
      %v1742 = vmul.f32 %v1689, %v1713
      %v1743 = vmul.f32 %v1694, %v1713
      %v1744 = vmul.f32 %v1697, %v1713
      %v1745 = vmul.f32 %v1702, %v1713
      %v1746 = vmul.f32 %v1705, %v1713
      %v1747 = vld [vmem:[%s3] sm:$0x1]
      %v1749 = vlaneseq
      %v1750 = vshrl.u32 %v1749, 7
      %v1751 = vsub.s32 0, %v1750
      %v1752 = vrot.slane %v1747, %v1751
      %v1754 = vadd.f32 %v1715, %v1752
      %v1755 = vadd.f32 %v1716, %v1752
      %v1756 = vadd.f32 %v1717, %v1752
      %v1757 = vadd.f32 %v1718, %v1752
      %v1758 = vadd.f32 %v1719, %v1752
      %v1759 = vadd.f32 %v1720, %v1752
      %v1760 = vadd.f32 %v1721, %v1752
      %v1761 = vadd.f32 %v1722, %v1752
      %v1762 = vadd.f32 %v1723, %v1752
      %v1763 = vadd.f32 %v1724, %v1752
      %v1764 = vadd.f32 %v1725, %v1752
      %v1765 = vadd.f32 %v1726, %v1752
      %v1766 = vadd.f32 %v1727, %v1752
      %v1767 = vadd.f32 %v1728, %v1752
      %v1768 = vadd.f32 %v1729, %v1752
      %v1769 = vadd.f32 %v1730, %v1752
      %v1770 = vadd.f32 %v1731, %v1752
      %v1771 = vadd.f32 %v1732, %v1752
      %v1772 = vadd.f32 %v1733, %v1752
      %v1773 = vadd.f32 %v1734, %v1752
      %v1774 = vadd.f32 %v1735, %v1752
      %v1775 = vadd.f32 %v1736, %v1752
      %v1776 = vadd.f32 %v1737, %v1752
      %v1777 = vadd.f32 %v1738, %v1752
      %v1778 = vadd.f32 %v1739, %v1752
      %v1779 = vadd.f32 %v1740, %v1752
      %v1780 = vadd.f32 %v1741, %v1752
      %v1781 = vadd.f32 %v1742, %v1752
      %v1782 = vadd.f32 %v1743, %v1752
      %v1783 = vadd.f32 %v1744, %v1752
      %v1784 = vadd.f32 %v1745, %v1752
      %v1785 = vadd.f32 %v1746, %v1752
      %v1786 = vmax.f32 %v1754, 0.0
      %v1787 = vmax.f32 %v1755, 0.0
      %v1788 = vmax.f32 %v1756, 0.0
      %v1789 = vmax.f32 %v1757, 0.0
      %v1790 = vmax.f32 %v1758, 0.0
      %v1791 = vmax.f32 %v1759, 0.0
      %v1792 = vmax.f32 %v1760, 0.0
      %v1793 = vmax.f32 %v1761, 0.0
      %v1794 = vmax.f32 %v1762, 0.0
      %v1795 = vmax.f32 %v1763, 0.0
      %v1796 = vmax.f32 %v1764, 0.0
      %v1797 = vmax.f32 %v1765, 0.0
      %v1798 = vmax.f32 %v1766, 0.0
      %v1799 = vmax.f32 %v1767, 0.0
      %v1800 = vmax.f32 %v1768, 0.0
      %v1801 = vmax.f32 %v1769, 0.0
      %v1802 = vmax.f32 %v1770, 0.0
      %v1803 = vmax.f32 %v1771, 0.0
      %v1804 = vmax.f32 %v1772, 0.0
      %v1805 = vmax.f32 %v1773, 0.0
      %v1806 = vmax.f32 %v1774, 0.0
      %v1807 = vmax.f32 %v1775, 0.0
      %v1808 = vmax.f32 %v1776, 0.0
      %v1809 = vmax.f32 %v1777, 0.0
      %v1810 = vmax.f32 %v1778, 0.0
      %v1811 = vmax.f32 %v1779, 0.0
      %v1812 = vmax.f32 %v1780, 0.0
      %v1813 = vmax.f32 %v1781, 0.0
      %v1814 = vmax.f32 %v1782, 0.0
      %v1815 = vmax.f32 %v1783, 0.0
      %v1816 = vmax.f32 %v1784, 0.0
      %v1817 = vmax.f32 %v1785, 0.0
      %vm1818 = vcmask 64512
      %1819 = vst.msk [vmem:[%s359] sm:$0xff] %vm1818, %v1786
      %1820 = vst.msk [vmem:[%s359 + $0x8] sm:$0xff] %vm1818, %v1787
      %1821 = vst.msk [vmem:[%s359 + $0x10] sm:$0xff] %vm1818, %v1788
      %1822 = vst.msk [vmem:[%s359 + $0x18] sm:$0xff] %vm1818, %v1789
      %1823 = vst.msk [vmem:[%s359 + $0x20] sm:$0xff] %vm1818, %v1790
      %1824 = vst.msk [vmem:[%s359 + $0x28] sm:$0xff] %vm1818, %v1791
      %1825 = vst.msk [vmem:[%s359 + $0x30] sm:$0xff] %vm1818, %v1792
      %1826 = vst.msk [vmem:[%s359 + $0x38] sm:$0xff] %vm1818, %v1793
      %1827 = vst.msk [vmem:[%s359 + $0x40] sm:$0xff] %vm1818, %v1794
      %1828 = vst.msk [vmem:[%s359 + $0x48] sm:$0xff] %vm1818, %v1795
      %1829 = vst.msk [vmem:[%s359 + $0x50] sm:$0xff] %vm1818, %v1796
      %1830 = vst.msk [vmem:[%s359 + $0x58] sm:$0xff] %vm1818, %v1797
      %1831 = vst.msk [vmem:[%s359 + $0x60] sm:$0xff] %vm1818, %v1798
      %1832 = vst.msk [vmem:[%s359 + $0x68] sm:$0xff] %vm1818, %v1799
      %1833 = vst.msk [vmem:[%s359 + $0x70] sm:$0xff] %vm1818, %v1800
      %1834 = vst.msk [vmem:[%s359 + $0x78] sm:$0xff] %vm1818, %v1801
      %1835 = vst.msk [vmem:[%s359 + $0x80] sm:$0xff] %vm1818, %v1802
      %1836 = vst.msk [vmem:[%s359 + $0x88] sm:$0xff] %vm1818, %v1803
      %1837 = vst.msk [vmem:[%s359 + $0x90] sm:$0xff] %vm1818, %v1804
      %1838 = vst.msk [vmem:[%s359 + $0x98] sm:$0xff] %vm1818, %v1805
      %1839 = vst.msk [vmem:[%s359 + $0xa0] sm:$0xff] %vm1818, %v1806
      %1840 = vst.msk [vmem:[%s359 + $0xa8] sm:$0xff] %vm1818, %v1807
      %1841 = vst.msk [vmem:[%s359 + $0xb0] sm:$0xff] %vm1818, %v1808
      %1842 = vst.msk [vmem:[%s359 + $0xb8] sm:$0xff] %vm1818, %v1809
      %1843 = vst.msk [vmem:[%s359 + $0xc0] sm:$0xff] %vm1818, %v1810
      %1844 = vst.msk [vmem:[%s359 + $0xc8] sm:$0xff] %vm1818, %v1811
      %1845 = vst.msk [vmem:[%s359 + $0xd0] sm:$0xff] %vm1818, %v1812
      %1846 = vst.msk [vmem:[%s359 + $0xd8] sm:$0xff] %vm1818, %v1813
      %1847 = vst.msk [vmem:[%s359 + $0xe0] sm:$0xff] %vm1818, %v1814
      %1848 = vst.msk [vmem:[%s359 + $0xe8] sm:$0xff] %vm1818, %v1815
      %1849 = vst.msk [vmem:[%s359 + $0xf0] sm:$0xff] %vm1818, %v1816
      %1850 = vst.msk [vmem:[%s359 + $0xf8] sm:$0xff] %vm1818, %v1817
      %vm1851 = vcmask 31744
      %1852 = vst.msk [vmem:[#allocation4] sm:$0xff] %vm1851, 0.0
      %1853 = vst.msk [vmem:[#allocation4 + $0x8] sm:$0xff] %vm1851, 0.0
      %vm1854 = vcmask 25600
      %1855 = vst.msk [vmem:[#allocation4 + $0x10] sm:$0x3] %vm1854, 0.0
      %1856 = vst.msk [vmem:[#allocation4 + $0x18] sm:$0xff] %vm1851, 0.0
      %1857 = vst.msk [vmem:[#allocation4 + $0x20] sm:$0xff] %vm1851, 0.0
      %1858 = vst.msk [vmem:[#allocation4 + $0x28] sm:$0x3] %vm1854, 0.0
      %1859 = vst.msk [vmem:[#allocation4 + $0x30] sm:$0xff] %vm1851, 0.0
      %1860 = vst.msk [vmem:[#allocation4 + $0x38] sm:$0xff] %vm1851, 0.0
      %1861 = vst.msk [vmem:[#allocation4 + $0x40] sm:$0x3] %vm1854, 0.0
      %1862 = vst.msk [vmem:[#allocation4 + $0x48] sm:$0xff] %vm1851, 0.0
      %1863 = vst.msk [vmem:[#allocation4 + $0x50] sm:$0xff] %vm1851, 0.0
      %1864 = vst.msk [vmem:[#allocation4 + $0x58] sm:$0x3] %vm1854, 0.0
      %1865 = vst.msk [vmem:[#allocation4 + $0x60] sm:$0xff] %vm1851, 0.0
      %1866 = vst.msk [vmem:[#allocation4 + $0x68] sm:$0xff] %vm1851, 0.0
      %1867 = vst.msk [vmem:[#allocation4 + $0x70] sm:$0x3] %vm1854, 0.0
      %1868 = vst.msk [vmem:[#allocation4 + $0x78] sm:$0xff] %vm1851, 0.0
      %1869 = vst.msk [vmem:[#allocation4 + $0x80] sm:$0xff] %vm1851, 0.0
      %1870 = vst.msk [vmem:[#allocation4 + $0x88] sm:$0x3] %vm1854, 0.0
      %1871 = vst.msk [vmem:[#allocation4 + $0x90] sm:$0xff] %vm1851, 0.0
      %1872 = vst.msk [vmem:[#allocation4 + $0x98] sm:$0xff] %vm1851, 0.0
      %1873 = vst.msk [vmem:[#allocation4 + $0xa0] sm:$0x3] %vm1854, 0.0
      %1874 = vst.msk [vmem:[#allocation4 + $0xa8] sm:$0xff] %vm1851, 0.0
      %1875 = vst.msk [vmem:[#allocation4 + $0xb0] sm:$0xff] %vm1851, 0.0
      %1876 = vst.msk [vmem:[#allocation4 + $0xb8] sm:$0x3] %vm1854, 0.0
      %1877 = vst.msk [vmem:[#allocation4 + $0xc0] sm:$0xff] %vm1851, 0.0
      %1878 = vst.msk [vmem:[#allocation4 + $0xc8] sm:$0xff] %vm1851, 0.0
      %1879 = vst.msk [vmem:[#allocation4 + $0xd0] sm:$0x3] %vm1854, 0.0
      %1880 = vst.msk [vmem:[#allocation4 + $0xd8] sm:$0xff] %vm1851, 0.0
      %1881 = vst.msk [vmem:[#allocation4 + $0xe0] sm:$0xff] %vm1851, 0.0
      %1882 = vst.msk [vmem:[#allocation4 + $0xe8] sm:$0x3] %vm1854, 0.0
      %1883 = vst.msk [vmem:[#allocation4 + $0xf0] sm:$0xff] %vm1851, 0.0
      %1884 = vst.msk [vmem:[#allocation4 + $0xf8] sm:$0xff] %vm1851, 0.0
      %1885 = vst.msk [vmem:[#allocation4 + $0x100] sm:$0x3] %vm1854, 0.0
      %1886 = vst.msk [vmem:[#allocation4 + $0x108] sm:$0xff] %vm1851, 0.0
      %1887 = vst.msk [vmem:[#allocation4 + $0x110] sm:$0xff] %vm1851, 0.0
      %1888 = vst.msk [vmem:[#allocation4 + $0x118] sm:$0x3] %vm1854, 0.0
      %1889 = vst.msk [vmem:[#allocation4 + $0x120] sm:$0xff] %vm1851, 0.0
      %1890 = vst.msk [vmem:[#allocation4 + $0x128] sm:$0xff] %vm1851, 0.0
      %1891 = vst.msk [vmem:[#allocation4 + $0x130] sm:$0x3] %vm1854, 0.0
      %1892 = vst.msk [vmem:[#allocation4 + $0x138] sm:$0xff] %vm1851, 0.0
      %1893 = vst.msk [vmem:[#allocation4 + $0x140] sm:$0xff] %vm1851, 0.0
      %1894 = vst.msk [vmem:[#allocation4 + $0x148] sm:$0x3] %vm1854, 0.0
      %1895 = vst.msk [vmem:[#allocation4 + $0x150] sm:$0xff] %vm1851, 0.0
      %1896 = vst.msk [vmem:[#allocation4 + $0x158] sm:$0xff] %vm1851, 0.0
      %1897 = vst.msk [vmem:[#allocation4 + $0x160] sm:$0x3] %vm1854, 0.0
      %1898 = vst.msk [vmem:[#allocation4 + $0x168] sm:$0xff] %vm1851, 0.0
      %1899 = vst.msk [vmem:[#allocation4 + $0x170] sm:$0xff] %vm1851, 0.0
      %1900 = vst.msk [vmem:[#allocation4 + $0x178] sm:$0x3] %vm1854, 0.0
      %1901 = vst.msk [vmem:[#allocation4 + $0x180] sm:$0xff] %vm1851, 0.0
      %1902 = vst.msk [vmem:[#allocation4 + $0x188] sm:$0xff] %vm1851, 0.0
      %1903 = vst.msk [vmem:[#allocation4 + $0x190] sm:$0x3] %vm1854, 0.0
      %1904 = vst.msk [vmem:[#allocation4 + $0x198] sm:$0xff] %vm1851, 0.0
      %1905 = vst.msk [vmem:[#allocation4 + $0x1a0] sm:$0xff] %vm1851, 0.0
      %1906 = vst.msk [vmem:[#allocation4 + $0x1a8] sm:$0x3] %vm1854, 0.0
      %1939 = vrot.lane.b32.xlu0 %v1786, 120
      %v1940 = vpop.permute.xlu0 %1939
      %1941 = vrot.lane.b32.xlu0 %v1787, 120
      %v1942 = vpop.permute.xlu0 %1941
      %1943 = vrot.lane.b32.xlu0 %v1788, 120
      %v1944 = vpop.permute.xlu0 %1943
      %1945 = vrot.lane.b32.xlu0 %v1789, 120
      %v1946 = vpop.permute.xlu0 %1945
      %1947 = vrot.lane.b32.xlu0 %v1790, 120
      %v1948 = vpop.permute.xlu0 %1947
      %1949 = vrot.lane.b32.xlu0 %v1791, 120
      %v1950 = vpop.permute.xlu0 %1949
      %1951 = vrot.lane.b32.xlu0 %v1792, 120
      %v1952 = vpop.permute.xlu0 %1951
      %1953 = vrot.lane.b32.xlu0 %v1793, 120
      %v1954 = vpop.permute.xlu0 %1953
      %1955 = vrot.lane.b32.xlu0 %v1794, 120
      %v1956 = vpop.permute.xlu0 %1955
      %1957 = vrot.lane.b32.xlu0 %v1795, 120
      %v1958 = vpop.permute.xlu0 %1957
      %1959 = vrot.lane.b32.xlu0 %v1796, 120
      %v1960 = vpop.permute.xlu0 %1959
      %1961 = vrot.lane.b32.xlu0 %v1797, 120
      %v1962 = vpop.permute.xlu0 %1961
      %1963 = vrot.lane.b32.xlu0 %v1798, 120
      %v1964 = vpop.permute.xlu0 %1963
      %1965 = vrot.lane.b32.xlu0 %v1799, 120
      %v1966 = vpop.permute.xlu0 %1965
      %1967 = vrot.lane.b32.xlu0 %v1800, 120
      %v1968 = vpop.permute.xlu0 %1967
      %1969 = vrot.lane.b32.xlu0 %v1801, 120
      %v1970 = vpop.permute.xlu0 %1969
      %1971 = vrot.lane.b32.xlu0 %v1802, 120
      %v1972 = vpop.permute.xlu0 %1971
      %1973 = vrot.lane.b32.xlu0 %v1803, 120
      %v1974 = vpop.permute.xlu0 %1973
      %1975 = vrot.lane.b32.xlu0 %v1804, 120
      %v1976 = vpop.permute.xlu0 %1975
      %1977 = vrot.lane.b32.xlu0 %v1805, 120
      %v1978 = vpop.permute.xlu0 %1977
      %1979 = vrot.lane.b32.xlu0 %v1806, 120
      %v1980 = vpop.permute.xlu0 %1979
      %1981 = vrot.lane.b32.xlu0 %v1807, 120
      %v1982 = vpop.permute.xlu0 %1981
      %1983 = vrot.lane.b32.xlu0 %v1808, 120
      %v1984 = vpop.permute.xlu0 %1983
      %1985 = vrot.lane.b32.xlu0 %v1809, 120
      %v1986 = vpop.permute.xlu0 %1985
      %1987 = vrot.lane.b32.xlu0 %v1810, 120
      %v1988 = vpop.permute.xlu0 %1987
      %1989 = vrot.lane.b32.xlu0 %v1811, 120
      %v1990 = vpop.permute.xlu0 %1989
      %1991 = vrot.lane.b32.xlu0 %v1812, 120
      %v1992 = vpop.permute.xlu0 %1991
      %1993 = vrot.lane.b32.xlu0 %v1813, 120
      %v1994 = vpop.permute.xlu0 %1993
      %1995 = vrot.lane.b32.xlu0 %v1814, 120
      %v1996 = vpop.permute.xlu0 %1995
      %1997 = vrot.lane.b32.xlu0 %v1815, 120
      %v1998 = vpop.permute.xlu0 %1997
      %1999 = vrot.lane.b32.xlu0 %v1816, 120
      %v2000 = vpop.permute.xlu0 %1999
      %2001 = vrot.lane.b32.xlu0 %v1817, 120
      %v2002 = vpop.permute.xlu0 %2001
      %s2035 = scalar_lea.vmem [#allocation4], 24
      %2036 = vst.msk [vmem:[%s2035 + $0x1] sm:$0xff] %vm1851, %v1940
      %2037 = vst.msk [vmem:[%s2035 + $0x9] sm:$0xff] %vm1851, %v1942
      %2038 = vst.msk [vmem:[%s2035 + $0x19] sm:$0xff] %vm1851, %v1944
      %2039 = vst.msk [vmem:[%s2035 + $0x21] sm:$0xff] %vm1851, %v1946
      %2040 = vst.msk [vmem:[%s2035 + $0x31] sm:$0xff] %vm1851, %v1948
      %2041 = vst.msk [vmem:[%s2035 + $0x39] sm:$0xff] %vm1851, %v1950
      %2042 = vst.msk [vmem:[%s2035 + $0x49] sm:$0xff] %vm1851, %v1952
      %2043 = vst.msk [vmem:[%s2035 + $0x51] sm:$0xff] %vm1851, %v1954
      %2044 = vst.msk [vmem:[%s2035 + $0x61] sm:$0xff] %vm1851, %v1956
      %2045 = vst.msk [vmem:[%s2035 + $0x69] sm:$0xff] %vm1851, %v1958
      %2046 = vst.msk [vmem:[%s2035 + $0x79] sm:$0xff] %vm1851, %v1960
      %2047 = vst.msk [vmem:[%s2035 + $0x81] sm:$0xff] %vm1851, %v1962
      %2048 = vst.msk [vmem:[%s2035 + $0x91] sm:$0xff] %vm1851, %v1964
      %2049 = vst.msk [vmem:[%s2035 + $0x99] sm:$0xff] %vm1851, %v1966
      %2050 = vst.msk [vmem:[%s2035 + $0xa9] sm:$0xff] %vm1851, %v1968
      %2051 = vst.msk [vmem:[%s2035 + $0xb1] sm:$0xff] %vm1851, %v1970
      %2052 = vst.msk [vmem:[%s2035 + $0xc1] sm:$0xff] %vm1851, %v1972
      %2053 = vst.msk [vmem:[%s2035 + $0xc9] sm:$0xff] %vm1851, %v1974
      %2054 = vst.msk [vmem:[%s2035 + $0xd9] sm:$0xff] %vm1851, %v1976
      %2055 = vst.msk [vmem:[%s2035 + $0xe1] sm:$0xff] %vm1851, %v1978
      %2056 = vst.msk [vmem:[%s2035 + $0xf1] sm:$0xff] %vm1851, %v1980
      %2057 = vst.msk [vmem:[%s2035 + $0xf9] sm:$0xff] %vm1851, %v1982
      %2058 = vst.msk [vmem:[%s2035 + $0x109] sm:$0xff] %vm1851, %v1984
      %2059 = vst.msk [vmem:[%s2035 + $0x111] sm:$0xff] %vm1851, %v1986
      %2060 = vst.msk [vmem:[%s2035 + $0x121] sm:$0xff] %vm1851, %v1988
      %2061 = vst.msk [vmem:[%s2035 + $0x129] sm:$0xff] %vm1851, %v1990
      %2062 = vst.msk [vmem:[%s2035 + $0x139] sm:$0xff] %vm1851, %v1992
      %2063 = vst.msk [vmem:[%s2035 + $0x141] sm:$0xff] %vm1851, %v1994
      %2064 = vst.msk [vmem:[%s2035 + $0x151] sm:$0xff] %vm1851, %v1996
      %2065 = vst.msk [vmem:[%s2035 + $0x159] sm:$0xff] %vm1851, %v1998
      %2066 = vst.msk [vmem:[%s2035 + $0x169] sm:$0xff] %vm1851, %v2000
      %2067 = vst.msk [vmem:[%s2035 + $0x171] sm:$0xff] %vm1851, %v2002
      %v2068 = vld [vmem:[#allocation4] sm:$0xff]
      %v2069 = vld [vmem:[#allocation4 + $0x8] sm:$0xff]
      %v2070 = vld [vmem:[#allocation4 + $0x18] sm:$0xff]
      %v2071 = vld [vmem:[#allocation4 + $0x20] sm:$0xff]
      %v2072 = vld [vmem:[#allocation4 + $0x30] sm:$0xff]
      %v2073 = vld [vmem:[#allocation4 + $0x38] sm:$0xff]
      %v2074 = vld [vmem:[#allocation4 + $0x48] sm:$0xff]
      %v2075 = vld [vmem:[#allocation4 + $0x50] sm:$0xff]
      %v2076 = vld [vmem:[#allocation4 + $0x60] sm:$0xff]
      %v2077 = vld [vmem:[#allocation4 + $0x68] sm:$0xff]
      %v2078 = vld [vmem:[#allocation4 + $0x78] sm:$0xff]
      %v2079 = vld [vmem:[#allocation4 + $0x80] sm:$0xff]
      %v2080 = vld [vmem:[#allocation4 + $0x90] sm:$0xff]
      %v2081 = vld [vmem:[#allocation4 + $0x98] sm:$0xff]
      %v2082 = vld [vmem:[#allocation4 + $0xa8] sm:$0xff]
      %v2083 = vld [vmem:[#allocation4 + $0xb0] sm:$0xff]
      %v2084 = vld [vmem:[#allocation4 + $0xc0] sm:$0xff]
      %v2085 = vld [vmem:[#allocation4 + $0xc8] sm:$0xff]
      %v2086 = vld [vmem:[#allocation4 + $0xd8] sm:$0xff]
      %v2087 = vld [vmem:[#allocation4 + $0xe0] sm:$0xff]
      %v2088 = vld [vmem:[#allocation4 + $0xf0] sm:$0xff]
      %v2089 = vld [vmem:[#allocation4 + $0xf8] sm:$0xff]
      %v2090 = vld [vmem:[#allocation4 + $0x108] sm:$0xff]
      %v2091 = vld [vmem:[#allocation4 + $0x110] sm:$0xff]
      %v2092 = vld [vmem:[#allocation4 + $0x120] sm:$0xff]
      %v2093 = vld [vmem:[#allocation4 + $0x128] sm:$0xff]
      %v2094 = vld [vmem:[#allocation4 + $0x138] sm:$0xff]
      %v2095 = vld [vmem:[#allocation4 + $0x140] sm:$0xff]
      %v2096 = vld [vmem:[#allocation4 + $0x150] sm:$0xff]
      %v2097 = vld [vmem:[#allocation4 + $0x158] sm:$0xff]
      %v2098 = vld [vmem:[#allocation4 + $0x168] sm:$0xff]
      %v2099 = vld [vmem:[#allocation4 + $0x170] sm:$0xff]
      %v2100 = vpack.c.bf16 %v2069, %v2068
      %v2101 = vpack.c.bf16 %v2071, %v2070
      %v2102 = vpack.c.bf16 %v2073, %v2072
      %v2103 = vpack.c.bf16 %v2075, %v2074
      %v2104 = vpack.c.bf16 %v2077, %v2076
      %v2105 = vpack.c.bf16 %v2079, %v2078
      %v2106 = vpack.c.bf16 %v2081, %v2080
      %v2107 = vpack.c.bf16 %v2083, %v2082
      %v2108 = vpack.c.bf16 %v2085, %v2084
      %v2109 = vpack.c.bf16 %v2087, %v2086
      %v2110 = vpack.c.bf16 %v2089, %v2088
      %v2111 = vpack.c.bf16 %v2091, %v2090
      %v2112 = vpack.c.bf16 %v2093, %v2092
      %v2113 = vpack.c.bf16 %v2095, %v2094
      %v2114 = vpack.c.bf16 %v2097, %v2096
      %v2115 = vpack.c.bf16 %v2099, %v2098
      %2116 = vst.msk [vmem:[#allocation3] sm:$0xff] %vm1851, %v2100
      %2117 = vst.msk [vmem:[#allocation3 + $0x8] sm:$0xff] %vm1851, %v2101
      %2118 = vst.msk [vmem:[#allocation3 + $0x10] sm:$0xff] %vm1851, %v2102
      %2119 = vst.msk [vmem:[#allocation3 + $0x18] sm:$0xff] %vm1851, %v2103
      %2120 = vst.msk [vmem:[#allocation3 + $0x20] sm:$0xff] %vm1851, %v2104
      %2121 = vst.msk [vmem:[#allocation3 + $0x28] sm:$0xff] %vm1851, %v2105
      %2122 = vst.msk [vmem:[#allocation3 + $0x30] sm:$0xff] %vm1851, %v2106
      %2123 = vst.msk [vmem:[#allocation3 + $0x38] sm:$0xff] %vm1851, %v2107
      %2124 = vst.msk [vmem:[#allocation3 + $0x40] sm:$0xff] %vm1851, %v2108
      %2125 = vst.msk [vmem:[#allocation3 + $0x48] sm:$0xff] %vm1851, %v2109
      %2126 = vst.msk [vmem:[#allocation3 + $0x50] sm:$0xff] %vm1851, %v2110
      %2127 = vst.msk [vmem:[#allocation3 + $0x58] sm:$0xff] %vm1851, %v2111
      %2128 = vst.msk [vmem:[#allocation3 + $0x60] sm:$0xff] %vm1851, %v2112
      %2129 = vst.msk [vmem:[#allocation3 + $0x68] sm:$0xff] %vm1851, %v2113
      %2130 = vst.msk [vmem:[#allocation3 + $0x70] sm:$0xff] %vm1851, %v2114
      %2131 = vst.msk [vmem:[#allocation3 + $0x78] sm:$0xff] %vm1851, %v2115
      %v2132 = vld [vmem:[#allocation4 + $0x1] sm:$0xff]
      %v2133 = vld [vmem:[#allocation4 + $0x9] sm:$0xff]
      %v2134 = vld [vmem:[#allocation4 + $0x19] sm:$0xff]
      %v2135 = vld [vmem:[#allocation4 + $0x21] sm:$0xff]
      %v2136 = vld [vmem:[#allocation4 + $0x31] sm:$0xff]
      %v2137 = vld [vmem:[#allocation4 + $0x39] sm:$0xff]
      %v2138 = vld [vmem:[#allocation4 + $0x49] sm:$0xff]
      %v2139 = vld [vmem:[#allocation4 + $0x51] sm:$0xff]
      %v2140 = vld [vmem:[#allocation4 + $0x61] sm:$0xff]
      %v2141 = vld [vmem:[#allocation4 + $0x69] sm:$0xff]
      %v2142 = vld [vmem:[#allocation4 + $0x79] sm:$0xff]
      %v2143 = vld [vmem:[#allocation4 + $0x81] sm:$0xff]
      %v2144 = vld [vmem:[#allocation4 + $0x91] sm:$0xff]
      %v2145 = vld [vmem:[#allocation4 + $0x99] sm:$0xff]
      %v2146 = vld [vmem:[#allocation4 + $0xa9] sm:$0xff]
      %v2147 = vld [vmem:[#allocation4 + $0xb1] sm:$0xff]
      %v2148 = vld [vmem:[#allocation4 + $0xc1] sm:$0xff]
      %v2149 = vld [vmem:[#allocation4 + $0xc9] sm:$0xff]
      %v2150 = vld [vmem:[#allocation4 + $0xd9] sm:$0xff]
      %v2151 = vld [vmem:[#allocation4 + $0xe1] sm:$0xff]
      %v2152 = vld [vmem:[#allocation4 + $0xf1] sm:$0xff]
      %v2153 = vld [vmem:[#allocation4 + $0xf9] sm:$0xff]
      %v2154 = vld [vmem:[#allocation4 + $0x109] sm:$0xff]
      %v2155 = vld [vmem:[#allocation4 + $0x111] sm:$0xff]
      %v2156 = vld [vmem:[#allocation4 + $0x121] sm:$0xff]
      %v2157 = vld [vmem:[#allocation4 + $0x129] sm:$0xff]
      %v2158 = vld [vmem:[#allocation4 + $0x139] sm:$0xff]
      %v2159 = vld [vmem:[#allocation4 + $0x141] sm:$0xff]
      %v2160 = vld [vmem:[#allocation4 + $0x151] sm:$0xff]
      %v2161 = vld [vmem:[#allocation4 + $0x159] sm:$0xff]
      %v2162 = vld [vmem:[#allocation4 + $0x169] sm:$0xff]
      %v2163 = vld [vmem:[#allocation4 + $0x171] sm:$0xff]
      %v2164 = vpack.c.bf16 %v2133, %v2132
      %v2165 = vpack.c.bf16 %v2135, %v2134
      %v2166 = vpack.c.bf16 %v2137, %v2136
      %v2167 = vpack.c.bf16 %v2139, %v2138
      %v2168 = vpack.c.bf16 %v2141, %v2140
      %v2169 = vpack.c.bf16 %v2143, %v2142
      %v2170 = vpack.c.bf16 %v2145, %v2144
      %v2171 = vpack.c.bf16 %v2147, %v2146
      %v2172 = vpack.c.bf16 %v2149, %v2148
      %v2173 = vpack.c.bf16 %v2151, %v2150
      %v2174 = vpack.c.bf16 %v2153, %v2152
      %v2175 = vpack.c.bf16 %v2155, %v2154
      %v2176 = vpack.c.bf16 %v2157, %v2156
      %v2177 = vpack.c.bf16 %v2159, %v2158
      %v2178 = vpack.c.bf16 %v2161, %v2160
      %v2179 = vpack.c.bf16 %v2163, %v2162
      %2196 = vrot.lane.b32.xlu0 %v2164, 4
      %v2197 = vpop.permute.xlu0 %2196
      %2198 = vrot.lane.b32.xlu0 %v2165, 4
      %v2199 = vpop.permute.xlu0 %2198
      %2200 = vrot.lane.b32.xlu0 %v2166, 4
      %v2201 = vpop.permute.xlu0 %2200
      %2202 = vrot.lane.b32.xlu0 %v2167, 4
      %v2203 = vpop.permute.xlu0 %2202
      %2204 = vrot.lane.b32.xlu0 %v2168, 4
      %v2205 = vpop.permute.xlu0 %2204
      %2206 = vrot.lane.b32.xlu0 %v2169, 4
      %v2207 = vpop.permute.xlu0 %2206
      %2208 = vrot.lane.b32.xlu0 %v2170, 4
      %v2209 = vpop.permute.xlu0 %2208
      %2210 = vrot.lane.b32.xlu0 %v2171, 4
      %v2211 = vpop.permute.xlu0 %2210
      %2212 = vrot.lane.b32.xlu0 %v2172, 4
      %v2213 = vpop.permute.xlu0 %2212
      %2214 = vrot.lane.b32.xlu0 %v2173, 4
      %v2215 = vpop.permute.xlu0 %2214
      %2216 = vrot.lane.b32.xlu0 %v2174, 4
      %v2217 = vpop.permute.xlu0 %2216
      %2218 = vrot.lane.b32.xlu0 %v2175, 4
      %v2219 = vpop.permute.xlu0 %2218
      %2220 = vrot.lane.b32.xlu0 %v2176, 4
      %v2221 = vpop.permute.xlu0 %2220
      %2222 = vrot.lane.b32.xlu0 %v2177, 4
      %v2223 = vpop.permute.xlu0 %2222
      %2224 = vrot.lane.b32.xlu0 %v2178, 4
      %v2225 = vpop.permute.xlu0 %2224
      %2226 = vrot.lane.b32.xlu0 %v2179, 4
      %v2227 = vpop.permute.xlu0 %2226
      %vm2244 = vcmask 64544
      %2245 = vst.msk [vmem:[#allocation3] sm:$0xff] %vm2244, %v2197
      %2246 = vst.msk [vmem:[#allocation3 + $0x8] sm:$0xff] %vm2244, %v2199
      %2247 = vst.msk [vmem:[#allocation3 + $0x10] sm:$0xff] %vm2244, %v2201
      %2248 = vst.msk [vmem:[#allocation3 + $0x18] sm:$0xff] %vm2244, %v2203
      %2249 = vst.msk [vmem:[#allocation3 + $0x20] sm:$0xff] %vm2244, %v2205
      %2250 = vst.msk [vmem:[#allocation3 + $0x28] sm:$0xff] %vm2244, %v2207
      %2251 = vst.msk [vmem:[#allocation3 + $0x30] sm:$0xff] %vm2244, %v2209
      %2252 = vst.msk [vmem:[#allocation3 + $0x38] sm:$0xff] %vm2244, %v2211
      %2253 = vst.msk [vmem:[#allocation3 + $0x40] sm:$0xff] %vm2244, %v2213
      %2254 = vst.msk [vmem:[#allocation3 + $0x48] sm:$0xff] %vm2244, %v2215
      %2255 = vst.msk [vmem:[#allocation3 + $0x50] sm:$0xff] %vm2244, %v2217
      %2256 = vst.msk [vmem:[#allocation3 + $0x58] sm:$0xff] %vm2244, %v2219
      %2257 = vst.msk [vmem:[#allocation3 + $0x60] sm:$0xff] %vm2244, %v2221
      %2258 = vst.msk [vmem:[#allocation3 + $0x68] sm:$0xff] %vm2244, %v2223
      %2259 = vst.msk [vmem:[#allocation3 + $0x70] sm:$0xff] %vm2244, %v2225
      %2260 = vst.msk [vmem:[#allocation3 + $0x78] sm:$0xff] %vm2244, %v2227
      %v2261 = vld [vmem:[#allocation4 + $0x2] sm:$0xff]
      %v2262 = vld [vmem:[#allocation4 + $0xa] sm:$0xff]
      %v2263 = vld [vmem:[#allocation4 + $0x1a] sm:$0xff]
      %v2264 = vld [vmem:[#allocation4 + $0x22] sm:$0xff]
      %v2265 = vld [vmem:[#allocation4 + $0x32] sm:$0xff]
      %v2266 = vld [vmem:[#allocation4 + $0x3a] sm:$0xff]
      %v2267 = vld [vmem:[#allocation4 + $0x4a] sm:$0xff]
      %v2268 = vld [vmem:[#allocation4 + $0x52] sm:$0xff]
      %v2269 = vld [vmem:[#allocation4 + $0x62] sm:$0xff]
      %v2270 = vld [vmem:[#allocation4 + $0x6a] sm:$0xff]
      %v2271 = vld [vmem:[#allocation4 + $0x7a] sm:$0xff]
      %v2272 = vld [vmem:[#allocation4 + $0x82] sm:$0xff]
      %v2273 = vld [vmem:[#allocation4 + $0x92] sm:$0xff]
      %v2274 = vld [vmem:[#allocation4 + $0x9a] sm:$0xff]
      %v2275 = vld [vmem:[#allocation4 + $0xaa] sm:$0xff]
      %v2276 = vld [vmem:[#allocation4 + $0xb2] sm:$0xff]
      %v2277 = vld [vmem:[#allocation4 + $0xc2] sm:$0xff]
      %v2278 = vld [vmem:[#allocation4 + $0xca] sm:$0xff]
      %v2279 = vld [vmem:[#allocation4 + $0xda] sm:$0xff]
      %v2280 = vld [vmem:[#allocation4 + $0xe2] sm:$0xff]
      %v2281 = vld [vmem:[#allocation4 + $0xf2] sm:$0xff]
      %v2282 = vld [vmem:[#allocation4 + $0xfa] sm:$0xff]
      %v2283 = vld [vmem:[#allocation4 + $0x10a] sm:$0xff]
      %v2284 = vld [vmem:[#allocation4 + $0x112] sm:$0xff]
      %v2285 = vld [vmem:[#allocation4 + $0x122] sm:$0xff]
      %v2286 = vld [vmem:[#allocation4 + $0x12a] sm:$0xff]
      %v2287 = vld [vmem:[#allocation4 + $0x13a] sm:$0xff]
      %v2288 = vld [vmem:[#allocation4 + $0x142] sm:$0xff]
      %v2289 = vld [vmem:[#allocation4 + $0x152] sm:$0xff]
      %v2290 = vld [vmem:[#allocation4 + $0x15a] sm:$0xff]
      %v2291 = vld [vmem:[#allocation4 + $0x16a] sm:$0xff]
      %v2292 = vld [vmem:[#allocation4 + $0x172] sm:$0xff]
      %v2293 = vpack.c.bf16 %v2262, %v2261
      %v2294 = vpack.c.bf16 %v2264, %v2263
      %v2295 = vpack.c.bf16 %v2266, %v2265
      %v2296 = vpack.c.bf16 %v2268, %v2267
      %v2297 = vpack.c.bf16 %v2270, %v2269
      %v2298 = vpack.c.bf16 %v2272, %v2271
      %v2299 = vpack.c.bf16 %v2274, %v2273
      %v2300 = vpack.c.bf16 %v2276, %v2275
      %v2301 = vpack.c.bf16 %v2278, %v2277
      %v2302 = vpack.c.bf16 %v2280, %v2279
      %v2303 = vpack.c.bf16 %v2282, %v2281
      %v2304 = vpack.c.bf16 %v2284, %v2283
      %v2305 = vpack.c.bf16 %v2286, %v2285
      %v2306 = vpack.c.bf16 %v2288, %v2287
      %v2307 = vpack.c.bf16 %v2290, %v2289
      %v2308 = vpack.c.bf16 %v2292, %v2291
      %2325 = vrot.lane.b32.xlu0 %v2293, 8
      %v2326 = vpop.permute.xlu0 %2325
      %2327 = vrot.lane.b32.xlu0 %v2294, 8
      %v2328 = vpop.permute.xlu0 %2327
      %2329 = vrot.lane.b32.xlu0 %v2295, 8
      %v2330 = vpop.permute.xlu0 %2329
      %2331 = vrot.lane.b32.xlu0 %v2296, 8
      %v2332 = vpop.permute.xlu0 %2331
      %2333 = vrot.lane.b32.xlu0 %v2297, 8
      %v2334 = vpop.permute.xlu0 %2333
      %2335 = vrot.lane.b32.xlu0 %v2298, 8
      %v2336 = vpop.permute.xlu0 %2335
      %2337 = vrot.lane.b32.xlu0 %v2299, 8
      %v2338 = vpop.permute.xlu0 %2337
      %2339 = vrot.lane.b32.xlu0 %v2300, 8
      %v2340 = vpop.permute.xlu0 %2339
      %2341 = vrot.lane.b32.xlu0 %v2301, 8
      %v2342 = vpop.permute.xlu0 %2341
      %2343 = vrot.lane.b32.xlu0 %v2302, 8
      %v2344 = vpop.permute.xlu0 %2343
      %2345 = vrot.lane.b32.xlu0 %v2303, 8
      %v2346 = vpop.permute.xlu0 %2345
      %2347 = vrot.lane.b32.xlu0 %v2304, 8
      %v2348 = vpop.permute.xlu0 %2347
      %2349 = vrot.lane.b32.xlu0 %v2305, 8
      %v2350 = vpop.permute.xlu0 %2349
      %2351 = vrot.lane.b32.xlu0 %v2306, 8
      %v2352 = vpop.permute.xlu0 %2351
      %2353 = vrot.lane.b32.xlu0 %v2307, 8
      %v2354 = vpop.permute.xlu0 %2353
      %2355 = vrot.lane.b32.xlu0 %v2308, 8
      %v2356 = vpop.permute.xlu0 %2355
      %vm2373 = vcmask 97344
      %2374 = vst.msk [vmem:[#allocation3] sm:$0xff] %vm2373, %v2326
      %2375 = vst.msk [vmem:[#allocation3 + $0x8] sm:$0xff] %vm2373, %v2328
      %2376 = vst.msk [vmem:[#allocation3 + $0x10] sm:$0xff] %vm2373, %v2330
      %2377 = vst.msk [vmem:[#allocation3 + $0x18] sm:$0xff] %vm2373, %v2332
      %2378 = vst.msk [vmem:[#allocation3 + $0x20] sm:$0xff] %vm2373, %v2334
      %2379 = vst.msk [vmem:[#allocation3 + $0x28] sm:$0xff] %vm2373, %v2336
      %2380 = vst.msk [vmem:[#allocation3 + $0x30] sm:$0xff] %vm2373, %v2338
      %2381 = vst.msk [vmem:[#allocation3 + $0x38] sm:$0xff] %vm2373, %v2340
      %2382 = vst.msk [vmem:[#allocation3 + $0x40] sm:$0xff] %vm2373, %v2342
      %2383 = vst.msk [vmem:[#allocation3 + $0x48] sm:$0xff] %vm2373, %v2344
      %2384 = vst.msk [vmem:[#allocation3 + $0x50] sm:$0xff] %vm2373, %v2346
      %2385 = vst.msk [vmem:[#allocation3 + $0x58] sm:$0xff] %vm2373, %v2348
      %2386 = vst.msk [vmem:[#allocation3 + $0x60] sm:$0xff] %vm2373, %v2350
      %2387 = vst.msk [vmem:[#allocation3 + $0x68] sm:$0xff] %vm2373, %v2352
      %2388 = vst.msk [vmem:[#allocation3 + $0x70] sm:$0xff] %vm2373, %v2354
      %2389 = vst.msk [vmem:[#allocation3 + $0x78] sm:$0xff] %vm2373, %v2356
      %v2390 = vld [vmem:[%s2035] sm:$0xff]
      %v2391 = vld [vmem:[%s2035 + $0x8] sm:$0xff]
      %v2392 = vld [vmem:[%s2035 + $0x18] sm:$0xff]
      %v2393 = vld [vmem:[%s2035 + $0x20] sm:$0xff]
      %v2394 = vld [vmem:[%s2035 + $0x30] sm:$0xff]
      %v2395 = vld [vmem:[%s2035 + $0x38] sm:$0xff]
      %v2396 = vld [vmem:[%s2035 + $0x48] sm:$0xff]
      %v2397 = vld [vmem:[%s2035 + $0x50] sm:$0xff]
      %v2398 = vld [vmem:[%s2035 + $0x60] sm:$0xff]
      %v2399 = vld [vmem:[%s2035 + $0x68] sm:$0xff]
      %v2400 = vld [vmem:[%s2035 + $0x78] sm:$0xff]
      %v2401 = vld [vmem:[%s2035 + $0x80] sm:$0xff]
      %v2402 = vld [vmem:[%s2035 + $0x90] sm:$0xff]
      %v2403 = vld [vmem:[%s2035 + $0x98] sm:$0xff]
      %v2404 = vld [vmem:[%s2035 + $0xa8] sm:$0xff]
      %v2405 = vld [vmem:[%s2035 + $0xb0] sm:$0xff]
      %v2406 = vld [vmem:[%s2035 + $0xc0] sm:$0xff]
      %v2407 = vld [vmem:[%s2035 + $0xc8] sm:$0xff]
      %v2408 = vld [vmem:[%s2035 + $0xd8] sm:$0xff]
      %v2409 = vld [vmem:[%s2035 + $0xe0] sm:$0xff]
      %v2410 = vld [vmem:[%s2035 + $0xf0] sm:$0xff]
      %v2411 = vld [vmem:[%s2035 + $0xf8] sm:$0xff]
      %v2412 = vld [vmem:[%s2035 + $0x108] sm:$0xff]
      %v2413 = vld [vmem:[%s2035 + $0x110] sm:$0xff]
      %v2414 = vld [vmem:[%s2035 + $0x120] sm:$0xff]
      %v2415 = vld [vmem:[%s2035 + $0x128] sm:$0xff]
      %v2416 = vld [vmem:[%s2035 + $0x138] sm:$0xff]
      %v2417 = vld [vmem:[%s2035 + $0x140] sm:$0xff]
      %v2418 = vld [vmem:[%s2035 + $0x150] sm:$0xff]
      %v2419 = vld [vmem:[%s2035 + $0x158] sm:$0xff]
      %v2420 = vld [vmem:[%s2035 + $0x168] sm:$0xff]
      %v2421 = vld [vmem:[%s2035 + $0x170] sm:$0xff]
      %v2422 = vpack.c.bf16 %v2391, %v2390
      %v2423 = vpack.c.bf16 %v2393, %v2392
      %v2424 = vpack.c.bf16 %v2395, %v2394
      %v2425 = vpack.c.bf16 %v2397, %v2396
      %v2426 = vpack.c.bf16 %v2399, %v2398
      %v2427 = vpack.c.bf16 %v2401, %v2400
      %v2428 = vpack.c.bf16 %v2403, %v2402
      %v2429 = vpack.c.bf16 %v2405, %v2404
      %v2430 = vpack.c.bf16 %v2407, %v2406
      %v2431 = vpack.c.bf16 %v2409, %v2408
      %v2432 = vpack.c.bf16 %v2411, %v2410
      %v2433 = vpack.c.bf16 %v2413, %v2412
      %v2434 = vpack.c.bf16 %v2415, %v2414
      %v2435 = vpack.c.bf16 %v2417, %v2416
      %v2436 = vpack.c.bf16 %v2419, %v2418
      %v2437 = vpack.c.bf16 %v2421, %v2420
      %2454 = vrot.lane.b32.xlu0 %v2422, 12
      %v2455 = vpop.permute.xlu0 %2454
      %2456 = vrot.lane.b32.xlu0 %v2423, 12
      %v2457 = vpop.permute.xlu0 %2456
      %2458 = vrot.lane.b32.xlu0 %v2424, 12
      %v2459 = vpop.permute.xlu0 %2458
      %2460 = vrot.lane.b32.xlu0 %v2425, 12
      %v2461 = vpop.permute.xlu0 %2460
      %2462 = vrot.lane.b32.xlu0 %v2426, 12
      %v2463 = vpop.permute.xlu0 %2462
      %2464 = vrot.lane.b32.xlu0 %v2427, 12
      %v2465 = vpop.permute.xlu0 %2464
      %2466 = vrot.lane.b32.xlu0 %v2428, 12
      %v2467 = vpop.permute.xlu0 %2466
      %2468 = vrot.lane.b32.xlu0 %v2429, 12
      %v2469 = vpop.permute.xlu0 %2468
      %2470 = vrot.lane.b32.xlu0 %v2430, 12
      %v2471 = vpop.permute.xlu0 %2470
      %2472 = vrot.lane.b32.xlu0 %v2431, 12
      %v2473 = vpop.permute.xlu0 %2472
      %2474 = vrot.lane.b32.xlu0 %v2432, 12
      %v2475 = vpop.permute.xlu0 %2474
      %2476 = vrot.lane.b32.xlu0 %v2433, 12
      %v2477 = vpop.permute.xlu0 %2476
      %2478 = vrot.lane.b32.xlu0 %v2434, 12
      %v2479 = vpop.permute.xlu0 %2478
      %2480 = vrot.lane.b32.xlu0 %v2435, 12
      %v2481 = vpop.permute.xlu0 %2480
      %2482 = vrot.lane.b32.xlu0 %v2436, 12
      %v2483 = vpop.permute.xlu0 %2482
      %2484 = vrot.lane.b32.xlu0 %v2437, 12
      %v2485 = vpop.permute.xlu0 %2484
      %vm2502 = vcmask 130144
      %2503 = vst.msk [vmem:[#allocation3] sm:$0xff] %vm2502, %v2455
      %2504 = vst.msk [vmem:[#allocation3 + $0x8] sm:$0xff] %vm2502, %v2457
      %2505 = vst.msk [vmem:[#allocation3 + $0x10] sm:$0xff] %vm2502, %v2459
      %2506 = vst.msk [vmem:[#allocation3 + $0x18] sm:$0xff] %vm2502, %v2461
      %2507 = vst.msk [vmem:[#allocation3 + $0x20] sm:$0xff] %vm2502, %v2463
      %2508 = vst.msk [vmem:[#allocation3 + $0x28] sm:$0xff] %vm2502, %v2465
      %2509 = vst.msk [vmem:[#allocation3 + $0x30] sm:$0xff] %vm2502, %v2467
      %2510 = vst.msk [vmem:[#allocation3 + $0x38] sm:$0xff] %vm2502, %v2469
      %2511 = vst.msk [vmem:[#allocation3 + $0x40] sm:$0xff] %vm2502, %v2471
      %2512 = vst.msk [vmem:[#allocation3 + $0x48] sm:$0xff] %vm2502, %v2473
      %2513 = vst.msk [vmem:[#allocation3 + $0x50] sm:$0xff] %vm2502, %v2475
      %2514 = vst.msk [vmem:[#allocation3 + $0x58] sm:$0xff] %vm2502, %v2477
      %2515 = vst.msk [vmem:[#allocation3 + $0x60] sm:$0xff] %vm2502, %v2479
      %2516 = vst.msk [vmem:[#allocation3 + $0x68] sm:$0xff] %vm2502, %v2481
      %2517 = vst.msk [vmem:[#allocation3 + $0x70] sm:$0xff] %vm2502, %v2483
      %2518 = vst.msk [vmem:[#allocation3 + $0x78] sm:$0xff] %vm2502, %v2485
      %v2519 = vld [vmem:[%s2035 + $0x1] sm:$0xff]
      %v2520 = vld [vmem:[%s2035 + $0x9] sm:$0xff]
      %v2521 = vld [vmem:[%s2035 + $0x19] sm:$0xff]
      %v2522 = vld [vmem:[%s2035 + $0x21] sm:$0xff]
      %v2523 = vld [vmem:[%s2035 + $0x31] sm:$0xff]
      %v2524 = vld [vmem:[%s2035 + $0x39] sm:$0xff]
      %v2525 = vld [vmem:[%s2035 + $0x49] sm:$0xff]
      %v2526 = vld [vmem:[%s2035 + $0x51] sm:$0xff]
      %v2527 = vld [vmem:[%s2035 + $0x61] sm:$0xff]
      %v2528 = vld [vmem:[%s2035 + $0x69] sm:$0xff]
      %v2529 = vld [vmem:[%s2035 + $0x79] sm:$0xff]
      %v2530 = vld [vmem:[%s2035 + $0x81] sm:$0xff]
      %v2531 = vld [vmem:[%s2035 + $0x91] sm:$0xff]
      %v2532 = vld [vmem:[%s2035 + $0x99] sm:$0xff]
      %v2533 = vld [vmem:[%s2035 + $0xa9] sm:$0xff]
      %v2534 = vld [vmem:[%s2035 + $0xb1] sm:$0xff]
      %v2535 = vld [vmem:[%s2035 + $0xc1] sm:$0xff]
      %v2536 = vld [vmem:[%s2035 + $0xc9] sm:$0xff]
      %v2537 = vld [vmem:[%s2035 + $0xd9] sm:$0xff]
      %v2538 = vld [vmem:[%s2035 + $0xe1] sm:$0xff]
      %v2539 = vld [vmem:[%s2035 + $0xf1] sm:$0xff]
      %v2540 = vld [vmem:[%s2035 + $0xf9] sm:$0xff]
      %v2541 = vld [vmem:[%s2035 + $0x109] sm:$0xff]
      %v2542 = vld [vmem:[%s2035 + $0x111] sm:$0xff]
      %v2543 = vld [vmem:[%s2035 + $0x121] sm:$0xff]
      %v2544 = vld [vmem:[%s2035 + $0x129] sm:$0xff]
      %v2545 = vld [vmem:[%s2035 + $0x139] sm:$0xff]
      %v2546 = vld [vmem:[%s2035 + $0x141] sm:$0xff]
      %v2547 = vld [vmem:[%s2035 + $0x151] sm:$0xff]
      %v2548 = vld [vmem:[%s2035 + $0x159] sm:$0xff]
      %v2549 = vld [vmem:[%s2035 + $0x169] sm:$0xff]
      %v2550 = vld [vmem:[%s2035 + $0x171] sm:$0xff]
      %v2551 = vpack.c.bf16 %v2520, %v2519
      %v2552 = vpack.c.bf16 %v2522, %v2521
      %v2553 = vpack.c.bf16 %v2524, %v2523
      %v2554 = vpack.c.bf16 %v2526, %v2525
      %v2555 = vpack.c.bf16 %v2528, %v2527
      %v2556 = vpack.c.bf16 %v2530, %v2529
      %v2557 = vpack.c.bf16 %v2532, %v2531
      %v2558 = vpack.c.bf16 %v2534, %v2533
      %v2559 = vpack.c.bf16 %v2536, %v2535
      %v2560 = vpack.c.bf16 %v2538, %v2537
      %v2561 = vpack.c.bf16 %v2540, %v2539
      %v2562 = vpack.c.bf16 %v2542, %v2541
      %v2563 = vpack.c.bf16 %v2544, %v2543
      %v2564 = vpack.c.bf16 %v2546, %v2545
      %v2565 = vpack.c.bf16 %v2548, %v2547
      %v2566 = vpack.c.bf16 %v2550, %v2549
      %2583 = vrot.lane.b32.xlu0 %v2551, 16
      %v2584 = vpop.permute.xlu0 %2583
      %2585 = vrot.lane.b32.xlu0 %v2552, 16
      %v2586 = vpop.permute.xlu0 %2585
      %2587 = vrot.lane.b32.xlu0 %v2553, 16
      %v2588 = vpop.permute.xlu0 %2587
      %2589 = vrot.lane.b32.xlu0 %v2554, 16
      %v2590 = vpop.permute.xlu0 %2589
      %2591 = vrot.lane.b32.xlu0 %v2555, 16
      %v2592 = vpop.permute.xlu0 %2591
      %2593 = vrot.lane.b32.xlu0 %v2556, 16
      %v2594 = vpop.permute.xlu0 %2593
      %2595 = vrot.lane.b32.xlu0 %v2557, 16
      %v2596 = vpop.permute.xlu0 %2595
      %2597 = vrot.lane.b32.xlu0 %v2558, 16
      %v2598 = vpop.permute.xlu0 %2597
      %2599 = vrot.lane.b32.xlu0 %v2559, 16
      %v2600 = vpop.permute.xlu0 %2599
      %2601 = vrot.lane.b32.xlu0 %v2560, 16
      %v2602 = vpop.permute.xlu0 %2601
      %2603 = vrot.lane.b32.xlu0 %v2561, 16
      %v2604 = vpop.permute.xlu0 %2603
      %2605 = vrot.lane.b32.xlu0 %v2562, 16
      %v2606 = vpop.permute.xlu0 %2605
      %2607 = vrot.lane.b32.xlu0 %v2563, 16
      %v2608 = vpop.permute.xlu0 %2607
      %2609 = vrot.lane.b32.xlu0 %v2564, 16
      %v2610 = vpop.permute.xlu0 %2609
      %2611 = vrot.lane.b32.xlu0 %v2565, 16
      %v2612 = vpop.permute.xlu0 %2611
      %2613 = vrot.lane.b32.xlu0 %v2566, 16
      %v2614 = vpop.permute.xlu0 %2613
      %vm2631 = vcmask 162944
      %2632 = vst.msk [vmem:[#allocation3] sm:$0xff] %vm2631, %v2584
      %2633 = vst.msk [vmem:[#allocation3 + $0x8] sm:$0xff] %vm2631, %v2586
      %2634 = vst.msk [vmem:[#allocation3 + $0x10] sm:$0xff] %vm2631, %v2588
      %2635 = vst.msk [vmem:[#allocation3 + $0x18] sm:$0xff] %vm2631, %v2590
      %2636 = vst.msk [vmem:[#allocation3 + $0x20] sm:$0xff] %vm2631, %v2592
      %2637 = vst.msk [vmem:[#allocation3 + $0x28] sm:$0xff] %vm2631, %v2594
      %2638 = vst.msk [vmem:[#allocation3 + $0x30] sm:$0xff] %vm2631, %v2596
      %2639 = vst.msk [vmem:[#allocation3 + $0x38] sm:$0xff] %vm2631, %v2598
      %2640 = vst.msk [vmem:[#allocation3 + $0x40] sm:$0xff] %vm2631, %v2600
      %2641 = vst.msk [vmem:[#allocation3 + $0x48] sm:$0xff] %vm2631, %v2602
      %2642 = vst.msk [vmem:[#allocation3 + $0x50] sm:$0xff] %vm2631, %v2604
      %2643 = vst.msk [vmem:[#allocation3 + $0x58] sm:$0xff] %vm2631, %v2606
      %2644 = vst.msk [vmem:[#allocation3 + $0x60] sm:$0xff] %vm2631, %v2608
      %2645 = vst.msk [vmem:[#allocation3 + $0x68] sm:$0xff] %vm2631, %v2610
      %2646 = vst.msk [vmem:[#allocation3 + $0x70] sm:$0xff] %vm2631, %v2612
      %2647 = vst.msk [vmem:[#allocation3 + $0x78] sm:$0xff] %vm2631, %v2614
      %v2648 = vld [vmem:[%s2035 + $0x2] sm:$0xff]
      %v2649 = vld [vmem:[%s2035 + $0xa] sm:$0xff]
      %v2650 = vld [vmem:[%s2035 + $0x1a] sm:$0xff]
      %v2651 = vld [vmem:[%s2035 + $0x22] sm:$0xff]
      %v2652 = vld [vmem:[%s2035 + $0x32] sm:$0xff]
      %v2653 = vld [vmem:[%s2035 + $0x3a] sm:$0xff]
      %v2654 = vld [vmem:[%s2035 + $0x4a] sm:$0xff]
      %v2655 = vld [vmem:[%s2035 + $0x52] sm:$0xff]
      %v2656 = vld [vmem:[%s2035 + $0x62] sm:$0xff]
      %v2657 = vld [vmem:[%s2035 + $0x6a] sm:$0xff]
      %v2658 = vld [vmem:[%s2035 + $0x7a] sm:$0xff]
      %v2659 = vld [vmem:[%s2035 + $0x82] sm:$0xff]
      %v2660 = vld [vmem:[%s2035 + $0x92] sm:$0xff]
      %v2661 = vld [vmem:[%s2035 + $0x9a] sm:$0xff]
      %v2662 = vld [vmem:[%s2035 + $0xaa] sm:$0xff]
      %v2663 = vld [vmem:[%s2035 + $0xb2] sm:$0xff]
      %v2664 = vld [vmem:[%s2035 + $0xc2] sm:$0xff]
      %v2665 = vld [vmem:[%s2035 + $0xca] sm:$0xff]
      %v2666 = vld [vmem:[%s2035 + $0xda] sm:$0xff]
      %v2667 = vld [vmem:[%s2035 + $0xe2] sm:$0xff]
      %v2668 = vld [vmem:[%s2035 + $0xf2] sm:$0xff]
      %v2669 = vld [vmem:[%s2035 + $0xfa] sm:$0xff]
      %v2670 = vld [vmem:[%s2035 + $0x10a] sm:$0xff]
      %v2671 = vld [vmem:[%s2035 + $0x112] sm:$0xff]
      %v2672 = vld [vmem:[%s2035 + $0x122] sm:$0xff]
      %v2673 = vld [vmem:[%s2035 + $0x12a] sm:$0xff]
      %v2674 = vld [vmem:[%s2035 + $0x13a] sm:$0xff]
      %v2675 = vld [vmem:[%s2035 + $0x142] sm:$0xff]
      %v2676 = vld [vmem:[%s2035 + $0x152] sm:$0xff]
      %v2677 = vld [vmem:[%s2035 + $0x15a] sm:$0xff]
      %v2678 = vld [vmem:[%s2035 + $0x16a] sm:$0xff]
      %v2679 = vld [vmem:[%s2035 + $0x172] sm:$0xff]
      %v2680 = vpack.c.bf16 %v2649, %v2648
      %v2681 = vpack.c.bf16 %v2651, %v2650
      %v2682 = vpack.c.bf16 %v2653, %v2652
      %v2683 = vpack.c.bf16 %v2655, %v2654
      %v2684 = vpack.c.bf16 %v2657, %v2656
      %v2685 = vpack.c.bf16 %v2659, %v2658
      %v2686 = vpack.c.bf16 %v2661, %v2660
      %v2687 = vpack.c.bf16 %v2663, %v2662
      %v2688 = vpack.c.bf16 %v2665, %v2664
      %v2689 = vpack.c.bf16 %v2667, %v2666
      %v2690 = vpack.c.bf16 %v2669, %v2668
      %v2691 = vpack.c.bf16 %v2671, %v2670
      %v2692 = vpack.c.bf16 %v2673, %v2672
      %v2693 = vpack.c.bf16 %v2675, %v2674
      %v2694 = vpack.c.bf16 %v2677, %v2676
      %v2695 = vpack.c.bf16 %v2679, %v2678
      %2712 = vrot.lane.b32.xlu0 %v2680, 20
      %v2713 = vpop.permute.xlu0 %2712
      %2714 = vrot.lane.b32.xlu0 %v2681, 20
      %v2715 = vpop.permute.xlu0 %2714
      %2716 = vrot.lane.b32.xlu0 %v2682, 20
      %v2717 = vpop.permute.xlu0 %2716
      %2718 = vrot.lane.b32.xlu0 %v2683, 20
      %v2719 = vpop.permute.xlu0 %2718
      %2720 = vrot.lane.b32.xlu0 %v2684, 20
      %v2721 = vpop.permute.xlu0 %2720
      %2722 = vrot.lane.b32.xlu0 %v2685, 20
      %v2723 = vpop.permute.xlu0 %2722
      %2724 = vrot.lane.b32.xlu0 %v2686, 20
      %v2725 = vpop.permute.xlu0 %2724
      %2726 = vrot.lane.b32.xlu0 %v2687, 20
      %v2727 = vpop.permute.xlu0 %2726
      %2728 = vrot.lane.b32.xlu0 %v2688, 20
      %v2729 = vpop.permute.xlu0 %2728
      %2730 = vrot.lane.b32.xlu0 %v2689, 20
      %v2731 = vpop.permute.xlu0 %2730
      %2732 = vrot.lane.b32.xlu0 %v2690, 20
      %v2733 = vpop.permute.xlu0 %2732
      %2734 = vrot.lane.b32.xlu0 %v2691, 20
      %v2735 = vpop.permute.xlu0 %2734
      %2736 = vrot.lane.b32.xlu0 %v2692, 20
      %v2737 = vpop.permute.xlu0 %2736
      %2738 = vrot.lane.b32.xlu0 %v2693, 20
      %v2739 = vpop.permute.xlu0 %2738
      %2740 = vrot.lane.b32.xlu0 %v2694, 20
      %v2741 = vpop.permute.xlu0 %2740
      %2742 = vrot.lane.b32.xlu0 %v2695, 20
      %v2743 = vpop.permute.xlu0 %2742
      %vm2760 = vcmask 195744
      %2761 = vst.msk [vmem:[#allocation3] sm:$0xff] %vm2760, %v2713
      %2762 = vst.msk [vmem:[#allocation3 + $0x8] sm:$0xff] %vm2760, %v2715
      %2763 = vst.msk [vmem:[#allocation3 + $0x10] sm:$0xff] %vm2760, %v2717
      %2764 = vst.msk [vmem:[#allocation3 + $0x18] sm:$0xff] %vm2760, %v2719
      %2765 = vst.msk [vmem:[#allocation3 + $0x20] sm:$0xff] %vm2760, %v2721
      %2766 = vst.msk [vmem:[#allocation3 + $0x28] sm:$0xff] %vm2760, %v2723
      %2767 = vst.msk [vmem:[#allocation3 + $0x30] sm:$0xff] %vm2760, %v2725
      %2768 = vst.msk [vmem:[#allocation3 + $0x38] sm:$0xff] %vm2760, %v2727
      %2769 = vst.msk [vmem:[#allocation3 + $0x40] sm:$0xff] %vm2760, %v2729
      %2770 = vst.msk [vmem:[#allocation3 + $0x48] sm:$0xff] %vm2760, %v2731
      %2771 = vst.msk [vmem:[#allocation3 + $0x50] sm:$0xff] %vm2760, %v2733
      %2772 = vst.msk [vmem:[#allocation3 + $0x58] sm:$0xff] %vm2760, %v2735
      %2773 = vst.msk [vmem:[#allocation3 + $0x60] sm:$0xff] %vm2760, %v2737
      %2774 = vst.msk [vmem:[#allocation3 + $0x68] sm:$0xff] %vm2760, %v2739
      %2775 = vst.msk [vmem:[#allocation3 + $0x70] sm:$0xff] %vm2760, %v2741
      %2776 = vst.msk [vmem:[#allocation3 + $0x78] sm:$0xff] %vm2760, %v2743
      %s2777 = scalar_lea.vmem [#allocation4], 48
      %v2778 = vld [vmem:[%s2777] sm:$0xff]
      %v2779 = vld [vmem:[%s2777 + $0x8] sm:$0xff]
      %v2780 = vld [vmem:[%s2777 + $0x18] sm:$0xff]
      %v2781 = vld [vmem:[%s2777 + $0x20] sm:$0xff]
      %v2782 = vld [vmem:[%s2777 + $0x30] sm:$0xff]
      %v2783 = vld [vmem:[%s2777 + $0x38] sm:$0xff]
      %v2784 = vld [vmem:[%s2777 + $0x48] sm:$0xff]
      %v2785 = vld [vmem:[%s2777 + $0x50] sm:$0xff]
      %v2786 = vld [vmem:[%s2777 + $0x60] sm:$0xff]
      %v2787 = vld [vmem:[%s2777 + $0x68] sm:$0xff]
      %v2788 = vld [vmem:[%s2777 + $0x78] sm:$0xff]
      %v2789 = vld [vmem:[%s2777 + $0x80] sm:$0xff]
      %v2790 = vld [vmem:[%s2777 + $0x90] sm:$0xff]
      %v2791 = vld [vmem:[%s2777 + $0x98] sm:$0xff]
      %v2792 = vld [vmem:[%s2777 + $0xa8] sm:$0xff]
      %v2793 = vld [vmem:[%s2777 + $0xb0] sm:$0xff]
      %v2794 = vld [vmem:[%s2777 + $0xc0] sm:$0xff]
      %v2795 = vld [vmem:[%s2777 + $0xc8] sm:$0xff]
      %v2796 = vld [vmem:[%s2777 + $0xd8] sm:$0xff]
      %v2797 = vld [vmem:[%s2777 + $0xe0] sm:$0xff]
      %v2798 = vld [vmem:[%s2777 + $0xf0] sm:$0xff]
      %v2799 = vld [vmem:[%s2777 + $0xf8] sm:$0xff]
      %v2800 = vld [vmem:[%s2777 + $0x108] sm:$0xff]
      %v2801 = vld [vmem:[%s2777 + $0x110] sm:$0xff]
      %v2802 = vld [vmem:[%s2777 + $0x120] sm:$0xff]
      %v2803 = vld [vmem:[%s2777 + $0x128] sm:$0xff]
      %v2804 = vld [vmem:[%s2777 + $0x138] sm:$0xff]
      %v2805 = vld [vmem:[%s2777 + $0x140] sm:$0xff]
      %v2806 = vld [vmem:[%s2777 + $0x150] sm:$0xff]
      %v2807 = vld [vmem:[%s2777 + $0x158] sm:$0xff]
      %v2808 = vld [vmem:[%s2777 + $0x168] sm:$0xff]
      %v2809 = vld [vmem:[%s2777 + $0x170] sm:$0xff]
      %v2810 = vpack.c.bf16 %v2779, %v2778
      %v2811 = vpack.c.bf16 %v2781, %v2780
      %v2812 = vpack.c.bf16 %v2783, %v2782
      %v2813 = vpack.c.bf16 %v2785, %v2784
      %v2814 = vpack.c.bf16 %v2787, %v2786
      %v2815 = vpack.c.bf16 %v2789, %v2788
      %v2816 = vpack.c.bf16 %v2791, %v2790
      %v2817 = vpack.c.bf16 %v2793, %v2792
      %v2818 = vpack.c.bf16 %v2795, %v2794
      %v2819 = vpack.c.bf16 %v2797, %v2796
      %v2820 = vpack.c.bf16 %v2799, %v2798
      %v2821 = vpack.c.bf16 %v2801, %v2800
      %v2822 = vpack.c.bf16 %v2803, %v2802
      %v2823 = vpack.c.bf16 %v2805, %v2804
      %v2824 = vpack.c.bf16 %v2807, %v2806
      %v2825 = vpack.c.bf16 %v2809, %v2808
      %2842 = vrot.lane.b32.xlu0 %v2810, 24
      %v2843 = vpop.permute.xlu0 %2842
      %2844 = vrot.lane.b32.xlu0 %v2811, 24
      %v2845 = vpop.permute.xlu0 %2844
      %2846 = vrot.lane.b32.xlu0 %v2812, 24
      %v2847 = vpop.permute.xlu0 %2846
      %2848 = vrot.lane.b32.xlu0 %v2813, 24
      %v2849 = vpop.permute.xlu0 %2848
      %2850 = vrot.lane.b32.xlu0 %v2814, 24
      %v2851 = vpop.permute.xlu0 %2850
      %2852 = vrot.lane.b32.xlu0 %v2815, 24
      %v2853 = vpop.permute.xlu0 %2852
      %2854 = vrot.lane.b32.xlu0 %v2816, 24
      %v2855 = vpop.permute.xlu0 %2854
      %2856 = vrot.lane.b32.xlu0 %v2817, 24
      %v2857 = vpop.permute.xlu0 %2856
      %2858 = vrot.lane.b32.xlu0 %v2818, 24
      %v2859 = vpop.permute.xlu0 %2858
      %2860 = vrot.lane.b32.xlu0 %v2819, 24
      %v2861 = vpop.permute.xlu0 %2860
      %2862 = vrot.lane.b32.xlu0 %v2820, 24
      %v2863 = vpop.permute.xlu0 %2862
      %2864 = vrot.lane.b32.xlu0 %v2821, 24
      %v2865 = vpop.permute.xlu0 %2864
      %2866 = vrot.lane.b32.xlu0 %v2822, 24
      %v2867 = vpop.permute.xlu0 %2866
      %2868 = vrot.lane.b32.xlu0 %v2823, 24
      %v2869 = vpop.permute.xlu0 %2868
      %2870 = vrot.lane.b32.xlu0 %v2824, 24
      %v2871 = vpop.permute.xlu0 %2870
      %2872 = vrot.lane.b32.xlu0 %v2825, 24
      %v2873 = vpop.permute.xlu0 %2872
      %vm2890 = vcmask 228544
      %2891 = vst.msk [vmem:[#allocation3] sm:$0xff] %vm2890, %v2843
      %2892 = vst.msk [vmem:[#allocation3 + $0x8] sm:$0xff] %vm2890, %v2845
      %2893 = vst.msk [vmem:[#allocation3 + $0x10] sm:$0xff] %vm2890, %v2847
      %2894 = vst.msk [vmem:[#allocation3 + $0x18] sm:$0xff] %vm2890, %v2849
      %2895 = vst.msk [vmem:[#allocation3 + $0x20] sm:$0xff] %vm2890, %v2851
      %2896 = vst.msk [vmem:[#allocation3 + $0x28] sm:$0xff] %vm2890, %v2853
      %2897 = vst.msk [vmem:[#allocation3 + $0x30] sm:$0xff] %vm2890, %v2855
      %2898 = vst.msk [vmem:[#allocation3 + $0x38] sm:$0xff] %vm2890, %v2857
      %2899 = vst.msk [vmem:[#allocation3 + $0x40] sm:$0xff] %vm2890, %v2859
      %2900 = vst.msk [vmem:[#allocation3 + $0x48] sm:$0xff] %vm2890, %v2861
      %2901 = vst.msk [vmem:[#allocation3 + $0x50] sm:$0xff] %vm2890, %v2863
      %2902 = vst.msk [vmem:[#allocation3 + $0x58] sm:$0xff] %vm2890, %v2865
      %2903 = vst.msk [vmem:[#allocation3 + $0x60] sm:$0xff] %vm2890, %v2867
      %2904 = vst.msk [vmem:[#allocation3 + $0x68] sm:$0xff] %vm2890, %v2869
      %2905 = vst.msk [vmem:[#allocation3 + $0x70] sm:$0xff] %vm2890, %v2871
      %2906 = vst.msk [vmem:[#allocation3 + $0x78] sm:$0xff] %vm2890, %v2873
      %v2907 = vld [vmem:[%s2777 + $0x1] sm:$0xff]
      %v2908 = vld [vmem:[%s2777 + $0x9] sm:$0xff]
      %v2909 = vld [vmem:[%s2777 + $0x19] sm:$0xff]
      %v2910 = vld [vmem:[%s2777 + $0x21] sm:$0xff]
      %v2911 = vld [vmem:[%s2777 + $0x31] sm:$0xff]
      %v2912 = vld [vmem:[%s2777 + $0x39] sm:$0xff]
      %v2913 = vld [vmem:[%s2777 + $0x49] sm:$0xff]
      %v2914 = vld [vmem:[%s2777 + $0x51] sm:$0xff]
      %v2915 = vld [vmem:[%s2777 + $0x61] sm:$0xff]
      %v2916 = vld [vmem:[%s2777 + $0x69] sm:$0xff]
      %v2917 = vld [vmem:[%s2777 + $0x79] sm:$0xff]
      %v2918 = vld [vmem:[%s2777 + $0x81] sm:$0xff]
      %v2919 = vld [vmem:[%s2777 + $0x91] sm:$0xff]
      %v2920 = vld [vmem:[%s2777 + $0x99] sm:$0xff]
      %v2921 = vld [vmem:[%s2777 + $0xa9] sm:$0xff]
      %v2922 = vld [vmem:[%s2777 + $0xb1] sm:$0xff]
      %v2923 = vld [vmem:[%s2777 + $0xc1] sm:$0xff]
      %v2924 = vld [vmem:[%s2777 + $0xc9] sm:$0xff]
      %v2925 = vld [vmem:[%s2777 + $0xd9] sm:$0xff]
      %v2926 = vld [vmem:[%s2777 + $0xe1] sm:$0xff]
      %v2927 = vld [vmem:[%s2777 + $0xf1] sm:$0xff]
      %v2928 = vld [vmem:[%s2777 + $0xf9] sm:$0xff]
      %v2929 = vld [vmem:[%s2777 + $0x109] sm:$0xff]
      %v2930 = vld [vmem:[%s2777 + $0x111] sm:$0xff]
      %v2931 = vld [vmem:[%s2777 + $0x121] sm:$0xff]
      %v2932 = vld [vmem:[%s2777 + $0x129] sm:$0xff]
      %v2933 = vld [vmem:[%s2777 + $0x139] sm:$0xff]
      %v2934 = vld [vmem:[%s2777 + $0x141] sm:$0xff]
      %v2935 = vld [vmem:[%s2777 + $0x151] sm:$0xff]
      %v2936 = vld [vmem:[%s2777 + $0x159] sm:$0xff]
      %v2937 = vld [vmem:[%s2777 + $0x169] sm:$0xff]
      %v2938 = vld [vmem:[%s2777 + $0x171] sm:$0xff]
      %v2939 = vpack.c.bf16 %v2908, %v2907
      %v2940 = vpack.c.bf16 %v2910, %v2909
      %v2941 = vpack.c.bf16 %v2912, %v2911
      %v2942 = vpack.c.bf16 %v2914, %v2913
      %v2943 = vpack.c.bf16 %v2916, %v2915
      %v2944 = vpack.c.bf16 %v2918, %v2917
      %v2945 = vpack.c.bf16 %v2920, %v2919
      %v2946 = vpack.c.bf16 %v2922, %v2921
      %v2947 = vpack.c.bf16 %v2924, %v2923
      %v2948 = vpack.c.bf16 %v2926, %v2925
      %v2949 = vpack.c.bf16 %v2928, %v2927
      %v2950 = vpack.c.bf16 %v2930, %v2929
      %v2951 = vpack.c.bf16 %v2932, %v2931
      %v2952 = vpack.c.bf16 %v2934, %v2933
      %v2953 = vpack.c.bf16 %v2936, %v2935
      %v2954 = vpack.c.bf16 %v2938, %v2937
      %2971 = vrot.lane.b32.xlu0 %v2939, 28
      %v2972 = vpop.permute.xlu0 %2971
      %2973 = vrot.lane.b32.xlu0 %v2940, 28
      %v2974 = vpop.permute.xlu0 %2973
      %2975 = vrot.lane.b32.xlu0 %v2941, 28
      %v2976 = vpop.permute.xlu0 %2975
      %2977 = vrot.lane.b32.xlu0 %v2942, 28
      %v2978 = vpop.permute.xlu0 %2977
      %2979 = vrot.lane.b32.xlu0 %v2943, 28
      %v2980 = vpop.permute.xlu0 %2979
      %2981 = vrot.lane.b32.xlu0 %v2944, 28
      %v2982 = vpop.permute.xlu0 %2981
      %2983 = vrot.lane.b32.xlu0 %v2945, 28
      %v2984 = vpop.permute.xlu0 %2983
      %2985 = vrot.lane.b32.xlu0 %v2946, 28
      %v2986 = vpop.permute.xlu0 %2985
      %2987 = vrot.lane.b32.xlu0 %v2947, 28
      %v2988 = vpop.permute.xlu0 %2987
      %2989 = vrot.lane.b32.xlu0 %v2948, 28
      %v2990 = vpop.permute.xlu0 %2989
      %2991 = vrot.lane.b32.xlu0 %v2949, 28
      %v2992 = vpop.permute.xlu0 %2991
      %2993 = vrot.lane.b32.xlu0 %v2950, 28
      %v2994 = vpop.permute.xlu0 %2993
      %2995 = vrot.lane.b32.xlu0 %v2951, 28
      %v2996 = vpop.permute.xlu0 %2995
      %2997 = vrot.lane.b32.xlu0 %v2952, 28
      %v2998 = vpop.permute.xlu0 %2997
      %2999 = vrot.lane.b32.xlu0 %v2953, 28
      %v3000 = vpop.permute.xlu0 %2999
      %3001 = vrot.lane.b32.xlu0 %v2954, 28
      %v3002 = vpop.permute.xlu0 %3001
      %vm3019 = vcmask 261344
      %3020 = vst.msk [vmem:[#allocation3] sm:$0xff] %vm3019, %v2972
      %3021 = vst.msk [vmem:[#allocation3 + $0x8] sm:$0xff] %vm3019, %v2974
      %3022 = vst.msk [vmem:[#allocation3 + $0x10] sm:$0xff] %vm3019, %v2976
      %3023 = vst.msk [vmem:[#allocation3 + $0x18] sm:$0xff] %vm3019, %v2978
      %3024 = vst.msk [vmem:[#allocation3 + $0x20] sm:$0xff] %vm3019, %v2980
      %3025 = vst.msk [vmem:[#allocation3 + $0x28] sm:$0xff] %vm3019, %v2982
      %3026 = vst.msk [vmem:[#allocation3 + $0x30] sm:$0xff] %vm3019, %v2984
      %3027 = vst.msk [vmem:[#allocation3 + $0x38] sm:$0xff] %vm3019, %v2986
      %3028 = vst.msk [vmem:[#allocation3 + $0x40] sm:$0xff] %vm3019, %v2988
      %3029 = vst.msk [vmem:[#allocation3 + $0x48] sm:$0xff] %vm3019, %v2990
      %3030 = vst.msk [vmem:[#allocation3 + $0x50] sm:$0xff] %vm3019, %v2992
      %3031 = vst.msk [vmem:[#allocation3 + $0x58] sm:$0xff] %vm3019, %v2994
      %3032 = vst.msk [vmem:[#allocation3 + $0x60] sm:$0xff] %vm3019, %v2996
      %3033 = vst.msk [vmem:[#allocation3 + $0x68] sm:$0xff] %vm3019, %v2998
      %3034 = vst.msk [vmem:[#allocation3 + $0x70] sm:$0xff] %vm3019, %v3000
      %3035 = vst.msk [vmem:[#allocation3 + $0x78] sm:$0xff] %vm3019, %v3002
      %v3036 = vld [vmem:[%s2777 + $0x2] sm:$0xff]
      %v3037 = vld [vmem:[%s2777 + $0xa] sm:$0xff]
      %v3038 = vld [vmem:[%s2777 + $0x1a] sm:$0xff]
      %v3039 = vld [vmem:[%s2777 + $0x22] sm:$0xff]
      %v3040 = vld [vmem:[%s2777 + $0x32] sm:$0xff]
      %v3041 = vld [vmem:[%s2777 + $0x3a] sm:$0xff]
      %v3042 = vld [vmem:[%s2777 + $0x4a] sm:$0xff]
      %v3043 = vld [vmem:[%s2777 + $0x52] sm:$0xff]
      %v3044 = vld [vmem:[%s2777 + $0x62] sm:$0xff]
      %v3045 = vld [vmem:[%s2777 + $0x6a] sm:$0xff]
      %v3046 = vld [vmem:[%s2777 + $0x7a] sm:$0xff]
      %v3047 = vld [vmem:[%s2777 + $0x82] sm:$0xff]
      %v3048 = vld [vmem:[%s2777 + $0x92] sm:$0xff]
      %v3049 = vld [vmem:[%s2777 + $0x9a] sm:$0xff]
      %v3050 = vld [vmem:[%s2777 + $0xaa] sm:$0xff]
      %v3051 = vld [vmem:[%s2777 + $0xb2] sm:$0xff]
      %v3052 = vld [vmem:[%s2777 + $0xc2] sm:$0xff]
      %v3053 = vld [vmem:[%s2777 + $0xca] sm:$0xff]
      %v3054 = vld [vmem:[%s2777 + $0xda] sm:$0xff]
      %v3055 = vld [vmem:[%s2777 + $0xe2] sm:$0xff]
      %v3056 = vld [vmem:[%s2777 + $0xf2] sm:$0xff]
      %v3057 = vld [vmem:[%s2777 + $0xfa] sm:$0xff]
      %v3058 = vld [vmem:[%s2777 + $0x10a] sm:$0xff]
      %v3059 = vld [vmem:[%s2777 + $0x112] sm:$0xff]
      %v3060 = vld [vmem:[%s2777 + $0x122] sm:$0xff]
      %v3061 = vld [vmem:[%s2777 + $0x12a] sm:$0xff]
      %v3062 = vld [vmem:[%s2777 + $0x13a] sm:$0xff]
      %v3063 = vld [vmem:[%s2777 + $0x142] sm:$0xff]
      %v3064 = vld [vmem:[%s2777 + $0x152] sm:$0xff]
      %v3065 = vld [vmem:[%s2777 + $0x15a] sm:$0xff]
      %v3066 = vld [vmem:[%s2777 + $0x16a] sm:$0xff]
      %v3067 = vld [vmem:[%s2777 + $0x172] sm:$0xff]
      %v3068 = vpack.c.bf16 %v3037, %v3036
      %v3069 = vpack.c.bf16 %v3039, %v3038
      %v3070 = vpack.c.bf16 %v3041, %v3040
      %v3071 = vpack.c.bf16 %v3043, %v3042
      %v3072 = vpack.c.bf16 %v3045, %v3044
      %v3073 = vpack.c.bf16 %v3047, %v3046
      %v3074 = vpack.c.bf16 %v3049, %v3048
      %v3075 = vpack.c.bf16 %v3051, %v3050
      %v3076 = vpack.c.bf16 %v3053, %v3052
      %v3077 = vpack.c.bf16 %v3055, %v3054
      %v3078 = vpack.c.bf16 %v3057, %v3056
      %v3079 = vpack.c.bf16 %v3059, %v3058
      %v3080 = vpack.c.bf16 %v3061, %v3060
      %v3081 = vpack.c.bf16 %v3063, %v3062
      %v3082 = vpack.c.bf16 %v3065, %v3064
      %v3083 = vpack.c.bf16 %v3067, %v3066
      %3100 = vrot.lane.b32.xlu0 %v3068, 32
      %v3101 = vpop.permute.xlu0 %3100
      %3102 = vrot.lane.b32.xlu0 %v3069, 32
      %v3103 = vpop.permute.xlu0 %3102
      %3104 = vrot.lane.b32.xlu0 %v3070, 32
      %v3105 = vpop.permute.xlu0 %3104
      %3106 = vrot.lane.b32.xlu0 %v3071, 32
      %v3107 = vpop.permute.xlu0 %3106
      %3108 = vrot.lane.b32.xlu0 %v3072, 32
      %v3109 = vpop.permute.xlu0 %3108
      %3110 = vrot.lane.b32.xlu0 %v3073, 32
      %v3111 = vpop.permute.xlu0 %3110
      %3112 = vrot.lane.b32.xlu0 %v3074, 32
      %v3113 = vpop.permute.xlu0 %3112
      %3114 = vrot.lane.b32.xlu0 %v3075, 32
      %v3115 = vpop.permute.xlu0 %3114
      %3116 = vrot.lane.b32.xlu0 %v3076, 32
      %v3117 = vpop.permute.xlu0 %3116
      %3118 = vrot.lane.b32.xlu0 %v3077, 32
      %v3119 = vpop.permute.xlu0 %3118
      %3120 = vrot.lane.b32.xlu0 %v3078, 32
      %v3121 = vpop.permute.xlu0 %3120
      %3122 = vrot.lane.b32.xlu0 %v3079, 32
      %v3123 = vpop.permute.xlu0 %3122
      %3124 = vrot.lane.b32.xlu0 %v3080, 32
      %v3125 = vpop.permute.xlu0 %3124
      %3126 = vrot.lane.b32.xlu0 %v3081, 32
      %v3127 = vpop.permute.xlu0 %3126
      %3128 = vrot.lane.b32.xlu0 %v3082, 32
      %v3129 = vpop.permute.xlu0 %3128
      %3130 = vrot.lane.b32.xlu0 %v3083, 32
      %v3131 = vpop.permute.xlu0 %3130
      %vm3148 = vcmask 294144
      %3149 = vst.msk [vmem:[#allocation3] sm:$0xff] %vm3148, %v3101
      %3150 = vst.msk [vmem:[#allocation3 + $0x8] sm:$0xff] %vm3148, %v3103
      %3151 = vst.msk [vmem:[#allocation3 + $0x10] sm:$0xff] %vm3148, %v3105
      %3152 = vst.msk [vmem:[#allocation3 + $0x18] sm:$0xff] %vm3148, %v3107
      %3153 = vst.msk [vmem:[#allocation3 + $0x20] sm:$0xff] %vm3148, %v3109
      %3154 = vst.msk [vmem:[#allocation3 + $0x28] sm:$0xff] %vm3148, %v3111
      %3155 = vst.msk [vmem:[#allocation3 + $0x30] sm:$0xff] %vm3148, %v3113
      %3156 = vst.msk [vmem:[#allocation3 + $0x38] sm:$0xff] %vm3148, %v3115
      %3157 = vst.msk [vmem:[#allocation3 + $0x40] sm:$0xff] %vm3148, %v3117
      %3158 = vst.msk [vmem:[#allocation3 + $0x48] sm:$0xff] %vm3148, %v3119
      %3159 = vst.msk [vmem:[#allocation3 + $0x50] sm:$0xff] %vm3148, %v3121
      %3160 = vst.msk [vmem:[#allocation3 + $0x58] sm:$0xff] %vm3148, %v3123
      %3161 = vst.msk [vmem:[#allocation3 + $0x60] sm:$0xff] %vm3148, %v3125
      %3162 = vst.msk [vmem:[#allocation3 + $0x68] sm:$0xff] %vm3148, %v3127
      %3163 = vst.msk [vmem:[#allocation3 + $0x70] sm:$0xff] %vm3148, %v3129
      %3164 = vst.msk [vmem:[#allocation3 + $0x78] sm:$0xff] %vm3148, %v3131
      %v3165 = vld [vmem:[#allocation3] sm:$0xff]
      %v3166 = vld [vmem:[#allocation3 + $0x8] sm:$0xff]
      %v3167 = vld [vmem:[#allocation3 + $0x10] sm:$0xff]
      %v3168 = vld [vmem:[#allocation3 + $0x18] sm:$0xff]
      %v3169 = vld [vmem:[#allocation3 + $0x20] sm:$0xff]
      %v3170 = vld [vmem:[#allocation3 + $0x28] sm:$0xff]
      %v3171 = vld [vmem:[#allocation3 + $0x30] sm:$0xff]
      %v3172 = vld [vmem:[#allocation3 + $0x38] sm:$0xff]
      %v3173 = vld [vmem:[#allocation3 + $0x40] sm:$0xff]
      %v3174 = vld [vmem:[#allocation3 + $0x48] sm:$0xff]
      %v3175 = vld [vmem:[#allocation3 + $0x50] sm:$0xff]
      %v3176 = vld [vmem:[#allocation3 + $0x58] sm:$0xff]
      %v3177 = vld [vmem:[#allocation3 + $0x60] sm:$0xff]
      %v3178 = vld [vmem:[#allocation3 + $0x68] sm:$0xff]
      %v3179 = vld [vmem:[#allocation3 + $0x70] sm:$0xff]
      %v3180 = vld [vmem:[#allocation3 + $0x78] sm:$0xff]
      %v3181 = vld [vmem:[%s4] sm:$0xf]
      %v3182 = vld [vmem:[%s4 + $0x4] sm:$0xf]
      %v3183 = vld [vmem:[%s4 + $0x8] sm:$0xf]
      %v3184 = vld [vmem:[%s4 + $0xc] sm:$0xf]
      %v3185 = vld [vmem:[%s4 + $0x10] sm:$0x3]
      %v3191 = vunpack.c.l.b16 %v3181
      %v3192 = vunpack.c.l.b16 %v3182
      %v3193 = vunpack.c.l.b16 %v3183
      %v3194 = vunpack.c.l.b16 %v3184
      %v3195 = vunpack.c.l.b16 %v3185
      %v3196 = vpack.c.b16 %v3192, %v3191
      %v3197 = vpack.c.b16 %v3194, %v3193
      %v3198 = vpack.c.b16 %v3195, %v3195
      %vm3201 = vcmask 293888
      %v3203 = vsel %vm3201, %v3165, 0
      %v3206 = vsel %vm3201, %v3166, 0
      %v3209 = vsel %vm3201, %v3167, 0
      %v3212 = vsel %vm3201, %v3168, 0
      %v3215 = vsel %vm3201, %v3169, 0
      %v3218 = vsel %vm3201, %v3170, 0
      %v3221 = vsel %vm3201, %v3171, 0
      %v3224 = vsel %vm3201, %v3172, 0
      %v3227 = vsel %vm3201, %v3173, 0
      %v3230 = vsel %vm3201, %v3174, 0
      %v3233 = vsel %vm3201, %v3175, 0
      %v3236 = vsel %vm3201, %v3176, 0
      %v3239 = vsel %vm3201, %v3177, 0
      %v3242 = vsel %vm3201, %v3178, 0
      %v3245 = vsel %vm3201, %v3179, 0
      %v3248 = vsel %vm3201, %v3180, 0
      %vm3250 = vcmask 1041408
      %v3252 = vsel %vm3250, %v3198, 0
      %3254 = vmatprep.subr.bf16.mxu0 0
      %3255 = vmatpush1.bf16.msra.mxu0 %v3196
      %3256 = vmatprep.subr.bf16.mxu0 0
      %3257 = vmatpush1.bf16.msra.mxu0 %v3197
      %3258 = vmatprep.subr.bf16.mxu0 0
      %3259 = vmatpush1.bf16.msra.mxu0 %v3252
      %3260 = vmatprep.subr.bf16.mxu0 0
      %3261 = vmatpush1.bf16.msra.mxu0 0
      %3262 = vmatprep.subr.bf16.mxu0 0
      %3263 = vmatpush1.bf16.msra.mxu0 0
      %3264 = vmatprep.subr.bf16.mxu0 0
      %3265 = vmatpush1.bf16.msra.mxu0 0
      %3266 = vmatprep.subr.bf16.mxu0 0
      %3267 = vmatpush1.bf16.msra.mxu0 0
      %3268 = vmatprep.subr.bf16.mxu0 0
      %3269 = vmatpush1.bf16.msra.mxu0 0
      %3270 = vmatprep.subr.bf16.mxu0 0
      %3271 = vmatpush1.bf16.msra.mxu0 0
      %3272 = vmatprep.subr.bf16.mxu0 0
      %3273 = vmatpush1.bf16.msra.mxu0 0
      %3274 = vmatprep.subr.bf16.mxu0 0
      %3275 = vmatpush1.bf16.msra.mxu0 0
      %3276 = vmatprep.subr.bf16.mxu0 0
      %3277 = vmatpush1.bf16.msra.mxu0 0
      %3278 = vmatprep.subr.bf16.mxu0 0
      %3279 = vmatpush1.bf16.msra.mxu0 0
      %3280 = vmatprep.subr.bf16.mxu0 0
      %3281 = vmatpush1.bf16.msra.mxu0 0
      %3282 = vmatprep.subr.bf16.mxu0 0
      %3283 = vmatpush1.bf16.msra.mxu0 0
      %3284 = vmatprep.subr.bf16.mxu0 0
      %3285 = vmatpush1.bf16.msra.mxu0 0
      %3286 = vmatprep.mubr.bf16.mxu0 0
      %3287 = vmatmul.mubr.bf16.gmra.mrb[0].mxu0 %v3203
      %v3288 = vpop.f32.mrb[0].mxu0
      %v3289 = vadd.f32 0.0, %v3288
      %v3290 = vpop.f32.mrb[0].mxu0
      %v3291 = vpop.f32.mrb[0].mxu0
      %v3292 = vadd.f32 0.0, %v3291
      %v3293 = vpop.f32.mrb[0].mxu0
      %3294 = vmatprep.mubr.bf16.mxu0 0
      %3295 = vmatmul.mubr.bf16.gmra.mrb[0].mxu0 %v3206
      %v3296 = vpop.f32.mrb[0].mxu0
      %v3297 = vadd.f32 0.0, %v3296
      %v3298 = vpop.f32.mrb[0].mxu0
      %v3299 = vpop.f32.mrb[0].mxu0
      %v3300 = vadd.f32 0.0, %v3299
      %v3301 = vpop.f32.mrb[0].mxu0
      %3302 = vmatprep.mubr.bf16.mxu0 0
      %3303 = vmatmul.mubr.bf16.gmra.mrb[0].mxu0 %v3209
      %v3304 = vpop.f32.mrb[0].mxu0
      %v3305 = vadd.f32 0.0, %v3304
      %v3306 = vpop.f32.mrb[0].mxu0
      %v3307 = vpop.f32.mrb[0].mxu0
      %v3308 = vadd.f32 0.0, %v3307
      %v3309 = vpop.f32.mrb[0].mxu0
      %3310 = vmatprep.mubr.bf16.mxu0 0
      %3311 = vmatmul.mubr.bf16.gmra.mrb[0].mxu0 %v3212
      %v3312 = vpop.f32.mrb[0].mxu0
      %v3313 = vadd.f32 0.0, %v3312
      %v3314 = vpop.f32.mrb[0].mxu0
      %v3315 = vpop.f32.mrb[0].mxu0
      %v3316 = vadd.f32 0.0, %v3315
      %v3317 = vpop.f32.mrb[0].mxu0
      %3318 = vmatprep.mubr.bf16.mxu0 0
      %3319 = vmatmul.mubr.bf16.gmra.mrb[0].mxu0 %v3215
      %v3320 = vpop.f32.mrb[0].mxu0
      %v3321 = vadd.f32 0.0, %v3320
      %v3322 = vpop.f32.mrb[0].mxu0
      %v3323 = vpop.f32.mrb[0].mxu0
      %v3324 = vadd.f32 0.0, %v3323
      %v3325 = vpop.f32.mrb[0].mxu0
      %3326 = vmatprep.mubr.bf16.mxu0 0
      %3327 = vmatmul.mubr.bf16.gmra.mrb[0].mxu0 %v3218
      %v3328 = vpop.f32.mrb[0].mxu0
      %v3329 = vadd.f32 0.0, %v3328
      %v3330 = vpop.f32.mrb[0].mxu0
      %v3331 = vpop.f32.mrb[0].mxu0
      %v3332 = vadd.f32 0.0, %v3331
      %v3333 = vpop.f32.mrb[0].mxu0
      %3334 = vmatprep.mubr.bf16.mxu0 0
      %3335 = vmatmul.mubr.bf16.gmra.mrb[0].mxu0 %v3221
      %v3336 = vpop.f32.mrb[0].mxu0
      %v3337 = vadd.f32 0.0, %v3336
      %v3338 = vpop.f32.mrb[0].mxu0
      %v3339 = vpop.f32.mrb[0].mxu0
      %v3340 = vadd.f32 0.0, %v3339
      %v3341 = vpop.f32.mrb[0].mxu0
      %3342 = vmatprep.mubr.bf16.mxu0 0
      %3343 = vmatmul.mubr.bf16.gmra.mrb[0].mxu0 %v3224
      %v3344 = vpop.f32.mrb[0].mxu0
      %v3345 = vadd.f32 0.0, %v3344
      %v3346 = vpop.f32.mrb[0].mxu0
      %v3347 = vpop.f32.mrb[0].mxu0
      %v3348 = vadd.f32 0.0, %v3347
      %v3349 = vpop.f32.mrb[0].mxu0
      %3350 = vmatprep.mubr.bf16.mxu0 0
      %3351 = vmatmul.mubr.bf16.gmra.mrb[0].mxu0 %v3227
      %v3352 = vpop.f32.mrb[0].mxu0
      %v3353 = vadd.f32 0.0, %v3352
      %v3354 = vpop.f32.mrb[0].mxu0
      %v3355 = vpop.f32.mrb[0].mxu0
      %v3356 = vadd.f32 0.0, %v3355
      %v3357 = vpop.f32.mrb[0].mxu0
      %3358 = vmatprep.mubr.bf16.mxu0 0
      %3359 = vmatmul.mubr.bf16.gmra.mrb[0].mxu0 %v3230
      %v3360 = vpop.f32.mrb[0].mxu0
      %v3361 = vadd.f32 0.0, %v3360
      %v3362 = vpop.f32.mrb[0].mxu0
      %v3363 = vpop.f32.mrb[0].mxu0
      %v3364 = vadd.f32 0.0, %v3363
      %v3365 = vpop.f32.mrb[0].mxu0
      %3366 = vmatprep.mubr.bf16.mxu0 0
      %3367 = vmatmul.mubr.bf16.gmra.mrb[0].mxu0 %v3233
      %v3368 = vpop.f32.mrb[0].mxu0
      %v3369 = vadd.f32 0.0, %v3368
      %v3370 = vpop.f32.mrb[0].mxu0
      %v3371 = vpop.f32.mrb[0].mxu0
      %v3372 = vadd.f32 0.0, %v3371
      %v3373 = vpop.f32.mrb[0].mxu0
      %3374 = vmatprep.mubr.bf16.mxu0 0
      %3375 = vmatmul.mubr.bf16.gmra.mrb[0].mxu0 %v3236
      %v3376 = vpop.f32.mrb[0].mxu0
      %v3377 = vadd.f32 0.0, %v3376
      %v3378 = vpop.f32.mrb[0].mxu0
      %v3379 = vpop.f32.mrb[0].mxu0
      %v3380 = vadd.f32 0.0, %v3379
      %v3381 = vpop.f32.mrb[0].mxu0
      %3382 = vmatprep.mubr.bf16.mxu0 0
      %3383 = vmatmul.mubr.bf16.gmra.mrb[0].mxu0 %v3239
      %v3384 = vpop.f32.mrb[0].mxu0
      %v3385 = vadd.f32 0.0, %v3384
      %v3386 = vpop.f32.mrb[0].mxu0
      %v3387 = vpop.f32.mrb[0].mxu0
      %v3388 = vadd.f32 0.0, %v3387
      %v3389 = vpop.f32.mrb[0].mxu0
      %3390 = vmatprep.mubr.bf16.mxu0 0
      %3391 = vmatmul.mubr.bf16.gmra.mrb[0].mxu0 %v3242
      %v3392 = vpop.f32.mrb[0].mxu0
      %v3393 = vadd.f32 0.0, %v3392
      %v3394 = vpop.f32.mrb[0].mxu0
      %v3395 = vpop.f32.mrb[0].mxu0
      %v3396 = vadd.f32 0.0, %v3395
      %v3397 = vpop.f32.mrb[0].mxu0
      %3398 = vmatprep.mubr.bf16.mxu0 0
      %3399 = vmatmul.mubr.bf16.gmra.mrb[0].mxu0 %v3245
      %v3400 = vpop.f32.mrb[0].mxu0
      %v3401 = vadd.f32 0.0, %v3400
      %v3402 = vpop.f32.mrb[0].mxu0
      %v3403 = vpop.f32.mrb[0].mxu0
      %v3404 = vadd.f32 0.0, %v3403
      %v3405 = vpop.f32.mrb[0].mxu0
      %3406 = vmatprep.mubr.bf16.mxu0 0
      %3407 = vmatmul.mubr.bf16.gmra.mrb[0].mxu0 %v3248
      %v3408 = vpop.f32.mrb[0].mxu0
      %v3409 = vadd.f32 0.0, %v3408
      %v3410 = vpop.f32.mrb[0].mxu0
      %v3411 = vpop.f32.mrb[0].mxu0
      %v3412 = vadd.f32 0.0, %v3411
      %v3413 = vpop.f32.mrb[0].mxu0
      %3414 = vdwg.mxu0
      %v3415 = vld [vmem:[%s5] sm:$0x1]
      %v3417 = vlaneseq
      %v3418 = vshrl.u32 %v3417, 7
      %v3419 = vsub.s32 0, %v3418
      %v3420 = vrot.slane %v3415, %v3419
      %v3422 = vmul.f32 %v3289, %v3420
      %v3423 = vmul.f32 %v3292, %v3420
      %v3424 = vmul.f32 %v3297, %v3420
      %v3425 = vmul.f32 %v3300, %v3420
      %v3426 = vmul.f32 %v3305, %v3420
      %v3427 = vmul.f32 %v3308, %v3420
      %v3428 = vmul.f32 %v3313, %v3420
      %v3429 = vmul.f32 %v3316, %v3420
      %v3430 = vmul.f32 %v3321, %v3420
      %v3431 = vmul.f32 %v3324, %v3420
      %v3432 = vmul.f32 %v3329, %v3420
      %v3433 = vmul.f32 %v3332, %v3420
      %v3434 = vmul.f32 %v3337, %v3420
      %v3435 = vmul.f32 %v3340, %v3420
      %v3436 = vmul.f32 %v3345, %v3420
      %v3437 = vmul.f32 %v3348, %v3420
      %v3438 = vmul.f32 %v3353, %v3420
      %v3439 = vmul.f32 %v3356, %v3420
      %v3440 = vmul.f32 %v3361, %v3420
      %v3441 = vmul.f32 %v3364, %v3420
      %v3442 = vmul.f32 %v3369, %v3420
      %v3443 = vmul.f32 %v3372, %v3420
      %v3444 = vmul.f32 %v3377, %v3420
      %v3445 = vmul.f32 %v3380, %v3420
      %v3446 = vmul.f32 %v3385, %v3420
      %v3447 = vmul.f32 %v3388, %v3420
      %v3448 = vmul.f32 %v3393, %v3420
      %v3449 = vmul.f32 %v3396, %v3420
      %v3450 = vmul.f32 %v3401, %v3420
      %v3451 = vmul.f32 %v3404, %v3420
      %v3452 = vmul.f32 %v3409, %v3420
      %v3453 = vmul.f32 %v3412, %v3420
      %v3454 = vld [vmem:[%s6] sm:$0x1]
      %v3456 = vlaneseq
      %v3457 = vshrl.u32 %v3456, 7
      %v3458 = vsub.s32 0, %v3457
      %v3459 = vrot.slane %v3454, %v3458
      %v3461 = vadd.f32 %v3422, %v3459
      %v3462 = vadd.f32 %v3423, %v3459
      %v3463 = vadd.f32 %v3424, %v3459
      %v3464 = vadd.f32 %v3425, %v3459
      %v3465 = vadd.f32 %v3426, %v3459
      %v3466 = vadd.f32 %v3427, %v3459
      %v3467 = vadd.f32 %v3428, %v3459
      %v3468 = vadd.f32 %v3429, %v3459
      %v3469 = vadd.f32 %v3430, %v3459
      %v3470 = vadd.f32 %v3431, %v3459
      %v3471 = vadd.f32 %v3432, %v3459
      %v3472 = vadd.f32 %v3433, %v3459
      %v3473 = vadd.f32 %v3434, %v3459
      %v3474 = vadd.f32 %v3435, %v3459
      %v3475 = vadd.f32 %v3436, %v3459
      %v3476 = vadd.f32 %v3437, %v3459
      %v3477 = vadd.f32 %v3438, %v3459
      %v3478 = vadd.f32 %v3439, %v3459
      %v3479 = vadd.f32 %v3440, %v3459
      %v3480 = vadd.f32 %v3441, %v3459
      %v3481 = vadd.f32 %v3442, %v3459
      %v3482 = vadd.f32 %v3443, %v3459
      %v3483 = vadd.f32 %v3444, %v3459
      %v3484 = vadd.f32 %v3445, %v3459
      %v3485 = vadd.f32 %v3446, %v3459
      %v3486 = vadd.f32 %v3447, %v3459
      %v3487 = vadd.f32 %v3448, %v3459
      %v3488 = vadd.f32 %v3449, %v3459
      %v3489 = vadd.f32 %v3450, %v3459
      %v3490 = vadd.f32 %v3451, %v3459
      %v3491 = vadd.f32 %v3452, %v3459
      %v3492 = vadd.f32 %v3453, %v3459
      %v3493 = vmax.f32 %v3461, 0.0
      %v3494 = vmax.f32 %v3462, 0.0
      %v3495 = vmax.f32 %v3463, 0.0
      %v3496 = vmax.f32 %v3464, 0.0
      %v3497 = vmax.f32 %v3465, 0.0
      %v3498 = vmax.f32 %v3466, 0.0
      %v3499 = vmax.f32 %v3467, 0.0
      %v3500 = vmax.f32 %v3468, 0.0
      %v3501 = vmax.f32 %v3469, 0.0
      %v3502 = vmax.f32 %v3470, 0.0
      %v3503 = vmax.f32 %v3471, 0.0
      %v3504 = vmax.f32 %v3472, 0.0
      %v3505 = vmax.f32 %v3473, 0.0
      %v3506 = vmax.f32 %v3474, 0.0
      %v3507 = vmax.f32 %v3475, 0.0
      %v3508 = vmax.f32 %v3476, 0.0
      %v3509 = vmax.f32 %v3477, 0.0
      %v3510 = vmax.f32 %v3478, 0.0
      %v3511 = vmax.f32 %v3479, 0.0
      %v3512 = vmax.f32 %v3480, 0.0
      %v3513 = vmax.f32 %v3481, 0.0
      %v3514 = vmax.f32 %v3482, 0.0
      %v3515 = vmax.f32 %v3483, 0.0
      %v3516 = vmax.f32 %v3484, 0.0
      %v3517 = vmax.f32 %v3485, 0.0
      %v3518 = vmax.f32 %v3486, 0.0
      %v3519 = vmax.f32 %v3487, 0.0
      %v3520 = vmax.f32 %v3488, 0.0
      %v3521 = vmax.f32 %v3489, 0.0
      %v3522 = vmax.f32 %v3490, 0.0
      %v3523 = vmax.f32 %v3491, 0.0
      %v3524 = vmax.f32 %v3492, 0.0
      %3557 = vrot.lane.b32.xlu0 %v3493, 8
      %v3558 = vpop.permute.xlu0 %3557
      %3559 = vrot.lane.b32.xlu0 %v3494, 8
      %v3560 = vpop.permute.xlu0 %3559
      %3561 = vrot.lane.b32.xlu0 %v3495, 8
      %v3562 = vpop.permute.xlu0 %3561
      %3563 = vrot.lane.b32.xlu0 %v3496, 8
      %v3564 = vpop.permute.xlu0 %3563
      %3565 = vrot.lane.b32.xlu0 %v3497, 8
      %v3566 = vpop.permute.xlu0 %3565
      %3567 = vrot.lane.b32.xlu0 %v3498, 8
      %v3568 = vpop.permute.xlu0 %3567
      %3569 = vrot.lane.b32.xlu0 %v3499, 8
      %v3570 = vpop.permute.xlu0 %3569
      %3571 = vrot.lane.b32.xlu0 %v3500, 8
      %v3572 = vpop.permute.xlu0 %3571
      %3573 = vrot.lane.b32.xlu0 %v3501, 8
      %v3574 = vpop.permute.xlu0 %3573
      %3575 = vrot.lane.b32.xlu0 %v3502, 8
      %v3576 = vpop.permute.xlu0 %3575
      %3577 = vrot.lane.b32.xlu0 %v3503, 8
      %v3578 = vpop.permute.xlu0 %3577
      %3579 = vrot.lane.b32.xlu0 %v3504, 8
      %v3580 = vpop.permute.xlu0 %3579
      %3581 = vrot.lane.b32.xlu0 %v3505, 8
      %v3582 = vpop.permute.xlu0 %3581
      %3583 = vrot.lane.b32.xlu0 %v3506, 8
      %v3584 = vpop.permute.xlu0 %3583
      %3585 = vrot.lane.b32.xlu0 %v3507, 8
      %v3586 = vpop.permute.xlu0 %3585
      %3587 = vrot.lane.b32.xlu0 %v3508, 8
      %v3588 = vpop.permute.xlu0 %3587
      %3589 = vrot.lane.b32.xlu0 %v3509, 8
      %v3590 = vpop.permute.xlu0 %3589
      %3591 = vrot.lane.b32.xlu0 %v3510, 8
      %v3592 = vpop.permute.xlu0 %3591
      %3593 = vrot.lane.b32.xlu0 %v3511, 8
      %v3594 = vpop.permute.xlu0 %3593
      %3595 = vrot.lane.b32.xlu0 %v3512, 8
      %v3596 = vpop.permute.xlu0 %3595
      %3597 = vrot.lane.b32.xlu0 %v3513, 8
      %v3598 = vpop.permute.xlu0 %3597
      %3599 = vrot.lane.b32.xlu0 %v3514, 8
      %v3600 = vpop.permute.xlu0 %3599
      %3601 = vrot.lane.b32.xlu0 %v3515, 8
      %v3602 = vpop.permute.xlu0 %3601
      %3603 = vrot.lane.b32.xlu0 %v3516, 8
      %v3604 = vpop.permute.xlu0 %3603
      %3605 = vrot.lane.b32.xlu0 %v3517, 8
      %v3606 = vpop.permute.xlu0 %3605
      %3607 = vrot.lane.b32.xlu0 %v3518, 8
      %v3608 = vpop.permute.xlu0 %3607
      %3609 = vrot.lane.b32.xlu0 %v3519, 8
      %v3610 = vpop.permute.xlu0 %3609
      %3611 = vrot.lane.b32.xlu0 %v3520, 8
      %v3612 = vpop.permute.xlu0 %3611
      %3613 = vrot.lane.b32.xlu0 %v3521, 8
      %v3614 = vpop.permute.xlu0 %3613
      %3615 = vrot.lane.b32.xlu0 %v3522, 8
      %v3616 = vpop.permute.xlu0 %3615
      %3617 = vrot.lane.b32.xlu0 %v3523, 8
      %v3618 = vpop.permute.xlu0 %3617
      %3619 = vrot.lane.b32.xlu0 %v3524, 8
      %v3620 = vpop.permute.xlu0 %3619
      %3653 = vst.msk [vmem:[%s359] sm:$0xff] %vm2373, %v3558
      %3654 = vst.msk [vmem:[%s359 + $0x8] sm:$0xff] %vm2373, %v3560
      %3655 = vst.msk [vmem:[%s359 + $0x10] sm:$0xff] %vm2373, %v3562
      %3656 = vst.msk [vmem:[%s359 + $0x18] sm:$0xff] %vm2373, %v3564
      %3657 = vst.msk [vmem:[%s359 + $0x20] sm:$0xff] %vm2373, %v3566
      %3658 = vst.msk [vmem:[%s359 + $0x28] sm:$0xff] %vm2373, %v3568
      %3659 = vst.msk [vmem:[%s359 + $0x30] sm:$0xff] %vm2373, %v3570
      %3660 = vst.msk [vmem:[%s359 + $0x38] sm:$0xff] %vm2373, %v3572
      %3661 = vst.msk [vmem:[%s359 + $0x40] sm:$0xff] %vm2373, %v3574
      %3662 = vst.msk [vmem:[%s359 + $0x48] sm:$0xff] %vm2373, %v3576
      %3663 = vst.msk [vmem:[%s359 + $0x50] sm:$0xff] %vm2373, %v3578
      %3664 = vst.msk [vmem:[%s359 + $0x58] sm:$0xff] %vm2373, %v3580
      %3665 = vst.msk [vmem:[%s359 + $0x60] sm:$0xff] %vm2373, %v3582
      %3666 = vst.msk [vmem:[%s359 + $0x68] sm:$0xff] %vm2373, %v3584
      %3667 = vst.msk [vmem:[%s359 + $0x70] sm:$0xff] %vm2373, %v3586
      %3668 = vst.msk [vmem:[%s359 + $0x78] sm:$0xff] %vm2373, %v3588
      %3669 = vst.msk [vmem:[%s359 + $0x80] sm:$0xff] %vm2373, %v3590
      %3670 = vst.msk [vmem:[%s359 + $0x88] sm:$0xff] %vm2373, %v3592
      %3671 = vst.msk [vmem:[%s359 + $0x90] sm:$0xff] %vm2373, %v3594
      %3672 = vst.msk [vmem:[%s359 + $0x98] sm:$0xff] %vm2373, %v3596
      %3673 = vst.msk [vmem:[%s359 + $0xa0] sm:$0xff] %vm2373, %v3598
      %3674 = vst.msk [vmem:[%s359 + $0xa8] sm:$0xff] %vm2373, %v3600
      %3675 = vst.msk [vmem:[%s359 + $0xb0] sm:$0xff] %vm2373, %v3602
      %3676 = vst.msk [vmem:[%s359 + $0xb8] sm:$0xff] %vm2373, %v3604
      %3677 = vst.msk [vmem:[%s359 + $0xc0] sm:$0xff] %vm2373, %v3606
      %3678 = vst.msk [vmem:[%s359 + $0xc8] sm:$0xff] %vm2373, %v3608
      %3679 = vst.msk [vmem:[%s359 + $0xd0] sm:$0xff] %vm2373, %v3610
      %3680 = vst.msk [vmem:[%s359 + $0xd8] sm:$0xff] %vm2373, %v3612
      %3681 = vst.msk [vmem:[%s359 + $0xe0] sm:$0xff] %vm2373, %v3614
      %3682 = vst.msk [vmem:[%s359 + $0xe8] sm:$0xff] %vm2373, %v3616
      %3683 = vst.msk [vmem:[%s359 + $0xf0] sm:$0xff] %vm2373, %v3618
      %3684 = vst.msk [vmem:[%s359 + $0xf8] sm:$0xff] %vm2373, %v3620
      %3685 = vst.msk [vmem:[#allocation4] sm:$0xff] %vm1851, 0.0
      %3686 = vst.msk [vmem:[#allocation4 + $0x8] sm:$0xff] %vm1851, 0.0
      %3687 = vst.msk [vmem:[#allocation4 + $0x10] sm:$0x3] %vm1854, 0.0
      %3688 = vst.msk [vmem:[#allocation4 + $0x18] sm:$0xff] %vm1851, 0.0
      %3689 = vst.msk [vmem:[#allocation4 + $0x20] sm:$0xff] %vm1851, 0.0
      %3690 = vst.msk [vmem:[#allocation4 + $0x28] sm:$0x3] %vm1854, 0.0
      %3691 = vst.msk [vmem:[#allocation4 + $0x30] sm:$0xff] %vm1851, 0.0
      %3692 = vst.msk [vmem:[#allocation4 + $0x38] sm:$0xff] %vm1851, 0.0
      %3693 = vst.msk [vmem:[#allocation4 + $0x40] sm:$0x3] %vm1854, 0.0
      %3694 = vst.msk [vmem:[#allocation4 + $0x48] sm:$0xff] %vm1851, 0.0
      %3695 = vst.msk [vmem:[#allocation4 + $0x50] sm:$0xff] %vm1851, 0.0
      %3696 = vst.msk [vmem:[#allocation4 + $0x58] sm:$0x3] %vm1854, 0.0
      %3697 = vst.msk [vmem:[#allocation4 + $0x60] sm:$0xff] %vm1851, 0.0
      %3698 = vst.msk [vmem:[#allocation4 + $0x68] sm:$0xff] %vm1851, 0.0
      %3699 = vst.msk [vmem:[#allocation4 + $0x70] sm:$0x3] %vm1854, 0.0
      %3700 = vst.msk [vmem:[#allocation4 + $0x78] sm:$0xff] %vm1851, 0.0
      %3701 = vst.msk [vmem:[#allocation4 + $0x80] sm:$0xff] %vm1851, 0.0
      %3702 = vst.msk [vmem:[#allocation4 + $0x88] sm:$0x3] %vm1854, 0.0
      %3703 = vst.msk [vmem:[#allocation4 + $0x90] sm:$0xff] %vm1851, 0.0
      %3704 = vst.msk [vmem:[#allocation4 + $0x98] sm:$0xff] %vm1851, 0.0
      %3705 = vst.msk [vmem:[#allocation4 + $0xa0] sm:$0x3] %vm1854, 0.0
      %3706 = vst.msk [vmem:[#allocation4 + $0xa8] sm:$0xff] %vm1851, 0.0
      %3707 = vst.msk [vmem:[#allocation4 + $0xb0] sm:$0xff] %vm1851, 0.0
      %3708 = vst.msk [vmem:[#allocation4 + $0xb8] sm:$0x3] %vm1854, 0.0
      %3709 = vst.msk [vmem:[#allocation4 + $0xc0] sm:$0xff] %vm1851, 0.0
      %3710 = vst.msk [vmem:[#allocation4 + $0xc8] sm:$0xff] %vm1851, 0.0
      %3711 = vst.msk [vmem:[#allocation4 + $0xd0] sm:$0x3] %vm1854, 0.0
      %3712 = vst.msk [vmem:[#allocation4 + $0xd8] sm:$0xff] %vm1851, 0.0
      %3713 = vst.msk [vmem:[#allocation4 + $0xe0] sm:$0xff] %vm1851, 0.0
      %3714 = vst.msk [vmem:[#allocation4 + $0xe8] sm:$0x3] %vm1854, 0.0
      %3715 = vst.msk [vmem:[#allocation4 + $0xf0] sm:$0xff] %vm1851, 0.0
      %3716 = vst.msk [vmem:[#allocation4 + $0xf8] sm:$0xff] %vm1851, 0.0
      %3717 = vst.msk [vmem:[#allocation4 + $0x100] sm:$0x3] %vm1854, 0.0
      %3718 = vst.msk [vmem:[#allocation4 + $0x108] sm:$0xff] %vm1851, 0.0
      %3719 = vst.msk [vmem:[#allocation4 + $0x110] sm:$0xff] %vm1851, 0.0
      %3720 = vst.msk [vmem:[#allocation4 + $0x118] sm:$0x3] %vm1854, 0.0
      %3721 = vst.msk [vmem:[#allocation4 + $0x120] sm:$0xff] %vm1851, 0.0
      %3722 = vst.msk [vmem:[#allocation4 + $0x128] sm:$0xff] %vm1851, 0.0
      %3723 = vst.msk [vmem:[#allocation4 + $0x130] sm:$0x3] %vm1854, 0.0
      %3724 = vst.msk [vmem:[#allocation4 + $0x138] sm:$0xff] %vm1851, 0.0
      %3725 = vst.msk [vmem:[#allocation4 + $0x140] sm:$0xff] %vm1851, 0.0
      %3726 = vst.msk [vmem:[#allocation4 + $0x148] sm:$0x3] %vm1854, 0.0
      %3727 = vst.msk [vmem:[#allocation4 + $0x150] sm:$0xff] %vm1851, 0.0
      %3728 = vst.msk [vmem:[#allocation4 + $0x158] sm:$0xff] %vm1851, 0.0
      %3729 = vst.msk [vmem:[#allocation4 + $0x160] sm:$0x3] %vm1854, 0.0
      %3730 = vst.msk [vmem:[#allocation4 + $0x168] sm:$0xff] %vm1851, 0.0
      %3731 = vst.msk [vmem:[#allocation4 + $0x170] sm:$0xff] %vm1851, 0.0
      %3732 = vst.msk [vmem:[#allocation4 + $0x178] sm:$0x3] %vm1854, 0.0
      %3733 = vst.msk [vmem:[#allocation4 + $0x180] sm:$0xff] %vm1851, 0.0
      %3734 = vst.msk [vmem:[#allocation4 + $0x188] sm:$0xff] %vm1851, 0.0
      %3735 = vst.msk [vmem:[#allocation4 + $0x190] sm:$0x3] %vm1854, 0.0
      %3736 = vst.msk [vmem:[#allocation4 + $0x198] sm:$0xff] %vm1851, 0.0
      %3737 = vst.msk [vmem:[#allocation4 + $0x1a0] sm:$0xff] %vm1851, 0.0
      %3738 = vst.msk [vmem:[#allocation4 + $0x1a8] sm:$0x3] %vm1854, 0.0
      %3739 = vrot.lane.b32.xlu0 %v3493, 124
      %v3740 = vpop.permute.xlu0 %3739
      %3741 = vrot.lane.b32.xlu0 %v3494, 124
      %v3742 = vpop.permute.xlu0 %3741
      %3743 = vrot.lane.b32.xlu0 %v3495, 124
      %v3744 = vpop.permute.xlu0 %3743
      %3745 = vrot.lane.b32.xlu0 %v3496, 124
      %v3746 = vpop.permute.xlu0 %3745
      %3747 = vrot.lane.b32.xlu0 %v3497, 124
      %v3748 = vpop.permute.xlu0 %3747
      %3749 = vrot.lane.b32.xlu0 %v3498, 124
      %v3750 = vpop.permute.xlu0 %3749
      %3751 = vrot.lane.b32.xlu0 %v3499, 124
      %v3752 = vpop.permute.xlu0 %3751
      %3753 = vrot.lane.b32.xlu0 %v3500, 124
      %v3754 = vpop.permute.xlu0 %3753
      %3755 = vrot.lane.b32.xlu0 %v3501, 124
      %v3756 = vpop.permute.xlu0 %3755
      %3757 = vrot.lane.b32.xlu0 %v3502, 124
      %v3758 = vpop.permute.xlu0 %3757
      %3759 = vrot.lane.b32.xlu0 %v3503, 124
      %v3760 = vpop.permute.xlu0 %3759
      %3761 = vrot.lane.b32.xlu0 %v3504, 124
      %v3762 = vpop.permute.xlu0 %3761
      %3763 = vrot.lane.b32.xlu0 %v3505, 124
      %v3764 = vpop.permute.xlu0 %3763
      %3765 = vrot.lane.b32.xlu0 %v3506, 124
      %v3766 = vpop.permute.xlu0 %3765
      %3767 = vrot.lane.b32.xlu0 %v3507, 124
      %v3768 = vpop.permute.xlu0 %3767
      %3769 = vrot.lane.b32.xlu0 %v3508, 124
      %v3770 = vpop.permute.xlu0 %3769
      %3771 = vrot.lane.b32.xlu0 %v3509, 124
      %v3772 = vpop.permute.xlu0 %3771
      %3773 = vrot.lane.b32.xlu0 %v3510, 124
      %v3774 = vpop.permute.xlu0 %3773
      %3775 = vrot.lane.b32.xlu0 %v3511, 124
      %v3776 = vpop.permute.xlu0 %3775
      %3777 = vrot.lane.b32.xlu0 %v3512, 124
      %v3778 = vpop.permute.xlu0 %3777
      %3779 = vrot.lane.b32.xlu0 %v3513, 124
      %v3780 = vpop.permute.xlu0 %3779
      %3781 = vrot.lane.b32.xlu0 %v3514, 124
      %v3782 = vpop.permute.xlu0 %3781
      %3783 = vrot.lane.b32.xlu0 %v3515, 124
      %v3784 = vpop.permute.xlu0 %3783
      %3785 = vrot.lane.b32.xlu0 %v3516, 124
      %v3786 = vpop.permute.xlu0 %3785
      %3787 = vrot.lane.b32.xlu0 %v3517, 124
      %v3788 = vpop.permute.xlu0 %3787
      %3789 = vrot.lane.b32.xlu0 %v3518, 124
      %v3790 = vpop.permute.xlu0 %3789
      %3791 = vrot.lane.b32.xlu0 %v3519, 124
      %v3792 = vpop.permute.xlu0 %3791
      %3793 = vrot.lane.b32.xlu0 %v3520, 124
      %v3794 = vpop.permute.xlu0 %3793
      %3795 = vrot.lane.b32.xlu0 %v3521, 124
      %v3796 = vpop.permute.xlu0 %3795
      %3797 = vrot.lane.b32.xlu0 %v3522, 124
      %v3798 = vpop.permute.xlu0 %3797
      %3799 = vrot.lane.b32.xlu0 %v3523, 124
      %v3800 = vpop.permute.xlu0 %3799
      %3801 = vrot.lane.b32.xlu0 %v3524, 124
      %v3802 = vpop.permute.xlu0 %3801
      %3835 = vst.msk [vmem:[%s2035 + $0x1] sm:$0xff] %vm1851, %v3740
      %3836 = vst.msk [vmem:[%s2035 + $0x9] sm:$0xff] %vm1851, %v3742
      %3837 = vst.msk [vmem:[%s2035 + $0x19] sm:$0xff] %vm1851, %v3744
      %3838 = vst.msk [vmem:[%s2035 + $0x21] sm:$0xff] %vm1851, %v3746
      %3839 = vst.msk [vmem:[%s2035 + $0x31] sm:$0xff] %vm1851, %v3748
      %3840 = vst.msk [vmem:[%s2035 + $0x39] sm:$0xff] %vm1851, %v3750
      %3841 = vst.msk [vmem:[%s2035 + $0x49] sm:$0xff] %vm1851, %v3752
      %3842 = vst.msk [vmem:[%s2035 + $0x51] sm:$0xff] %vm1851, %v3754
      %3843 = vst.msk [vmem:[%s2035 + $0x61] sm:$0xff] %vm1851, %v3756
      %3844 = vst.msk [vmem:[%s2035 + $0x69] sm:$0xff] %vm1851, %v3758
      %3845 = vst.msk [vmem:[%s2035 + $0x79] sm:$0xff] %vm1851, %v3760
      %3846 = vst.msk [vmem:[%s2035 + $0x81] sm:$0xff] %vm1851, %v3762
      %3847 = vst.msk [vmem:[%s2035 + $0x91] sm:$0xff] %vm1851, %v3764
      %3848 = vst.msk [vmem:[%s2035 + $0x99] sm:$0xff] %vm1851, %v3766
      %3849 = vst.msk [vmem:[%s2035 + $0xa9] sm:$0xff] %vm1851, %v3768
      %3850 = vst.msk [vmem:[%s2035 + $0xb1] sm:$0xff] %vm1851, %v3770
      %3851 = vst.msk [vmem:[%s2035 + $0xc1] sm:$0xff] %vm1851, %v3772
      %3852 = vst.msk [vmem:[%s2035 + $0xc9] sm:$0xff] %vm1851, %v3774
      %3853 = vst.msk [vmem:[%s2035 + $0xd9] sm:$0xff] %vm1851, %v3776
      %3854 = vst.msk [vmem:[%s2035 + $0xe1] sm:$0xff] %vm1851, %v3778
      %3855 = vst.msk [vmem:[%s2035 + $0xf1] sm:$0xff] %vm1851, %v3780
      %3856 = vst.msk [vmem:[%s2035 + $0xf9] sm:$0xff] %vm1851, %v3782
      %3857 = vst.msk [vmem:[%s2035 + $0x109] sm:$0xff] %vm1851, %v3784
      %3858 = vst.msk [vmem:[%s2035 + $0x111] sm:$0xff] %vm1851, %v3786
      %3859 = vst.msk [vmem:[%s2035 + $0x121] sm:$0xff] %vm1851, %v3788
      %3860 = vst.msk [vmem:[%s2035 + $0x129] sm:$0xff] %vm1851, %v3790
      %3861 = vst.msk [vmem:[%s2035 + $0x139] sm:$0xff] %vm1851, %v3792
      %3862 = vst.msk [vmem:[%s2035 + $0x141] sm:$0xff] %vm1851, %v3794
      %3863 = vst.msk [vmem:[%s2035 + $0x151] sm:$0xff] %vm1851, %v3796
      %3864 = vst.msk [vmem:[%s2035 + $0x159] sm:$0xff] %vm1851, %v3798
      %3865 = vst.msk [vmem:[%s2035 + $0x169] sm:$0xff] %vm1851, %v3800
      %3866 = vst.msk [vmem:[%s2035 + $0x171] sm:$0xff] %vm1851, %v3802
      %v3867 = vld [vmem:[#allocation4] sm:$0xff]
      %v3868 = vld [vmem:[#allocation4 + $0x8] sm:$0xff]
      %v3869 = vld [vmem:[#allocation4 + $0x18] sm:$0xff]
      %v3870 = vld [vmem:[#allocation4 + $0x20] sm:$0xff]
      %v3871 = vld [vmem:[#allocation4 + $0x30] sm:$0xff]
      %v3872 = vld [vmem:[#allocation4 + $0x38] sm:$0xff]
      %v3873 = vld [vmem:[#allocation4 + $0x48] sm:$0xff]
      %v3874 = vld [vmem:[#allocation4 + $0x50] sm:$0xff]
      %v3875 = vld [vmem:[#allocation4 + $0x60] sm:$0xff]
      %v3876 = vld [vmem:[#allocation4 + $0x68] sm:$0xff]
      %v3877 = vld [vmem:[#allocation4 + $0x78] sm:$0xff]
      %v3878 = vld [vmem:[#allocation4 + $0x80] sm:$0xff]
      %v3879 = vld [vmem:[#allocation4 + $0x90] sm:$0xff]
      %v3880 = vld [vmem:[#allocation4 + $0x98] sm:$0xff]
      %v3881 = vld [vmem:[#allocation4 + $0xa8] sm:$0xff]
      %v3882 = vld [vmem:[#allocation4 + $0xb0] sm:$0xff]
      %v3883 = vld [vmem:[#allocation4 + $0xc0] sm:$0xff]
      %v3884 = vld [vmem:[#allocation4 + $0xc8] sm:$0xff]
      %v3885 = vld [vmem:[#allocation4 + $0xd8] sm:$0xff]
      %v3886 = vld [vmem:[#allocation4 + $0xe0] sm:$0xff]
      %v3887 = vld [vmem:[#allocation4 + $0xf0] sm:$0xff]
      %v3888 = vld [vmem:[#allocation4 + $0xf8] sm:$0xff]
      %v3889 = vld [vmem:[#allocation4 + $0x108] sm:$0xff]
      %v3890 = vld [vmem:[#allocation4 + $0x110] sm:$0xff]
      %v3891 = vld [vmem:[#allocation4 + $0x120] sm:$0xff]
      %v3892 = vld [vmem:[#allocation4 + $0x128] sm:$0xff]
      %v3893 = vld [vmem:[#allocation4 + $0x138] sm:$0xff]
      %v3894 = vld [vmem:[#allocation4 + $0x140] sm:$0xff]
      %v3895 = vld [vmem:[#allocation4 + $0x150] sm:$0xff]
      %v3896 = vld [vmem:[#allocation4 + $0x158] sm:$0xff]
      %v3897 = vld [vmem:[#allocation4 + $0x168] sm:$0xff]
      %v3898 = vld [vmem:[#allocation4 + $0x170] sm:$0xff]
      %v3899 = vpack.c.bf16 %v3868, %v3867
      %v3900 = vpack.c.bf16 %v3870, %v3869
      %v3901 = vpack.c.bf16 %v3872, %v3871
      %v3902 = vpack.c.bf16 %v3874, %v3873
      %v3903 = vpack.c.bf16 %v3876, %v3875
      %v3904 = vpack.c.bf16 %v3878, %v3877
      %v3905 = vpack.c.bf16 %v3880, %v3879
      %v3906 = vpack.c.bf16 %v3882, %v3881
      %v3907 = vpack.c.bf16 %v3884, %v3883
      %v3908 = vpack.c.bf16 %v3886, %v3885
      %v3909 = vpack.c.bf16 %v3888, %v3887
      %v3910 = vpack.c.bf16 %v3890, %v3889
      %v3911 = vpack.c.bf16 %v3892, %v3891
      %v3912 = vpack.c.bf16 %v3894, %v3893
      %v3913 = vpack.c.bf16 %v3896, %v3895
      %v3914 = vpack.c.bf16 %v3898, %v3897
      %3915 = vst.msk [vmem:[#allocation3] sm:$0xff] %vm1851, %v3899
      %3916 = vst.msk [vmem:[#allocation3 + $0x8] sm:$0xff] %vm1851, %v3900
      %3917 = vst.msk [vmem:[#allocation3 + $0x10] sm:$0xff] %vm1851, %v3901
      %3918 = vst.msk [vmem:[#allocation3 + $0x18] sm:$0xff] %vm1851, %v3902
      %3919 = vst.msk [vmem:[#allocation3 + $0x20] sm:$0xff] %vm1851, %v3903
      %3920 = vst.msk [vmem:[#allocation3 + $0x28] sm:$0xff] %vm1851, %v3904
      %3921 = vst.msk [vmem:[#allocation3 + $0x30] sm:$0xff] %vm1851, %v3905
      %3922 = vst.msk [vmem:[#allocation3 + $0x38] sm:$0xff] %vm1851, %v3906
      %3923 = vst.msk [vmem:[#allocation3 + $0x40] sm:$0xff] %vm1851, %v3907
      %3924 = vst.msk [vmem:[#allocation3 + $0x48] sm:$0xff] %vm1851, %v3908
      %3925 = vst.msk [vmem:[#allocation3 + $0x50] sm:$0xff] %vm1851, %v3909
      %3926 = vst.msk [vmem:[#allocation3 + $0x58] sm:$0xff] %vm1851, %v3910
      %3927 = vst.msk [vmem:[#allocation3 + $0x60] sm:$0xff] %vm1851, %v3911
      %3928 = vst.msk [vmem:[#allocation3 + $0x68] sm:$0xff] %vm1851, %v3912
      %3929 = vst.msk [vmem:[#allocation3 + $0x70] sm:$0xff] %vm1851, %v3913
      %3930 = vst.msk [vmem:[#allocation3 + $0x78] sm:$0xff] %vm1851, %v3914
      %v3931 = vld [vmem:[#allocation4 + $0x1] sm:$0xff]
      %v3932 = vld [vmem:[#allocation4 + $0x9] sm:$0xff]
      %v3933 = vld [vmem:[#allocation4 + $0x19] sm:$0xff]
      %v3934 = vld [vmem:[#allocation4 + $0x21] sm:$0xff]
      %v3935 = vld [vmem:[#allocation4 + $0x31] sm:$0xff]
      %v3936 = vld [vmem:[#allocation4 + $0x39] sm:$0xff]
      %v3937 = vld [vmem:[#allocation4 + $0x49] sm:$0xff]
      %v3938 = vld [vmem:[#allocation4 + $0x51] sm:$0xff]
      %v3939 = vld [vmem:[#allocation4 + $0x61] sm:$0xff]
      %v3940 = vld [vmem:[#allocation4 + $0x69] sm:$0xff]
      %v3941 = vld [vmem:[#allocation4 + $0x79] sm:$0xff]
      %v3942 = vld [vmem:[#allocation4 + $0x81] sm:$0xff]
      %v3943 = vld [vmem:[#allocation4 + $0x91] sm:$0xff]
      %v3944 = vld [vmem:[#allocation4 + $0x99] sm:$0xff]
      %v3945 = vld [vmem:[#allocation4 + $0xa9] sm:$0xff]
      %v3946 = vld [vmem:[#allocation4 + $0xb1] sm:$0xff]
      %v3947 = vld [vmem:[#allocation4 + $0xc1] sm:$0xff]
      %v3948 = vld [vmem:[#allocation4 + $0xc9] sm:$0xff]
      %v3949 = vld [vmem:[#allocation4 + $0xd9] sm:$0xff]
      %v3950 = vld [vmem:[#allocation4 + $0xe1] sm:$0xff]
      %v3951 = vld [vmem:[#allocation4 + $0xf1] sm:$0xff]
      %v3952 = vld [vmem:[#allocation4 + $0xf9] sm:$0xff]
      %v3953 = vld [vmem:[#allocation4 + $0x109] sm:$0xff]
      %v3954 = vld [vmem:[#allocation4 + $0x111] sm:$0xff]
      %v3955 = vld [vmem:[#allocation4 + $0x121] sm:$0xff]
      %v3956 = vld [vmem:[#allocation4 + $0x129] sm:$0xff]
      %v3957 = vld [vmem:[#allocation4 + $0x139] sm:$0xff]
      %v3958 = vld [vmem:[#allocation4 + $0x141] sm:$0xff]
      %v3959 = vld [vmem:[#allocation4 + $0x151] sm:$0xff]
      %v3960 = vld [vmem:[#allocation4 + $0x159] sm:$0xff]
      %v3961 = vld [vmem:[#allocation4 + $0x169] sm:$0xff]
      %v3962 = vld [vmem:[#allocation4 + $0x171] sm:$0xff]
      %v3963 = vpack.c.bf16 %v3932, %v3931
      %v3964 = vpack.c.bf16 %v3934, %v3933
      %v3965 = vpack.c.bf16 %v3936, %v3935
      %v3966 = vpack.c.bf16 %v3938, %v3937
      %v3967 = vpack.c.bf16 %v3940, %v3939
      %v3968 = vpack.c.bf16 %v3942, %v3941
      %v3969 = vpack.c.bf16 %v3944, %v3943
      %v3970 = vpack.c.bf16 %v3946, %v3945
      %v3971 = vpack.c.bf16 %v3948, %v3947
      %v3972 = vpack.c.bf16 %v3950, %v3949
      %v3973 = vpack.c.bf16 %v3952, %v3951
      %v3974 = vpack.c.bf16 %v3954, %v3953
      %v3975 = vpack.c.bf16 %v3956, %v3955
      %v3976 = vpack.c.bf16 %v3958, %v3957
      %v3977 = vpack.c.bf16 %v3960, %v3959
      %v3978 = vpack.c.bf16 %v3962, %v3961
      %3995 = vrot.lane.b32.xlu0 %v3963, 4
      %v3996 = vpop.permute.xlu0 %3995
      %3997 = vrot.lane.b32.xlu0 %v3964, 4
      %v3998 = vpop.permute.xlu0 %3997
      %3999 = vrot.lane.b32.xlu0 %v3965, 4
      %v4000 = vpop.permute.xlu0 %3999
      %4001 = vrot.lane.b32.xlu0 %v3966, 4
      %v4002 = vpop.permute.xlu0 %4001
      %4003 = vrot.lane.b32.xlu0 %v3967, 4
      %v4004 = vpop.permute.xlu0 %4003
      %4005 = vrot.lane.b32.xlu0 %v3968, 4
      %v4006 = vpop.permute.xlu0 %4005
      %4007 = vrot.lane.b32.xlu0 %v3969, 4
      %v4008 = vpop.permute.xlu0 %4007
      %4009 = vrot.lane.b32.xlu0 %v3970, 4
      %v4010 = vpop.permute.xlu0 %4009
      %4011 = vrot.lane.b32.xlu0 %v3971, 4
      %v4012 = vpop.permute.xlu0 %4011
      %4013 = vrot.lane.b32.xlu0 %v3972, 4
      %v4014 = vpop.permute.xlu0 %4013
      %4015 = vrot.lane.b32.xlu0 %v3973, 4
      %v4016 = vpop.permute.xlu0 %4015
      %4017 = vrot.lane.b32.xlu0 %v3974, 4
      %v4018 = vpop.permute.xlu0 %4017
      %4019 = vrot.lane.b32.xlu0 %v3975, 4
      %v4020 = vpop.permute.xlu0 %4019
      %4021 = vrot.lane.b32.xlu0 %v3976, 4
      %v4022 = vpop.permute.xlu0 %4021
      %4023 = vrot.lane.b32.xlu0 %v3977, 4
      %v4024 = vpop.permute.xlu0 %4023
      %4025 = vrot.lane.b32.xlu0 %v3978, 4
      %v4026 = vpop.permute.xlu0 %4025
      %4043 = vst.msk [vmem:[#allocation3] sm:$0xff] %vm2244, %v3996
      %4044 = vst.msk [vmem:[#allocation3 + $0x8] sm:$0xff] %vm2244, %v3998
      %4045 = vst.msk [vmem:[#allocation3 + $0x10] sm:$0xff] %vm2244, %v4000
      %4046 = vst.msk [vmem:[#allocation3 + $0x18] sm:$0xff] %vm2244, %v4002
      %4047 = vst.msk [vmem:[#allocation3 + $0x20] sm:$0xff] %vm2244, %v4004
      %4048 = vst.msk [vmem:[#allocation3 + $0x28] sm:$0xff] %vm2244, %v4006
      %4049 = vst.msk [vmem:[#allocation3 + $0x30] sm:$0xff] %vm2244, %v4008
      %4050 = vst.msk [vmem:[#allocation3 + $0x38] sm:$0xff] %vm2244, %v4010
      %4051 = vst.msk [vmem:[#allocation3 + $0x40] sm:$0xff] %vm2244, %v4012
      %4052 = vst.msk [vmem:[#allocation3 + $0x48] sm:$0xff] %vm2244, %v4014
      %4053 = vst.msk [vmem:[#allocation3 + $0x50] sm:$0xff] %vm2244, %v4016
      %4054 = vst.msk [vmem:[#allocation3 + $0x58] sm:$0xff] %vm2244, %v4018
      %4055 = vst.msk [vmem:[#allocation3 + $0x60] sm:$0xff] %vm2244, %v4020
      %4056 = vst.msk [vmem:[#allocation3 + $0x68] sm:$0xff] %vm2244, %v4022
      %4057 = vst.msk [vmem:[#allocation3 + $0x70] sm:$0xff] %vm2244, %v4024
      %4058 = vst.msk [vmem:[#allocation3 + $0x78] sm:$0xff] %vm2244, %v4026
      %v4059 = vld [vmem:[#allocation4 + $0x2] sm:$0xff]
      %v4060 = vld [vmem:[#allocation4 + $0xa] sm:$0xff]
      %v4061 = vld [vmem:[#allocation4 + $0x1a] sm:$0xff]
      %v4062 = vld [vmem:[#allocation4 + $0x22] sm:$0xff]
      %v4063 = vld [vmem:[#allocation4 + $0x32] sm:$0xff]
      %v4064 = vld [vmem:[#allocation4 + $0x3a] sm:$0xff]
      %v4065 = vld [vmem:[#allocation4 + $0x4a] sm:$0xff]
      %v4066 = vld [vmem:[#allocation4 + $0x52] sm:$0xff]
      %v4067 = vld [vmem:[#allocation4 + $0x62] sm:$0xff]
      %v4068 = vld [vmem:[#allocation4 + $0x6a] sm:$0xff]
      %v4069 = vld [vmem:[#allocation4 + $0x7a] sm:$0xff]
      %v4070 = vld [vmem:[#allocation4 + $0x82] sm:$0xff]
      %v4071 = vld [vmem:[#allocation4 + $0x92] sm:$0xff]
      %v4072 = vld [vmem:[#allocation4 + $0x9a] sm:$0xff]
      %v4073 = vld [vmem:[#allocation4 + $0xaa] sm:$0xff]
      %v4074 = vld [vmem:[#allocation4 + $0xb2] sm:$0xff]
      %v4075 = vld [vmem:[#allocation4 + $0xc2] sm:$0xff]
      %v4076 = vld [vmem:[#allocation4 + $0xca] sm:$0xff]
      %v4077 = vld [vmem:[#allocation4 + $0xda] sm:$0xff]
      %v4078 = vld [vmem:[#allocation4 + $0xe2] sm:$0xff]
      %v4079 = vld [vmem:[#allocation4 + $0xf2] sm:$0xff]
      %v4080 = vld [vmem:[#allocation4 + $0xfa] sm:$0xff]
      %v4081 = vld [vmem:[#allocation4 + $0x10a] sm:$0xff]
      %v4082 = vld [vmem:[#allocation4 + $0x112] sm:$0xff]
      %v4083 = vld [vmem:[#allocation4 + $0x122] sm:$0xff]
      %v4084 = vld [vmem:[#allocation4 + $0x12a] sm:$0xff]
      %v4085 = vld [vmem:[#allocation4 + $0x13a] sm:$0xff]
      %v4086 = vld [vmem:[#allocation4 + $0x142] sm:$0xff]
      %v4087 = vld [vmem:[#allocation4 + $0x152] sm:$0xff]
      %v4088 = vld [vmem:[#allocation4 + $0x15a] sm:$0xff]
      %v4089 = vld [vmem:[#allocation4 + $0x16a] sm:$0xff]
      %v4090 = vld [vmem:[#allocation4 + $0x172] sm:$0xff]
      %v4091 = vpack.c.bf16 %v4060, %v4059
      %v4092 = vpack.c.bf16 %v4062, %v4061
      %v4093 = vpack.c.bf16 %v4064, %v4063
      %v4094 = vpack.c.bf16 %v4066, %v4065
      %v4095 = vpack.c.bf16 %v4068, %v4067
      %v4096 = vpack.c.bf16 %v4070, %v4069
      %v4097 = vpack.c.bf16 %v4072, %v4071
      %v4098 = vpack.c.bf16 %v4074, %v4073
      %v4099 = vpack.c.bf16 %v4076, %v4075
      %v4100 = vpack.c.bf16 %v4078, %v4077
      %v4101 = vpack.c.bf16 %v4080, %v4079
      %v4102 = vpack.c.bf16 %v4082, %v4081
      %v4103 = vpack.c.bf16 %v4084, %v4083
      %v4104 = vpack.c.bf16 %v4086, %v4085
      %v4105 = vpack.c.bf16 %v4088, %v4087
      %v4106 = vpack.c.bf16 %v4090, %v4089
      %4123 = vrot.lane.b32.xlu0 %v4091, 8
      %v4124 = vpop.permute.xlu0 %4123
      %4125 = vrot.lane.b32.xlu0 %v4092, 8
      %v4126 = vpop.permute.xlu0 %4125
      %4127 = vrot.lane.b32.xlu0 %v4093, 8
      %v4128 = vpop.permute.xlu0 %4127
      %4129 = vrot.lane.b32.xlu0 %v4094, 8
      %v4130 = vpop.permute.xlu0 %4129
      %4131 = vrot.lane.b32.xlu0 %v4095, 8
      %v4132 = vpop.permute.xlu0 %4131
      %4133 = vrot.lane.b32.xlu0 %v4096, 8
      %v4134 = vpop.permute.xlu0 %4133
      %4135 = vrot.lane.b32.xlu0 %v4097, 8
      %v4136 = vpop.permute.xlu0 %4135
      %4137 = vrot.lane.b32.xlu0 %v4098, 8
      %v4138 = vpop.permute.xlu0 %4137
      %4139 = vrot.lane.b32.xlu0 %v4099, 8
      %v4140 = vpop.permute.xlu0 %4139
      %4141 = vrot.lane.b32.xlu0 %v4100, 8
      %v4142 = vpop.permute.xlu0 %4141
      %4143 = vrot.lane.b32.xlu0 %v4101, 8
      %v4144 = vpop.permute.xlu0 %4143
      %4145 = vrot.lane.b32.xlu0 %v4102, 8
      %v4146 = vpop.permute.xlu0 %4145
      %4147 = vrot.lane.b32.xlu0 %v4103, 8
      %v4148 = vpop.permute.xlu0 %4147
      %4149 = vrot.lane.b32.xlu0 %v4104, 8
      %v4150 = vpop.permute.xlu0 %4149
      %4151 = vrot.lane.b32.xlu0 %v4105, 8
      %v4152 = vpop.permute.xlu0 %4151
      %4153 = vrot.lane.b32.xlu0 %v4106, 8
      %v4154 = vpop.permute.xlu0 %4153
      %4171 = vst.msk [vmem:[#allocation3] sm:$0xff] %vm2373, %v4124
      %4172 = vst.msk [vmem:[#allocation3 + $0x8] sm:$0xff] %vm2373, %v4126
      %4173 = vst.msk [vmem:[#allocation3 + $0x10] sm:$0xff] %vm2373, %v4128
      %4174 = vst.msk [vmem:[#allocation3 + $0x18] sm:$0xff] %vm2373, %v4130
      %4175 = vst.msk [vmem:[#allocation3 + $0x20] sm:$0xff] %vm2373, %v4132
      %4176 = vst.msk [vmem:[#allocation3 + $0x28] sm:$0xff] %vm2373, %v4134
      %4177 = vst.msk [vmem:[#allocation3 + $0x30] sm:$0xff] %vm2373, %v4136
      %4178 = vst.msk [vmem:[#allocation3 + $0x38] sm:$0xff] %vm2373, %v4138
      %4179 = vst.msk [vmem:[#allocation3 + $0x40] sm:$0xff] %vm2373, %v4140
      %4180 = vst.msk [vmem:[#allocation3 + $0x48] sm:$0xff] %vm2373, %v4142
      %4181 = vst.msk [vmem:[#allocation3 + $0x50] sm:$0xff] %vm2373, %v4144
      %4182 = vst.msk [vmem:[#allocation3 + $0x58] sm:$0xff] %vm2373, %v4146
      %4183 = vst.msk [vmem:[#allocation3 + $0x60] sm:$0xff] %vm2373, %v4148
      %4184 = vst.msk [vmem:[#allocation3 + $0x68] sm:$0xff] %vm2373, %v4150
      %4185 = vst.msk [vmem:[#allocation3 + $0x70] sm:$0xff] %vm2373, %v4152
      %4186 = vst.msk [vmem:[#allocation3 + $0x78] sm:$0xff] %vm2373, %v4154
      %v4187 = vld [vmem:[%s2035] sm:$0xff]
      %v4188 = vld [vmem:[%s2035 + $0x8] sm:$0xff]
      %v4189 = vld [vmem:[%s2035 + $0x18] sm:$0xff]
      %v4190 = vld [vmem:[%s2035 + $0x20] sm:$0xff]
      %v4191 = vld [vmem:[%s2035 + $0x30] sm:$0xff]
      %v4192 = vld [vmem:[%s2035 + $0x38] sm:$0xff]
      %v4193 = vld [vmem:[%s2035 + $0x48] sm:$0xff]
      %v4194 = vld [vmem:[%s2035 + $0x50] sm:$0xff]
      %v4195 = vld [vmem:[%s2035 + $0x60] sm:$0xff]
      %v4196 = vld [vmem:[%s2035 + $0x68] sm:$0xff]
      %v4197 = vld [vmem:[%s2035 + $0x78] sm:$0xff]
      %v4198 = vld [vmem:[%s2035 + $0x80] sm:$0xff]
      %v4199 = vld [vmem:[%s2035 + $0x90] sm:$0xff]
      %v4200 = vld [vmem:[%s2035 + $0x98] sm:$0xff]
      %v4201 = vld [vmem:[%s2035 + $0xa8] sm:$0xff]
      %v4202 = vld [vmem:[%s2035 + $0xb0] sm:$0xff]
      %v4203 = vld [vmem:[%s2035 + $0xc0] sm:$0xff]
      %v4204 = vld [vmem:[%s2035 + $0xc8] sm:$0xff]
      %v4205 = vld [vmem:[%s2035 + $0xd8] sm:$0xff]
      %v4206 = vld [vmem:[%s2035 + $0xe0] sm:$0xff]
      %v4207 = vld [vmem:[%s2035 + $0xf0] sm:$0xff]
      %v4208 = vld [vmem:[%s2035 + $0xf8] sm:$0xff]
      %v4209 = vld [vmem:[%s2035 + $0x108] sm:$0xff]
      %v4210 = vld [vmem:[%s2035 + $0x110] sm:$0xff]
      %v4211 = vld [vmem:[%s2035 + $0x120] sm:$0xff]
      %v4212 = vld [vmem:[%s2035 + $0x128] sm:$0xff]
      %v4213 = vld [vmem:[%s2035 + $0x138] sm:$0xff]
      %v4214 = vld [vmem:[%s2035 + $0x140] sm:$0xff]
      %v4215 = vld [vmem:[%s2035 + $0x150] sm:$0xff]
      %v4216 = vld [vmem:[%s2035 + $0x158] sm:$0xff]
      %v4217 = vld [vmem:[%s2035 + $0x168] sm:$0xff]
      %v4218 = vld [vmem:[%s2035 + $0x170] sm:$0xff]
      %v4219 = vpack.c.bf16 %v4188, %v4187
      %v4220 = vpack.c.bf16 %v4190, %v4189
      %v4221 = vpack.c.bf16 %v4192, %v4191
      %v4222 = vpack.c.bf16 %v4194, %v4193
      %v4223 = vpack.c.bf16 %v4196, %v4195
      %v4224 = vpack.c.bf16 %v4198, %v4197
      %v4225 = vpack.c.bf16 %v4200, %v4199
      %v4226 = vpack.c.bf16 %v4202, %v4201
      %v4227 = vpack.c.bf16 %v4204, %v4203
      %v4228 = vpack.c.bf16 %v4206, %v4205
      %v4229 = vpack.c.bf16 %v4208, %v4207
      %v4230 = vpack.c.bf16 %v4210, %v4209
      %v4231 = vpack.c.bf16 %v4212, %v4211
      %v4232 = vpack.c.bf16 %v4214, %v4213
      %v4233 = vpack.c.bf16 %v4216, %v4215
      %v4234 = vpack.c.bf16 %v4218, %v4217
      %4251 = vrot.lane.b32.xlu0 %v4219, 12
      %v4252 = vpop.permute.xlu0 %4251
      %4253 = vrot.lane.b32.xlu0 %v4220, 12
      %v4254 = vpop.permute.xlu0 %4253
      %4255 = vrot.lane.b32.xlu0 %v4221, 12
      %v4256 = vpop.permute.xlu0 %4255
      %4257 = vrot.lane.b32.xlu0 %v4222, 12
      %v4258 = vpop.permute.xlu0 %4257
      %4259 = vrot.lane.b32.xlu0 %v4223, 12
      %v4260 = vpop.permute.xlu0 %4259
      %4261 = vrot.lane.b32.xlu0 %v4224, 12
      %v4262 = vpop.permute.xlu0 %4261
      %4263 = vrot.lane.b32.xlu0 %v4225, 12
      %v4264 = vpop.permute.xlu0 %4263
      %4265 = vrot.lane.b32.xlu0 %v4226, 12
      %v4266 = vpop.permute.xlu0 %4265
      %4267 = vrot.lane.b32.xlu0 %v4227, 12
      %v4268 = vpop.permute.xlu0 %4267
      %4269 = vrot.lane.b32.xlu0 %v4228, 12
      %v4270 = vpop.permute.xlu0 %4269
      %4271 = vrot.lane.b32.xlu0 %v4229, 12
      %v4272 = vpop.permute.xlu0 %4271
      %4273 = vrot.lane.b32.xlu0 %v4230, 12
      %v4274 = vpop.permute.xlu0 %4273
      %4275 = vrot.lane.b32.xlu0 %v4231, 12
      %v4276 = vpop.permute.xlu0 %4275
      %4277 = vrot.lane.b32.xlu0 %v4232, 12
      %v4278 = vpop.permute.xlu0 %4277
      %4279 = vrot.lane.b32.xlu0 %v4233, 12
      %v4280 = vpop.permute.xlu0 %4279
      %4281 = vrot.lane.b32.xlu0 %v4234, 12
      %v4282 = vpop.permute.xlu0 %4281
      %4299 = vst.msk [vmem:[#allocation3] sm:$0xff] %vm2502, %v4252
      %4300 = vst.msk [vmem:[#allocation3 + $0x8] sm:$0xff] %vm2502, %v4254
      %4301 = vst.msk [vmem:[#allocation3 + $0x10] sm:$0xff] %vm2502, %v4256
      %4302 = vst.msk [vmem:[#allocation3 + $0x18] sm:$0xff] %vm2502, %v4258
      %4303 = vst.msk [vmem:[#allocation3 + $0x20] sm:$0xff] %vm2502, %v4260
      %4304 = vst.msk [vmem:[#allocation3 + $0x28] sm:$0xff] %vm2502, %v4262
      %4305 = vst.msk [vmem:[#allocation3 + $0x30] sm:$0xff] %vm2502, %v4264
      %4306 = vst.msk [vmem:[#allocation3 + $0x38] sm:$0xff] %vm2502, %v4266
      %4307 = vst.msk [vmem:[#allocation3 + $0x40] sm:$0xff] %vm2502, %v4268
      %4308 = vst.msk [vmem:[#allocation3 + $0x48] sm:$0xff] %vm2502, %v4270
      %4309 = vst.msk [vmem:[#allocation3 + $0x50] sm:$0xff] %vm2502, %v4272
      %4310 = vst.msk [vmem:[#allocation3 + $0x58] sm:$0xff] %vm2502, %v4274
      %4311 = vst.msk [vmem:[#allocation3 + $0x60] sm:$0xff] %vm2502, %v4276
      %4312 = vst.msk [vmem:[#allocation3 + $0x68] sm:$0xff] %vm2502, %v4278
      %4313 = vst.msk [vmem:[#allocation3 + $0x70] sm:$0xff] %vm2502, %v4280
      %4314 = vst.msk [vmem:[#allocation3 + $0x78] sm:$0xff] %vm2502, %v4282
      %v4315 = vld [vmem:[%s2035 + $0x1] sm:$0xff]
      %v4316 = vld [vmem:[%s2035 + $0x9] sm:$0xff]
      %v4317 = vld [vmem:[%s2035 + $0x19] sm:$0xff]
      %v4318 = vld [vmem:[%s2035 + $0x21] sm:$0xff]
      %v4319 = vld [vmem:[%s2035 + $0x31] sm:$0xff]
      %v4320 = vld [vmem:[%s2035 + $0x39] sm:$0xff]
      %v4321 = vld [vmem:[%s2035 + $0x49] sm:$0xff]
      %v4322 = vld [vmem:[%s2035 + $0x51] sm:$0xff]
      %v4323 = vld [vmem:[%s2035 + $0x61] sm:$0xff]
      %v4324 = vld [vmem:[%s2035 + $0x69] sm:$0xff]
      %v4325 = vld [vmem:[%s2035 + $0x79] sm:$0xff]
      %v4326 = vld [vmem:[%s2035 + $0x81] sm:$0xff]
      %v4327 = vld [vmem:[%s2035 + $0x91] sm:$0xff]
      %v4328 = vld [vmem:[%s2035 + $0x99] sm:$0xff]
      %v4329 = vld [vmem:[%s2035 + $0xa9] sm:$0xff]
      %v4330 = vld [vmem:[%s2035 + $0xb1] sm:$0xff]
      %v4331 = vld [vmem:[%s2035 + $0xc1] sm:$0xff]
      %v4332 = vld [vmem:[%s2035 + $0xc9] sm:$0xff]
      %v4333 = vld [vmem:[%s2035 + $0xd9] sm:$0xff]
      %v4334 = vld [vmem:[%s2035 + $0xe1] sm:$0xff]
      %v4335 = vld [vmem:[%s2035 + $0xf1] sm:$0xff]
      %v4336 = vld [vmem:[%s2035 + $0xf9] sm:$0xff]
      %v4337 = vld [vmem:[%s2035 + $0x109] sm:$0xff]
      %v4338 = vld [vmem:[%s2035 + $0x111] sm:$0xff]
      %v4339 = vld [vmem:[%s2035 + $0x121] sm:$0xff]
      %v4340 = vld [vmem:[%s2035 + $0x129] sm:$0xff]
      %v4341 = vld [vmem:[%s2035 + $0x139] sm:$0xff]
      %v4342 = vld [vmem:[%s2035 + $0x141] sm:$0xff]
      %v4343 = vld [vmem:[%s2035 + $0x151] sm:$0xff]
      %v4344 = vld [vmem:[%s2035 + $0x159] sm:$0xff]
      %v4345 = vld [vmem:[%s2035 + $0x169] sm:$0xff]
      %v4346 = vld [vmem:[%s2035 + $0x171] sm:$0xff]
      %v4347 = vpack.c.bf16 %v4316, %v4315
      %v4348 = vpack.c.bf16 %v4318, %v4317
      %v4349 = vpack.c.bf16 %v4320, %v4319
      %v4350 = vpack.c.bf16 %v4322, %v4321
      %v4351 = vpack.c.bf16 %v4324, %v4323
      %v4352 = vpack.c.bf16 %v4326, %v4325
      %v4353 = vpack.c.bf16 %v4328, %v4327
      %v4354 = vpack.c.bf16 %v4330, %v4329
      %v4355 = vpack.c.bf16 %v4332, %v4331
      %v4356 = vpack.c.bf16 %v4334, %v4333
      %v4357 = vpack.c.bf16 %v4336, %v4335
      %v4358 = vpack.c.bf16 %v4338, %v4337
      %v4359 = vpack.c.bf16 %v4340, %v4339
      %v4360 = vpack.c.bf16 %v4342, %v4341
      %v4361 = vpack.c.bf16 %v4344, %v4343
      %v4362 = vpack.c.bf16 %v4346, %v4345
      %4379 = vrot.lane.b32.xlu0 %v4347, 16
      %v4380 = vpop.permute.xlu0 %4379
      %4381 = vrot.lane.b32.xlu0 %v4348, 16
      %v4382 = vpop.permute.xlu0 %4381
      %4383 = vrot.lane.b32.xlu0 %v4349, 16
      %v4384 = vpop.permute.xlu0 %4383
      %4385 = vrot.lane.b32.xlu0 %v4350, 16
      %v4386 = vpop.permute.xlu0 %4385
      %4387 = vrot.lane.b32.xlu0 %v4351, 16
      %v4388 = vpop.permute.xlu0 %4387
      %4389 = vrot.lane.b32.xlu0 %v4352, 16
      %v4390 = vpop.permute.xlu0 %4389
      %4391 = vrot.lane.b32.xlu0 %v4353, 16
      %v4392 = vpop.permute.xlu0 %4391
      %4393 = vrot.lane.b32.xlu0 %v4354, 16
      %v4394 = vpop.permute.xlu0 %4393
      %4395 = vrot.lane.b32.xlu0 %v4355, 16
      %v4396 = vpop.permute.xlu0 %4395
      %4397 = vrot.lane.b32.xlu0 %v4356, 16
      %v4398 = vpop.permute.xlu0 %4397
      %4399 = vrot.lane.b32.xlu0 %v4357, 16
      %v4400 = vpop.permute.xlu0 %4399
      %4401 = vrot.lane.b32.xlu0 %v4358, 16
      %v4402 = vpop.permute.xlu0 %4401
      %4403 = vrot.lane.b32.xlu0 %v4359, 16
      %v4404 = vpop.permute.xlu0 %4403
      %4405 = vrot.lane.b32.xlu0 %v4360, 16
      %v4406 = vpop.permute.xlu0 %4405
      %4407 = vrot.lane.b32.xlu0 %v4361, 16
      %v4408 = vpop.permute.xlu0 %4407
      %4409 = vrot.lane.b32.xlu0 %v4362, 16
      %v4410 = vpop.permute.xlu0 %4409
      %4427 = vst.msk [vmem:[#allocation3] sm:$0xff] %vm2631, %v4380
      %4428 = vst.msk [vmem:[#allocation3 + $0x8] sm:$0xff] %vm2631, %v4382
      %4429 = vst.msk [vmem:[#allocation3 + $0x10] sm:$0xff] %vm2631, %v4384
      %4430 = vst.msk [vmem:[#allocation3 + $0x18] sm:$0xff] %vm2631, %v4386
      %4431 = vst.msk [vmem:[#allocation3 + $0x20] sm:$0xff] %vm2631, %v4388
      %4432 = vst.msk [vmem:[#allocation3 + $0x28] sm:$0xff] %vm2631, %v4390
      %4433 = vst.msk [vmem:[#allocation3 + $0x30] sm:$0xff] %vm2631, %v4392
      %4434 = vst.msk [vmem:[#allocation3 + $0x38] sm:$0xff] %vm2631, %v4394
      %4435 = vst.msk [vmem:[#allocation3 + $0x40] sm:$0xff] %vm2631, %v4396
      %4436 = vst.msk [vmem:[#allocation3 + $0x48] sm:$0xff] %vm2631, %v4398
      %4437 = vst.msk [vmem:[#allocation3 + $0x50] sm:$0xff] %vm2631, %v4400
      %4438 = vst.msk [vmem:[#allocation3 + $0x58] sm:$0xff] %vm2631, %v4402
      %4439 = vst.msk [vmem:[#allocation3 + $0x60] sm:$0xff] %vm2631, %v4404
      %4440 = vst.msk [vmem:[#allocation3 + $0x68] sm:$0xff] %vm2631, %v4406
      %4441 = vst.msk [vmem:[#allocation3 + $0x70] sm:$0xff] %vm2631, %v4408
      %4442 = vst.msk [vmem:[#allocation3 + $0x78] sm:$0xff] %vm2631, %v4410
      %v4443 = vld [vmem:[%s2035 + $0x2] sm:$0xff]
      %v4444 = vld [vmem:[%s2035 + $0xa] sm:$0xff]
      %v4445 = vld [vmem:[%s2035 + $0x1a] sm:$0xff]
      %v4446 = vld [vmem:[%s2035 + $0x22] sm:$0xff]
      %v4447 = vld [vmem:[%s2035 + $0x32] sm:$0xff]
      %v4448 = vld [vmem:[%s2035 + $0x3a] sm:$0xff]
      %v4449 = vld [vmem:[%s2035 + $0x4a] sm:$0xff]
      %v4450 = vld [vmem:[%s2035 + $0x52] sm:$0xff]
      %v4451 = vld [vmem:[%s2035 + $0x62] sm:$0xff]
      %v4452 = vld [vmem:[%s2035 + $0x6a] sm:$0xff]
      %v4453 = vld [vmem:[%s2035 + $0x7a] sm:$0xff]
      %v4454 = vld [vmem:[%s2035 + $0x82] sm:$0xff]
      %v4455 = vld [vmem:[%s2035 + $0x92] sm:$0xff]
      %v4456 = vld [vmem:[%s2035 + $0x9a] sm:$0xff]
      %v4457 = vld [vmem:[%s2035 + $0xaa] sm:$0xff]
      %v4458 = vld [vmem:[%s2035 + $0xb2] sm:$0xff]
      %v4459 = vld [vmem:[%s2035 + $0xc2] sm:$0xff]
      %v4460 = vld [vmem:[%s2035 + $0xca] sm:$0xff]
      %v4461 = vld [vmem:[%s2035 + $0xda] sm:$0xff]
      %v4462 = vld [vmem:[%s2035 + $0xe2] sm:$0xff]
      %v4463 = vld [vmem:[%s2035 + $0xf2] sm:$0xff]
      %v4464 = vld [vmem:[%s2035 + $0xfa] sm:$0xff]
      %v4465 = vld [vmem:[%s2035 + $0x10a] sm:$0xff]
      %v4466 = vld [vmem:[%s2035 + $0x112] sm:$0xff]
      %v4467 = vld [vmem:[%s2035 + $0x122] sm:$0xff]
      %v4468 = vld [vmem:[%s2035 + $0x12a] sm:$0xff]
      %v4469 = vld [vmem:[%s2035 + $0x13a] sm:$0xff]
      %v4470 = vld [vmem:[%s2035 + $0x142] sm:$0xff]
      %v4471 = vld [vmem:[%s2035 + $0x152] sm:$0xff]
      %v4472 = vld [vmem:[%s2035 + $0x15a] sm:$0xff]
      %v4473 = vld [vmem:[%s2035 + $0x16a] sm:$0xff]
      %v4474 = vld [vmem:[%s2035 + $0x172] sm:$0xff]
      %v4475 = vpack.c.bf16 %v4444, %v4443
      %v4476 = vpack.c.bf16 %v4446, %v4445
      %v4477 = vpack.c.bf16 %v4448, %v4447
      %v4478 = vpack.c.bf16 %v4450, %v4449
      %v4479 = vpack.c.bf16 %v4452, %v4451
      %v4480 = vpack.c.bf16 %v4454, %v4453
      %v4481 = vpack.c.bf16 %v4456, %v4455
      %v4482 = vpack.c.bf16 %v4458, %v4457
      %v4483 = vpack.c.bf16 %v4460, %v4459
      %v4484 = vpack.c.bf16 %v4462, %v4461
      %v4485 = vpack.c.bf16 %v4464, %v4463
      %v4486 = vpack.c.bf16 %v4466, %v4465
      %v4487 = vpack.c.bf16 %v4468, %v4467
      %v4488 = vpack.c.bf16 %v4470, %v4469
      %v4489 = vpack.c.bf16 %v4472, %v4471
      %v4490 = vpack.c.bf16 %v4474, %v4473
      %4507 = vrot.lane.b32.xlu0 %v4475, 20
      %v4508 = vpop.permute.xlu0 %4507
      %4509 = vrot.lane.b32.xlu0 %v4476, 20
      %v4510 = vpop.permute.xlu0 %4509
      %4511 = vrot.lane.b32.xlu0 %v4477, 20
      %v4512 = vpop.permute.xlu0 %4511
      %4513 = vrot.lane.b32.xlu0 %v4478, 20
      %v4514 = vpop.permute.xlu0 %4513
      %4515 = vrot.lane.b32.xlu0 %v4479, 20
      %v4516 = vpop.permute.xlu0 %4515
      %4517 = vrot.lane.b32.xlu0 %v4480, 20
      %v4518 = vpop.permute.xlu0 %4517
      %4519 = vrot.lane.b32.xlu0 %v4481, 20
      %v4520 = vpop.permute.xlu0 %4519
      %4521 = vrot.lane.b32.xlu0 %v4482, 20
      %v4522 = vpop.permute.xlu0 %4521
      %4523 = vrot.lane.b32.xlu0 %v4483, 20
      %v4524 = vpop.permute.xlu0 %4523
      %4525 = vrot.lane.b32.xlu0 %v4484, 20
      %v4526 = vpop.permute.xlu0 %4525
      %4527 = vrot.lane.b32.xlu0 %v4485, 20
      %v4528 = vpop.permute.xlu0 %4527
      %4529 = vrot.lane.b32.xlu0 %v4486, 20
      %v4530 = vpop.permute.xlu0 %4529
      %4531 = vrot.lane.b32.xlu0 %v4487, 20
      %v4532 = vpop.permute.xlu0 %4531
      %4533 = vrot.lane.b32.xlu0 %v4488, 20
      %v4534 = vpop.permute.xlu0 %4533
      %4535 = vrot.lane.b32.xlu0 %v4489, 20
      %v4536 = vpop.permute.xlu0 %4535
      %4537 = vrot.lane.b32.xlu0 %v4490, 20
      %v4538 = vpop.permute.xlu0 %4537
      %4555 = vst.msk [vmem:[#allocation3] sm:$0xff] %vm2760, %v4508
      %4556 = vst.msk [vmem:[#allocation3 + $0x8] sm:$0xff] %vm2760, %v4510
      %4557 = vst.msk [vmem:[#allocation3 + $0x10] sm:$0xff] %vm2760, %v4512
      %4558 = vst.msk [vmem:[#allocation3 + $0x18] sm:$0xff] %vm2760, %v4514
      %4559 = vst.msk [vmem:[#allocation3 + $0x20] sm:$0xff] %vm2760, %v4516
      %4560 = vst.msk [vmem:[#allocation3 + $0x28] sm:$0xff] %vm2760, %v4518
      %4561 = vst.msk [vmem:[#allocation3 + $0x30] sm:$0xff] %vm2760, %v4520
      %4562 = vst.msk [vmem:[#allocation3 + $0x38] sm:$0xff] %vm2760, %v4522
      %4563 = vst.msk [vmem:[#allocation3 + $0x40] sm:$0xff] %vm2760, %v4524
      %4564 = vst.msk [vmem:[#allocation3 + $0x48] sm:$0xff] %vm2760, %v4526
      %4565 = vst.msk [vmem:[#allocation3 + $0x50] sm:$0xff] %vm2760, %v4528
      %4566 = vst.msk [vmem:[#allocation3 + $0x58] sm:$0xff] %vm2760, %v4530
      %4567 = vst.msk [vmem:[#allocation3 + $0x60] sm:$0xff] %vm2760, %v4532
      %4568 = vst.msk [vmem:[#allocation3 + $0x68] sm:$0xff] %vm2760, %v4534
      %4569 = vst.msk [vmem:[#allocation3 + $0x70] sm:$0xff] %vm2760, %v4536
      %4570 = vst.msk [vmem:[#allocation3 + $0x78] sm:$0xff] %vm2760, %v4538
      %v4571 = vld [vmem:[%s2777] sm:$0xff]
      %v4572 = vld [vmem:[%s2777 + $0x8] sm:$0xff]
      %v4573 = vld [vmem:[%s2777 + $0x18] sm:$0xff]
      %v4574 = vld [vmem:[%s2777 + $0x20] sm:$0xff]
      %v4575 = vld [vmem:[%s2777 + $0x30] sm:$0xff]
      %v4576 = vld [vmem:[%s2777 + $0x38] sm:$0xff]
      %v4577 = vld [vmem:[%s2777 + $0x48] sm:$0xff]
      %v4578 = vld [vmem:[%s2777 + $0x50] sm:$0xff]
      %v4579 = vld [vmem:[%s2777 + $0x60] sm:$0xff]
      %v4580 = vld [vmem:[%s2777 + $0x68] sm:$0xff]
      %v4581 = vld [vmem:[%s2777 + $0x78] sm:$0xff]
      %v4582 = vld [vmem:[%s2777 + $0x80] sm:$0xff]
      %v4583 = vld [vmem:[%s2777 + $0x90] sm:$0xff]
      %v4584 = vld [vmem:[%s2777 + $0x98] sm:$0xff]
      %v4585 = vld [vmem:[%s2777 + $0xa8] sm:$0xff]
      %v4586 = vld [vmem:[%s2777 + $0xb0] sm:$0xff]
      %v4587 = vld [vmem:[%s2777 + $0xc0] sm:$0xff]
      %v4588 = vld [vmem:[%s2777 + $0xc8] sm:$0xff]
      %v4589 = vld [vmem:[%s2777 + $0xd8] sm:$0xff]
      %v4590 = vld [vmem:[%s2777 + $0xe0] sm:$0xff]
      %v4591 = vld [vmem:[%s2777 + $0xf0] sm:$0xff]
      %v4592 = vld [vmem:[%s2777 + $0xf8] sm:$0xff]
      %v4593 = vld [vmem:[%s2777 + $0x108] sm:$0xff]
      %v4594 = vld [vmem:[%s2777 + $0x110] sm:$0xff]
      %v4595 = vld [vmem:[%s2777 + $0x120] sm:$0xff]
      %v4596 = vld [vmem:[%s2777 + $0x128] sm:$0xff]
      %v4597 = vld [vmem:[%s2777 + $0x138] sm:$0xff]
      %v4598 = vld [vmem:[%s2777 + $0x140] sm:$0xff]
      %v4599 = vld [vmem:[%s2777 + $0x150] sm:$0xff]
      %v4600 = vld [vmem:[%s2777 + $0x158] sm:$0xff]
      %v4601 = vld [vmem:[%s2777 + $0x168] sm:$0xff]
      %v4602 = vld [vmem:[%s2777 + $0x170] sm:$0xff]
      %v4603 = vpack.c.bf16 %v4572, %v4571
      %v4604 = vpack.c.bf16 %v4574, %v4573
      %v4605 = vpack.c.bf16 %v4576, %v4575
      %v4606 = vpack.c.bf16 %v4578, %v4577
      %v4607 = vpack.c.bf16 %v4580, %v4579
      %v4608 = vpack.c.bf16 %v4582, %v4581
      %v4609 = vpack.c.bf16 %v4584, %v4583
      %v4610 = vpack.c.bf16 %v4586, %v4585
      %v4611 = vpack.c.bf16 %v4588, %v4587
      %v4612 = vpack.c.bf16 %v4590, %v4589
      %v4613 = vpack.c.bf16 %v4592, %v4591
      %v4614 = vpack.c.bf16 %v4594, %v4593
      %v4615 = vpack.c.bf16 %v4596, %v4595
      %v4616 = vpack.c.bf16 %v4598, %v4597
      %v4617 = vpack.c.bf16 %v4600, %v4599
      %v4618 = vpack.c.bf16 %v4602, %v4601
      %4635 = vrot.lane.b32.xlu0 %v4603, 24
      %v4636 = vpop.permute.xlu0 %4635
      %4637 = vrot.lane.b32.xlu0 %v4604, 24
      %v4638 = vpop.permute.xlu0 %4637
      %4639 = vrot.lane.b32.xlu0 %v4605, 24
      %v4640 = vpop.permute.xlu0 %4639
      %4641 = vrot.lane.b32.xlu0 %v4606, 24
      %v4642 = vpop.permute.xlu0 %4641
      %4643 = vrot.lane.b32.xlu0 %v4607, 24
      %v4644 = vpop.permute.xlu0 %4643
      %4645 = vrot.lane.b32.xlu0 %v4608, 24
      %v4646 = vpop.permute.xlu0 %4645
      %4647 = vrot.lane.b32.xlu0 %v4609, 24
      %v4648 = vpop.permute.xlu0 %4647
      %4649 = vrot.lane.b32.xlu0 %v4610, 24
      %v4650 = vpop.permute.xlu0 %4649
      %4651 = vrot.lane.b32.xlu0 %v4611, 24
      %v4652 = vpop.permute.xlu0 %4651
      %4653 = vrot.lane.b32.xlu0 %v4612, 24
      %v4654 = vpop.permute.xlu0 %4653
      %4655 = vrot.lane.b32.xlu0 %v4613, 24
      %v4656 = vpop.permute.xlu0 %4655
      %4657 = vrot.lane.b32.xlu0 %v4614, 24
      %v4658 = vpop.permute.xlu0 %4657
      %4659 = vrot.lane.b32.xlu0 %v4615, 24
      %v4660 = vpop.permute.xlu0 %4659
      %4661 = vrot.lane.b32.xlu0 %v4616, 24
      %v4662 = vpop.permute.xlu0 %4661
      %4663 = vrot.lane.b32.xlu0 %v4617, 24
      %v4664 = vpop.permute.xlu0 %4663
      %4665 = vrot.lane.b32.xlu0 %v4618, 24
      %v4666 = vpop.permute.xlu0 %4665
      %4683 = vst.msk [vmem:[#allocation3] sm:$0xff] %vm2890, %v4636
      %4684 = vst.msk [vmem:[#allocation3 + $0x8] sm:$0xff] %vm2890, %v4638
      %4685 = vst.msk [vmem:[#allocation3 + $0x10] sm:$0xff] %vm2890, %v4640
      %4686 = vst.msk [vmem:[#allocation3 + $0x18] sm:$0xff] %vm2890, %v4642
      %4687 = vst.msk [vmem:[#allocation3 + $0x20] sm:$0xff] %vm2890, %v4644
      %4688 = vst.msk [vmem:[#allocation3 + $0x28] sm:$0xff] %vm2890, %v4646
      %4689 = vst.msk [vmem:[#allocation3 + $0x30] sm:$0xff] %vm2890, %v4648
      %4690 = vst.msk [vmem:[#allocation3 + $0x38] sm:$0xff] %vm2890, %v4650
      %4691 = vst.msk [vmem:[#allocation3 + $0x40] sm:$0xff] %vm2890, %v4652
      %4692 = vst.msk [vmem:[#allocation3 + $0x48] sm:$0xff] %vm2890, %v4654
      %4693 = vst.msk [vmem:[#allocation3 + $0x50] sm:$0xff] %vm2890, %v4656
      %4694 = vst.msk [vmem:[#allocation3 + $0x58] sm:$0xff] %vm2890, %v4658
      %4695 = vst.msk [vmem:[#allocation3 + $0x60] sm:$0xff] %vm2890, %v4660
      %4696 = vst.msk [vmem:[#allocation3 + $0x68] sm:$0xff] %vm2890, %v4662
      %4697 = vst.msk [vmem:[#allocation3 + $0x70] sm:$0xff] %vm2890, %v4664
      %4698 = vst.msk [vmem:[#allocation3 + $0x78] sm:$0xff] %vm2890, %v4666
      %v4699 = vld [vmem:[%s2777 + $0x1] sm:$0xff]
      %v4700 = vld [vmem:[%s2777 + $0x9] sm:$0xff]
      %v4701 = vld [vmem:[%s2777 + $0x19] sm:$0xff]
      %v4702 = vld [vmem:[%s2777 + $0x21] sm:$0xff]
      %v4703 = vld [vmem:[%s2777 + $0x31] sm:$0xff]
      %v4704 = vld [vmem:[%s2777 + $0x39] sm:$0xff]
      %v4705 = vld [vmem:[%s2777 + $0x49] sm:$0xff]
      %v4706 = vld [vmem:[%s2777 + $0x51] sm:$0xff]
      %v4707 = vld [vmem:[%s2777 + $0x61] sm:$0xff]
      %v4708 = vld [vmem:[%s2777 + $0x69] sm:$0xff]
      %v4709 = vld [vmem:[%s2777 + $0x79] sm:$0xff]
      %v4710 = vld [vmem:[%s2777 + $0x81] sm:$0xff]
      %v4711 = vld [vmem:[%s2777 + $0x91] sm:$0xff]
      %v4712 = vld [vmem:[%s2777 + $0x99] sm:$0xff]
      %v4713 = vld [vmem:[%s2777 + $0xa9] sm:$0xff]
      %v4714 = vld [vmem:[%s2777 + $0xb1] sm:$0xff]
      %v4715 = vld [vmem:[%s2777 + $0xc1] sm:$0xff]
      %v4716 = vld [vmem:[%s2777 + $0xc9] sm:$0xff]
      %v4717 = vld [vmem:[%s2777 + $0xd9] sm:$0xff]
      %v4718 = vld [vmem:[%s2777 + $0xe1] sm:$0xff]
      %v4719 = vld [vmem:[%s2777 + $0xf1] sm:$0xff]
      %v4720 = vld [vmem:[%s2777 + $0xf9] sm:$0xff]
      %v4721 = vld [vmem:[%s2777 + $0x109] sm:$0xff]
      %v4722 = vld [vmem:[%s2777 + $0x111] sm:$0xff]
      %v4723 = vld [vmem:[%s2777 + $0x121] sm:$0xff]
      %v4724 = vld [vmem:[%s2777 + $0x129] sm:$0xff]
      %v4725 = vld [vmem:[%s2777 + $0x139] sm:$0xff]
      %v4726 = vld [vmem:[%s2777 + $0x141] sm:$0xff]
      %v4727 = vld [vmem:[%s2777 + $0x151] sm:$0xff]
      %v4728 = vld [vmem:[%s2777 + $0x159] sm:$0xff]
      %v4729 = vld [vmem:[%s2777 + $0x169] sm:$0xff]
      %v4730 = vld [vmem:[%s2777 + $0x171] sm:$0xff]
      %v4731 = vpack.c.bf16 %v4700, %v4699
      %v4732 = vpack.c.bf16 %v4702, %v4701
      %v4733 = vpack.c.bf16 %v4704, %v4703
      %v4734 = vpack.c.bf16 %v4706, %v4705
      %v4735 = vpack.c.bf16 %v4708, %v4707
      %v4736 = vpack.c.bf16 %v4710, %v4709
      %v4737 = vpack.c.bf16 %v4712, %v4711
      %v4738 = vpack.c.bf16 %v4714, %v4713
      %v4739 = vpack.c.bf16 %v4716, %v4715
      %v4740 = vpack.c.bf16 %v4718, %v4717
      %v4741 = vpack.c.bf16 %v4720, %v4719
      %v4742 = vpack.c.bf16 %v4722, %v4721
      %v4743 = vpack.c.bf16 %v4724, %v4723
      %v4744 = vpack.c.bf16 %v4726, %v4725
      %v4745 = vpack.c.bf16 %v4728, %v4727
      %v4746 = vpack.c.bf16 %v4730, %v4729
      %4763 = vrot.lane.b32.xlu0 %v4731, 28
      %v4764 = vpop.permute.xlu0 %4763
      %4765 = vrot.lane.b32.xlu0 %v4732, 28
      %v4766 = vpop.permute.xlu0 %4765
      %4767 = vrot.lane.b32.xlu0 %v4733, 28
      %v4768 = vpop.permute.xlu0 %4767
      %4769 = vrot.lane.b32.xlu0 %v4734, 28
      %v4770 = vpop.permute.xlu0 %4769
      %4771 = vrot.lane.b32.xlu0 %v4735, 28
      %v4772 = vpop.permute.xlu0 %4771
      %4773 = vrot.lane.b32.xlu0 %v4736, 28
      %v4774 = vpop.permute.xlu0 %4773
      %4775 = vrot.lane.b32.xlu0 %v4737, 28
      %v4776 = vpop.permute.xlu0 %4775
      %4777 = vrot.lane.b32.xlu0 %v4738, 28
      %v4778 = vpop.permute.xlu0 %4777
      %4779 = vrot.lane.b32.xlu0 %v4739, 28
      %v4780 = vpop.permute.xlu0 %4779
      %4781 = vrot.lane.b32.xlu0 %v4740, 28
      %v4782 = vpop.permute.xlu0 %4781
      %4783 = vrot.lane.b32.xlu0 %v4741, 28
      %v4784 = vpop.permute.xlu0 %4783
      %4785 = vrot.lane.b32.xlu0 %v4742, 28
      %v4786 = vpop.permute.xlu0 %4785
      %4787 = vrot.lane.b32.xlu0 %v4743, 28
      %v4788 = vpop.permute.xlu0 %4787
      %4789 = vrot.lane.b32.xlu0 %v4744, 28
      %v4790 = vpop.permute.xlu0 %4789
      %4791 = vrot.lane.b32.xlu0 %v4745, 28
      %v4792 = vpop.permute.xlu0 %4791
      %4793 = vrot.lane.b32.xlu0 %v4746, 28
      %v4794 = vpop.permute.xlu0 %4793
      %4811 = vst.msk [vmem:[#allocation3] sm:$0xff] %vm3019, %v4764
      %4812 = vst.msk [vmem:[#allocation3 + $0x8] sm:$0xff] %vm3019, %v4766
      %4813 = vst.msk [vmem:[#allocation3 + $0x10] sm:$0xff] %vm3019, %v4768
      %4814 = vst.msk [vmem:[#allocation3 + $0x18] sm:$0xff] %vm3019, %v4770
      %4815 = vst.msk [vmem:[#allocation3 + $0x20] sm:$0xff] %vm3019, %v4772
      %4816 = vst.msk [vmem:[#allocation3 + $0x28] sm:$0xff] %vm3019, %v4774
      %4817 = vst.msk [vmem:[#allocation3 + $0x30] sm:$0xff] %vm3019, %v4776
      %4818 = vst.msk [vmem:[#allocation3 + $0x38] sm:$0xff] %vm3019, %v4778
      %4819 = vst.msk [vmem:[#allocation3 + $0x40] sm:$0xff] %vm3019, %v4780
      %4820 = vst.msk [vmem:[#allocation3 + $0x48] sm:$0xff] %vm3019, %v4782
      %4821 = vst.msk [vmem:[#allocation3 + $0x50] sm:$0xff] %vm3019, %v4784
      %4822 = vst.msk [vmem:[#allocation3 + $0x58] sm:$0xff] %vm3019, %v4786
      %4823 = vst.msk [vmem:[#allocation3 + $0x60] sm:$0xff] %vm3019, %v4788
      %4824 = vst.msk [vmem:[#allocation3 + $0x68] sm:$0xff] %vm3019, %v4790
      %4825 = vst.msk [vmem:[#allocation3 + $0x70] sm:$0xff] %vm3019, %v4792
      %4826 = vst.msk [vmem:[#allocation3 + $0x78] sm:$0xff] %vm3019, %v4794
      %v4827 = vld [vmem:[%s2777 + $0x2] sm:$0xff]
      %v4828 = vld [vmem:[%s2777 + $0xa] sm:$0xff]
      %v4829 = vld [vmem:[%s2777 + $0x1a] sm:$0xff]
      %v4830 = vld [vmem:[%s2777 + $0x22] sm:$0xff]
      %v4831 = vld [vmem:[%s2777 + $0x32] sm:$0xff]
      %v4832 = vld [vmem:[%s2777 + $0x3a] sm:$0xff]
      %v4833 = vld [vmem:[%s2777 + $0x4a] sm:$0xff]
      %v4834 = vld [vmem:[%s2777 + $0x52] sm:$0xff]
      %v4835 = vld [vmem:[%s2777 + $0x62] sm:$0xff]
      %v4836 = vld [vmem:[%s2777 + $0x6a] sm:$0xff]
      %v4837 = vld [vmem:[%s2777 + $0x7a] sm:$0xff]
      %v4838 = vld [vmem:[%s2777 + $0x82] sm:$0xff]
      %v4839 = vld [vmem:[%s2777 + $0x92] sm:$0xff]
      %v4840 = vld [vmem:[%s2777 + $0x9a] sm:$0xff]
      %v4841 = vld [vmem:[%s2777 + $0xaa] sm:$0xff]
      %v4842 = vld [vmem:[%s2777 + $0xb2] sm:$0xff]
      %v4843 = vld [vmem:[%s2777 + $0xc2] sm:$0xff]
      %v4844 = vld [vmem:[%s2777 + $0xca] sm:$0xff]
      %v4845 = vld [vmem:[%s2777 + $0xda] sm:$0xff]
      %v4846 = vld [vmem:[%s2777 + $0xe2] sm:$0xff]
      %v4847 = vld [vmem:[%s2777 + $0xf2] sm:$0xff]
      %v4848 = vld [vmem:[%s2777 + $0xfa] sm:$0xff]
      %v4849 = vld [vmem:[%s2777 + $0x10a] sm:$0xff]
      %v4850 = vld [vmem:[%s2777 + $0x112] sm:$0xff]
      %v4851 = vld [vmem:[%s2777 + $0x122] sm:$0xff]
      %v4852 = vld [vmem:[%s2777 + $0x12a] sm:$0xff]
      %v4853 = vld [vmem:[%s2777 + $0x13a] sm:$0xff]
      %v4854 = vld [vmem:[%s2777 + $0x142] sm:$0xff]
      %v4855 = vld [vmem:[%s2777 + $0x152] sm:$0xff]
      %v4856 = vld [vmem:[%s2777 + $0x15a] sm:$0xff]
      %v4857 = vld [vmem:[%s2777 + $0x16a] sm:$0xff]
      %v4858 = vld [vmem:[%s2777 + $0x172] sm:$0xff]
      %v4859 = vpack.c.bf16 %v4828, %v4827
      %v4860 = vpack.c.bf16 %v4830, %v4829
      %v4861 = vpack.c.bf16 %v4832, %v4831
      %v4862 = vpack.c.bf16 %v4834, %v4833
      %v4863 = vpack.c.bf16 %v4836, %v4835
      %v4864 = vpack.c.bf16 %v4838, %v4837
      %v4865 = vpack.c.bf16 %v4840, %v4839
      %v4866 = vpack.c.bf16 %v4842, %v4841
      %v4867 = vpack.c.bf16 %v4844, %v4843
      %v4868 = vpack.c.bf16 %v4846, %v4845
      %v4869 = vpack.c.bf16 %v4848, %v4847
      %v4870 = vpack.c.bf16 %v4850, %v4849
      %v4871 = vpack.c.bf16 %v4852, %v4851
      %v4872 = vpack.c.bf16 %v4854, %v4853
      %v4873 = vpack.c.bf16 %v4856, %v4855
      %v4874 = vpack.c.bf16 %v4858, %v4857
      %4891 = vrot.lane.b32.xlu0 %v4859, 32
      %v4892 = vpop.permute.xlu0 %4891
      %4893 = vrot.lane.b32.xlu0 %v4860, 32
      %v4894 = vpop.permute.xlu0 %4893
      %4895 = vrot.lane.b32.xlu0 %v4861, 32
      %v4896 = vpop.permute.xlu0 %4895
      %4897 = vrot.lane.b32.xlu0 %v4862, 32
      %v4898 = vpop.permute.xlu0 %4897
      %4899 = vrot.lane.b32.xlu0 %v4863, 32
      %v4900 = vpop.permute.xlu0 %4899
      %4901 = vrot.lane.b32.xlu0 %v4864, 32
      %v4902 = vpop.permute.xlu0 %4901
      %4903 = vrot.lane.b32.xlu0 %v4865, 32
      %v4904 = vpop.permute.xlu0 %4903
      %4905 = vrot.lane.b32.xlu0 %v4866, 32
      %v4906 = vpop.permute.xlu0 %4905
      %4907 = vrot.lane.b32.xlu0 %v4867, 32
      %v4908 = vpop.permute.xlu0 %4907
      %4909 = vrot.lane.b32.xlu0 %v4868, 32
      %v4910 = vpop.permute.xlu0 %4909
      %4911 = vrot.lane.b32.xlu0 %v4869, 32
      %v4912 = vpop.permute.xlu0 %4911
      %4913 = vrot.lane.b32.xlu0 %v4870, 32
      %v4914 = vpop.permute.xlu0 %4913
      %4915 = vrot.lane.b32.xlu0 %v4871, 32
      %v4916 = vpop.permute.xlu0 %4915
      %4917 = vrot.lane.b32.xlu0 %v4872, 32
      %v4918 = vpop.permute.xlu0 %4917
      %4919 = vrot.lane.b32.xlu0 %v4873, 32
      %v4920 = vpop.permute.xlu0 %4919
      %4921 = vrot.lane.b32.xlu0 %v4874, 32
      %v4922 = vpop.permute.xlu0 %4921
      %4939 = vst.msk [vmem:[#allocation3] sm:$0xff] %vm3148, %v4892
      %4940 = vst.msk [vmem:[#allocation3 + $0x8] sm:$0xff] %vm3148, %v4894
      %4941 = vst.msk [vmem:[#allocation3 + $0x10] sm:$0xff] %vm3148, %v4896
      %4942 = vst.msk [vmem:[#allocation3 + $0x18] sm:$0xff] %vm3148, %v4898
      %4943 = vst.msk [vmem:[#allocation3 + $0x20] sm:$0xff] %vm3148, %v4900
      %4944 = vst.msk [vmem:[#allocation3 + $0x28] sm:$0xff] %vm3148, %v4902
      %4945 = vst.msk [vmem:[#allocation3 + $0x30] sm:$0xff] %vm3148, %v4904
      %4946 = vst.msk [vmem:[#allocation3 + $0x38] sm:$0xff] %vm3148, %v4906
      %4947 = vst.msk [vmem:[#allocation3 + $0x40] sm:$0xff] %vm3148, %v4908
      %4948 = vst.msk [vmem:[#allocation3 + $0x48] sm:$0xff] %vm3148, %v4910
      %4949 = vst.msk [vmem:[#allocation3 + $0x50] sm:$0xff] %vm3148, %v4912
      %4950 = vst.msk [vmem:[#allocation3 + $0x58] sm:$0xff] %vm3148, %v4914
      %4951 = vst.msk [vmem:[#allocation3 + $0x60] sm:$0xff] %vm3148, %v4916
      %4952 = vst.msk [vmem:[#allocation3 + $0x68] sm:$0xff] %vm3148, %v4918
      %4953 = vst.msk [vmem:[#allocation3 + $0x70] sm:$0xff] %vm3148, %v4920
      %4954 = vst.msk [vmem:[#allocation3 + $0x78] sm:$0xff] %vm3148, %v4922
      %v4955 = vld [vmem:[#allocation3] sm:$0xff]
      %v4956 = vld [vmem:[#allocation3 + $0x8] sm:$0xff]
      %v4957 = vld [vmem:[#allocation3 + $0x10] sm:$0xff]
      %v4958 = vld [vmem:[#allocation3 + $0x18] sm:$0xff]
      %v4959 = vld [vmem:[#allocation3 + $0x20] sm:$0xff]
      %v4960 = vld [vmem:[#allocation3 + $0x28] sm:$0xff]
      %v4961 = vld [vmem:[#allocation3 + $0x30] sm:$0xff]
      %v4962 = vld [vmem:[#allocation3 + $0x38] sm:$0xff]
      %v4963 = vld [vmem:[#allocation3 + $0x40] sm:$0xff]
      %v4964 = vld [vmem:[#allocation3 + $0x48] sm:$0xff]
      %v4965 = vld [vmem:[#allocation3 + $0x50] sm:$0xff]
      %v4966 = vld [vmem:[#allocation3 + $0x58] sm:$0xff]
      %v4967 = vld [vmem:[#allocation3 + $0x60] sm:$0xff]
      %v4968 = vld [vmem:[#allocation3 + $0x68] sm:$0xff]
      %v4969 = vld [vmem:[#allocation3 + $0x70] sm:$0xff]
      %v4970 = vld [vmem:[#allocation3 + $0x78] sm:$0xff]
      %v4971 = vld [vmem:[%s7] sm:$0xf]
      %v4972 = vld [vmem:[%s7 + $0x4] sm:$0xf]
      %v4973 = vld [vmem:[%s7 + $0x8] sm:$0xf]
      %v4974 = vld [vmem:[%s7 + $0xc] sm:$0xf]
      %v4975 = vld [vmem:[%s7 + $0x10] sm:$0x3]
      %v4981 = vunpack.c.l.b16 %v4971
      %v4982 = vunpack.c.l.b16 %v4972
      %v4983 = vunpack.c.l.b16 %v4973
      %v4984 = vunpack.c.l.b16 %v4974
      %v4985 = vunpack.c.l.b16 %v4975
      %v4986 = vpack.c.b16 %v4982, %v4981
      %v4987 = vpack.c.b16 %v4984, %v4983
      %v4988 = vpack.c.b16 %v4985, %v4985
      %v4992 = vsel %vm3201, %v4955, 0
      %v4995 = vsel %vm3201, %v4956, 0
      %v4998 = vsel %vm3201, %v4957, 0
      %v5001 = vsel %vm3201, %v4958, 0
      %v5004 = vsel %vm3201, %v4959, 0
      %v5007 = vsel %vm3201, %v4960, 0
      %v5010 = vsel %vm3201, %v4961, 0
      %v5013 = vsel %vm3201, %v4962, 0
      %v5016 = vsel %vm3201, %v4963, 0
      %v5019 = vsel %vm3201, %v4964, 0
      %v5022 = vsel %vm3201, %v4965, 0
      %v5025 = vsel %vm3201, %v4966, 0
      %v5028 = vsel %vm3201, %v4967, 0
      %v5031 = vsel %vm3201, %v4968, 0
      %v5034 = vsel %vm3201, %v4969, 0
      %v5037 = vsel %vm3201, %v4970, 0
      %v5040 = vsel %vm3250, %v4988, 0
      %5042 = vmatprep.subr.bf16.mxu0 0
      %5043 = vmatpush1.bf16.msra.mxu0 %v4986
      %5044 = vmatprep.subr.bf16.mxu0 0
      %5045 = vmatpush1.bf16.msra.mxu0 %v4987
      %5046 = vmatprep.subr.bf16.mxu0 0
      %5047 = vmatpush1.bf16.msra.mxu0 %v5040
      %5048 = vmatprep.subr.bf16.mxu0 0
      %5049 = vmatpush1.bf16.msra.mxu0 0
      %5050 = vmatprep.subr.bf16.mxu0 0
      %5051 = vmatpush1.bf16.msra.mxu0 0
      %5052 = vmatprep.subr.bf16.mxu0 0
      %5053 = vmatpush1.bf16.msra.mxu0 0
      %5054 = vmatprep.subr.bf16.mxu0 0
      %5055 = vmatpush1.bf16.msra.mxu0 0
      %5056 = vmatprep.subr.bf16.mxu0 0
      %5057 = vmatpush1.bf16.msra.mxu0 0
      %5058 = vmatprep.subr.bf16.mxu0 0
      %5059 = vmatpush1.bf16.msra.mxu0 0
      %5060 = vmatprep.subr.bf16.mxu0 0
      %5061 = vmatpush1.bf16.msra.mxu0 0
      %5062 = vmatprep.subr.bf16.mxu0 0
      %5063 = vmatpush1.bf16.msra.mxu0 0
      %5064 = vmatprep.subr.bf16.mxu0 0
      %5065 = vmatpush1.bf16.msra.mxu0 0
      %5066 = vmatprep.subr.bf16.mxu0 0
      %5067 = vmatpush1.bf16.msra.mxu0 0
      %5068 = vmatprep.subr.bf16.mxu0 0
      %5069 = vmatpush1.bf16.msra.mxu0 0
      %5070 = vmatprep.subr.bf16.mxu0 0
      %5071 = vmatpush1.bf16.msra.mxu0 0
      %5072 = vmatprep.subr.bf16.mxu0 0
      %5073 = vmatpush1.bf16.msra.mxu0 0
      %5074 = vmatprep.mubr.bf16.mxu0 0
      %5075 = vmatmul.mubr.bf16.gmra.mrb[0].mxu0 %v4992
      %v5076 = vpop.f32.mrb[0].mxu0
      %v5077 = vadd.f32 0.0, %v5076
      %v5078 = vpop.f32.mrb[0].mxu0
      %v5079 = vpop.f32.mrb[0].mxu0
      %v5080 = vadd.f32 0.0, %v5079
      %v5081 = vpop.f32.mrb[0].mxu0
      %5082 = vmatprep.mubr.bf16.mxu0 0
      %5083 = vmatmul.mubr.bf16.gmra.mrb[0].mxu0 %v4995
      %v5084 = vpop.f32.mrb[0].mxu0
      %v5085 = vadd.f32 0.0, %v5084
      %v5086 = vpop.f32.mrb[0].mxu0
      %v5087 = vpop.f32.mrb[0].mxu0
      %v5088 = vadd.f32 0.0, %v5087
      %v5089 = vpop.f32.mrb[0].mxu0
      %5090 = vmatprep.mubr.bf16.mxu0 0
      %5091 = vmatmul.mubr.bf16.gmra.mrb[0].mxu0 %v4998
      %v5092 = vpop.f32.mrb[0].mxu0
      %v5093 = vadd.f32 0.0, %v5092
      %v5094 = vpop.f32.mrb[0].mxu0
      %v5095 = vpop.f32.mrb[0].mxu0
      %v5096 = vadd.f32 0.0, %v5095
      %v5097 = vpop.f32.mrb[0].mxu0
      %5098 = vmatprep.mubr.bf16.mxu0 0
      %5099 = vmatmul.mubr.bf16.gmra.mrb[0].mxu0 %v5001
      %v5100 = vpop.f32.mrb[0].mxu0
      %v5101 = vadd.f32 0.0, %v5100
      %v5102 = vpop.f32.mrb[0].mxu0
      %v5103 = vpop.f32.mrb[0].mxu0
      %v5104 = vadd.f32 0.0, %v5103
      %v5105 = vpop.f32.mrb[0].mxu0
      %5106 = vmatprep.mubr.bf16.mxu0 0
      %5107 = vmatmul.mubr.bf16.gmra.mrb[0].mxu0 %v5004
      %v5108 = vpop.f32.mrb[0].mxu0
      %v5109 = vadd.f32 0.0, %v5108
      %v5110 = vpop.f32.mrb[0].mxu0
      %v5111 = vpop.f32.mrb[0].mxu0
      %v5112 = vadd.f32 0.0, %v5111
      %v5113 = vpop.f32.mrb[0].mxu0
      %5114 = vmatprep.mubr.bf16.mxu0 0
      %5115 = vmatmul.mubr.bf16.gmra.mrb[0].mxu0 %v5007
      %v5116 = vpop.f32.mrb[0].mxu0
      %v5117 = vadd.f32 0.0, %v5116
      %v5118 = vpop.f32.mrb[0].mxu0
      %v5119 = vpop.f32.mrb[0].mxu0
      %v5120 = vadd.f32 0.0, %v5119
      %v5121 = vpop.f32.mrb[0].mxu0
      %5122 = vmatprep.mubr.bf16.mxu0 0
      %5123 = vmatmul.mubr.bf16.gmra.mrb[0].mxu0 %v5010
      %v5124 = vpop.f32.mrb[0].mxu0
      %v5125 = vadd.f32 0.0, %v5124
      %v5126 = vpop.f32.mrb[0].mxu0
      %v5127 = vpop.f32.mrb[0].mxu0
      %v5128 = vadd.f32 0.0, %v5127
      %v5129 = vpop.f32.mrb[0].mxu0
      %5130 = vmatprep.mubr.bf16.mxu0 0
      %5131 = vmatmul.mubr.bf16.gmra.mrb[0].mxu0 %v5013
      %v5132 = vpop.f32.mrb[0].mxu0
      %v5133 = vadd.f32 0.0, %v5132
      %v5134 = vpop.f32.mrb[0].mxu0
      %v5135 = vpop.f32.mrb[0].mxu0
      %v5136 = vadd.f32 0.0, %v5135
      %v5137 = vpop.f32.mrb[0].mxu0
      %5138 = vmatprep.mubr.bf16.mxu0 0
      %5139 = vmatmul.mubr.bf16.gmra.mrb[0].mxu0 %v5016
      %v5140 = vpop.f32.mrb[0].mxu0
      %v5141 = vadd.f32 0.0, %v5140
      %v5142 = vpop.f32.mrb[0].mxu0
      %v5143 = vpop.f32.mrb[0].mxu0
      %v5144 = vadd.f32 0.0, %v5143
      %v5145 = vpop.f32.mrb[0].mxu0
      %5146 = vmatprep.mubr.bf16.mxu0 0
      %5147 = vmatmul.mubr.bf16.gmra.mrb[0].mxu0 %v5019
      %v5148 = vpop.f32.mrb[0].mxu0
      %v5149 = vadd.f32 0.0, %v5148
      %v5150 = vpop.f32.mrb[0].mxu0
      %v5151 = vpop.f32.mrb[0].mxu0
      %v5152 = vadd.f32 0.0, %v5151
      %v5153 = vpop.f32.mrb[0].mxu0
      %5154 = vmatprep.mubr.bf16.mxu0 0
      %5155 = vmatmul.mubr.bf16.gmra.mrb[0].mxu0 %v5022
      %v5156 = vpop.f32.mrb[0].mxu0
      %v5157 = vadd.f32 0.0, %v5156
      %v5158 = vpop.f32.mrb[0].mxu0
      %v5159 = vpop.f32.mrb[0].mxu0
      %v5160 = vadd.f32 0.0, %v5159
      %v5161 = vpop.f32.mrb[0].mxu0
      %5162 = vmatprep.mubr.bf16.mxu0 0
      %5163 = vmatmul.mubr.bf16.gmra.mrb[0].mxu0 %v5025
      %v5164 = vpop.f32.mrb[0].mxu0
      %v5165 = vadd.f32 0.0, %v5164
      %v5166 = vpop.f32.mrb[0].mxu0
      %v5167 = vpop.f32.mrb[0].mxu0
      %v5168 = vadd.f32 0.0, %v5167
      %v5169 = vpop.f32.mrb[0].mxu0
      %5170 = vmatprep.mubr.bf16.mxu0 0
      %5171 = vmatmul.mubr.bf16.gmra.mrb[0].mxu0 %v5028
      %v5172 = vpop.f32.mrb[0].mxu0
      %v5173 = vadd.f32 0.0, %v5172
      %v5174 = vpop.f32.mrb[0].mxu0
      %v5175 = vpop.f32.mrb[0].mxu0
      %v5176 = vadd.f32 0.0, %v5175
      %v5177 = vpop.f32.mrb[0].mxu0
      %5178 = vmatprep.mubr.bf16.mxu0 0
      %5179 = vmatmul.mubr.bf16.gmra.mrb[0].mxu0 %v5031
      %v5180 = vpop.f32.mrb[0].mxu0
      %v5181 = vadd.f32 0.0, %v5180
      %v5182 = vpop.f32.mrb[0].mxu0
      %v5183 = vpop.f32.mrb[0].mxu0
      %v5184 = vadd.f32 0.0, %v5183
      %v5185 = vpop.f32.mrb[0].mxu0
      %5186 = vmatprep.mubr.bf16.mxu0 0
      %5187 = vmatmul.mubr.bf16.gmra.mrb[0].mxu0 %v5034
      %v5188 = vpop.f32.mrb[0].mxu0
      %v5189 = vadd.f32 0.0, %v5188
      %v5190 = vpop.f32.mrb[0].mxu0
      %v5191 = vpop.f32.mrb[0].mxu0
      %v5192 = vadd.f32 0.0, %v5191
      %v5193 = vpop.f32.mrb[0].mxu0
      %5194 = vmatprep.mubr.bf16.mxu0 0
      %5195 = vmatmul.mubr.bf16.gmra.mrb[0].mxu0 %v5037
      %v5196 = vpop.f32.mrb[0].mxu0
      %v5197 = vadd.f32 0.0, %v5196
      %v5198 = vpop.f32.mrb[0].mxu0
      %v5199 = vpop.f32.mrb[0].mxu0
      %v5200 = vadd.f32 0.0, %v5199
      %v5201 = vpop.f32.mrb[0].mxu0
      %5202 = vdwg.mxu0
      %v5203 = vld [vmem:[%s8] sm:$0x1]
      %v5205 = vlaneseq
      %v5206 = vshrl.u32 %v5205, 7
      %v5207 = vsub.s32 0, %v5206
      %v5208 = vrot.slane %v5203, %v5207
      %v5210 = vmul.f32 %v5077, %v5208
      %v5211 = vmul.f32 %v5080, %v5208
      %v5212 = vmul.f32 %v5085, %v5208
      %v5213 = vmul.f32 %v5088, %v5208
      %v5214 = vmul.f32 %v5093, %v5208
      %v5215 = vmul.f32 %v5096, %v5208
      %v5216 = vmul.f32 %v5101, %v5208
      %v5217 = vmul.f32 %v5104, %v5208
      %v5218 = vmul.f32 %v5109, %v5208
      %v5219 = vmul.f32 %v5112, %v5208
      %v5220 = vmul.f32 %v5117, %v5208
      %v5221 = vmul.f32 %v5120, %v5208
      %v5222 = vmul.f32 %v5125, %v5208
      %v5223 = vmul.f32 %v5128, %v5208
      %v5224 = vmul.f32 %v5133, %v5208
      %v5225 = vmul.f32 %v5136, %v5208
      %v5226 = vmul.f32 %v5141, %v5208
      %v5227 = vmul.f32 %v5144, %v5208
      %v5228 = vmul.f32 %v5149, %v5208
      %v5229 = vmul.f32 %v5152, %v5208
      %v5230 = vmul.f32 %v5157, %v5208
      %v5231 = vmul.f32 %v5160, %v5208
      %v5232 = vmul.f32 %v5165, %v5208
      %v5233 = vmul.f32 %v5168, %v5208
      %v5234 = vmul.f32 %v5173, %v5208
      %v5235 = vmul.f32 %v5176, %v5208
      %v5236 = vmul.f32 %v5181, %v5208
      %v5237 = vmul.f32 %v5184, %v5208
      %v5238 = vmul.f32 %v5189, %v5208
      %v5239 = vmul.f32 %v5192, %v5208
      %v5240 = vmul.f32 %v5197, %v5208
      %v5241 = vmul.f32 %v5200, %v5208
      %v5242 = vld [vmem:[%s9] sm:$0x1]
      %v5244 = vlaneseq
      %v5245 = vshrl.u32 %v5244, 7
      %v5246 = vsub.s32 0, %v5245
      %v5247 = vrot.slane %v5242, %v5246
      %v5249 = vadd.f32 %v5210, %v5247
      %v5250 = vadd.f32 %v5211, %v5247
      %v5251 = vadd.f32 %v5212, %v5247
      %v5252 = vadd.f32 %v5213, %v5247
      %v5253 = vadd.f32 %v5214, %v5247
      %v5254 = vadd.f32 %v5215, %v5247
      %v5255 = vadd.f32 %v5216, %v5247
      %v5256 = vadd.f32 %v5217, %v5247
      %v5257 = vadd.f32 %v5218, %v5247
      %v5258 = vadd.f32 %v5219, %v5247
      %v5259 = vadd.f32 %v5220, %v5247
      %v5260 = vadd.f32 %v5221, %v5247
      %v5261 = vadd.f32 %v5222, %v5247
      %v5262 = vadd.f32 %v5223, %v5247
      %v5263 = vadd.f32 %v5224, %v5247
      %v5264 = vadd.f32 %v5225, %v5247
      %v5265 = vadd.f32 %v5226, %v5247
      %v5266 = vadd.f32 %v5227, %v5247
      %v5267 = vadd.f32 %v5228, %v5247
      %v5268 = vadd.f32 %v5229, %v5247
      %v5269 = vadd.f32 %v5230, %v5247
      %v5270 = vadd.f32 %v5231, %v5247
      %v5271 = vadd.f32 %v5232, %v5247
      %v5272 = vadd.f32 %v5233, %v5247
      %v5273 = vadd.f32 %v5234, %v5247
      %v5274 = vadd.f32 %v5235, %v5247
      %v5275 = vadd.f32 %v5236, %v5247
      %v5276 = vadd.f32 %v5237, %v5247
      %v5277 = vadd.f32 %v5238, %v5247
      %v5278 = vadd.f32 %v5239, %v5247
      %v5279 = vadd.f32 %v5240, %v5247
      %v5280 = vadd.f32 %v5241, %v5247
      %v5281 = vmax.f32 %v5249, 0.0
      %v5282 = vmax.f32 %v5250, 0.0
      %v5283 = vmax.f32 %v5251, 0.0
      %v5284 = vmax.f32 %v5252, 0.0
      %v5285 = vmax.f32 %v5253, 0.0
      %v5286 = vmax.f32 %v5254, 0.0
      %v5287 = vmax.f32 %v5255, 0.0
      %v5288 = vmax.f32 %v5256, 0.0
      %v5289 = vmax.f32 %v5257, 0.0
      %v5290 = vmax.f32 %v5258, 0.0
      %v5291 = vmax.f32 %v5259, 0.0
      %v5292 = vmax.f32 %v5260, 0.0
      %v5293 = vmax.f32 %v5261, 0.0
      %v5294 = vmax.f32 %v5262, 0.0
      %v5295 = vmax.f32 %v5263, 0.0
      %v5296 = vmax.f32 %v5264, 0.0
      %v5297 = vmax.f32 %v5265, 0.0
      %v5298 = vmax.f32 %v5266, 0.0
      %v5299 = vmax.f32 %v5267, 0.0
      %v5300 = vmax.f32 %v5268, 0.0
      %v5301 = vmax.f32 %v5269, 0.0
      %v5302 = vmax.f32 %v5270, 0.0
      %v5303 = vmax.f32 %v5271, 0.0
      %v5304 = vmax.f32 %v5272, 0.0
      %v5305 = vmax.f32 %v5273, 0.0
      %v5306 = vmax.f32 %v5274, 0.0
      %v5307 = vmax.f32 %v5275, 0.0
      %v5308 = vmax.f32 %v5276, 0.0
      %v5309 = vmax.f32 %v5277, 0.0
      %v5310 = vmax.f32 %v5278, 0.0
      %v5311 = vmax.f32 %v5279, 0.0
      %v5312 = vmax.f32 %v5280, 0.0
      %5345 = vrot.lane.b32.xlu0 %v5281, 12
      %v5346 = vpop.permute.xlu0 %5345
      %5347 = vrot.lane.b32.xlu0 %v5282, 12
      %v5348 = vpop.permute.xlu0 %5347
      %5349 = vrot.lane.b32.xlu0 %v5283, 12
      %v5350 = vpop.permute.xlu0 %5349
      %5351 = vrot.lane.b32.xlu0 %v5284, 12
      %v5352 = vpop.permute.xlu0 %5351
      %5353 = vrot.lane.b32.xlu0 %v5285, 12
      %v5354 = vpop.permute.xlu0 %5353
      %5355 = vrot.lane.b32.xlu0 %v5286, 12
      %v5356 = vpop.permute.xlu0 %5355
      %5357 = vrot.lane.b32.xlu0 %v5287, 12
      %v5358 = vpop.permute.xlu0 %5357
      %5359 = vrot.lane.b32.xlu0 %v5288, 12
      %v5360 = vpop.permute.xlu0 %5359
      %5361 = vrot.lane.b32.xlu0 %v5289, 12
      %v5362 = vpop.permute.xlu0 %5361
      %5363 = vrot.lane.b32.xlu0 %v5290, 12
      %v5364 = vpop.permute.xlu0 %5363
      %5365 = vrot.lane.b32.xlu0 %v5291, 12
      %v5366 = vpop.permute.xlu0 %5365
      %5367 = vrot.lane.b32.xlu0 %v5292, 12
      %v5368 = vpop.permute.xlu0 %5367
      %5369 = vrot.lane.b32.xlu0 %v5293, 12
      %v5370 = vpop.permute.xlu0 %5369
      %5371 = vrot.lane.b32.xlu0 %v5294, 12
      %v5372 = vpop.permute.xlu0 %5371
      %5373 = vrot.lane.b32.xlu0 %v5295, 12
      %v5374 = vpop.permute.xlu0 %5373
      %5375 = vrot.lane.b32.xlu0 %v5296, 12
      %v5376 = vpop.permute.xlu0 %5375
      %5377 = vrot.lane.b32.xlu0 %v5297, 12
      %v5378 = vpop.permute.xlu0 %5377
      %5379 = vrot.lane.b32.xlu0 %v5298, 12
      %v5380 = vpop.permute.xlu0 %5379
      %5381 = vrot.lane.b32.xlu0 %v5299, 12
      %v5382 = vpop.permute.xlu0 %5381
      %5383 = vrot.lane.b32.xlu0 %v5300, 12
      %v5384 = vpop.permute.xlu0 %5383
      %5385 = vrot.lane.b32.xlu0 %v5301, 12
      %v5386 = vpop.permute.xlu0 %5385
      %5387 = vrot.lane.b32.xlu0 %v5302, 12
      %v5388 = vpop.permute.xlu0 %5387
      %5389 = vrot.lane.b32.xlu0 %v5303, 12
      %v5390 = vpop.permute.xlu0 %5389
      %5391 = vrot.lane.b32.xlu0 %v5304, 12
      %v5392 = vpop.permute.xlu0 %5391
      %5393 = vrot.lane.b32.xlu0 %v5305, 12
      %v5394 = vpop.permute.xlu0 %5393
      %5395 = vrot.lane.b32.xlu0 %v5306, 12
      %v5396 = vpop.permute.xlu0 %5395
      %5397 = vrot.lane.b32.xlu0 %v5307, 12
      %v5398 = vpop.permute.xlu0 %5397
      %5399 = vrot.lane.b32.xlu0 %v5308, 12
      %v5400 = vpop.permute.xlu0 %5399
      %5401 = vrot.lane.b32.xlu0 %v5309, 12
      %v5402 = vpop.permute.xlu0 %5401
      %5403 = vrot.lane.b32.xlu0 %v5310, 12
      %v5404 = vpop.permute.xlu0 %5403
      %5405 = vrot.lane.b32.xlu0 %v5311, 12
      %v5406 = vpop.permute.xlu0 %5405
      %5407 = vrot.lane.b32.xlu0 %v5312, 12
      %v5408 = vpop.permute.xlu0 %5407
      %5441 = vst.msk [vmem:[%s359] sm:$0xff] %vm2502, %v5346
      %5442 = vst.msk [vmem:[%s359 + $0x8] sm:$0xff] %vm2502, %v5348
      %5443 = vst.msk [vmem:[%s359 + $0x10] sm:$0xff] %vm2502, %v5350
      %5444 = vst.msk [vmem:[%s359 + $0x18] sm:$0xff] %vm2502, %v5352
      %5445 = vst.msk [vmem:[%s359 + $0x20] sm:$0xff] %vm2502, %v5354
      %5446 = vst.msk [vmem:[%s359 + $0x28] sm:$0xff] %vm2502, %v5356
      %5447 = vst.msk [vmem:[%s359 + $0x30] sm:$0xff] %vm2502, %v5358
      %5448 = vst.msk [vmem:[%s359 + $0x38] sm:$0xff] %vm2502, %v5360
      %5449 = vst.msk [vmem:[%s359 + $0x40] sm:$0xff] %vm2502, %v5362
      %5450 = vst.msk [vmem:[%s359 + $0x48] sm:$0xff] %vm2502, %v5364
      %5451 = vst.msk [vmem:[%s359 + $0x50] sm:$0xff] %vm2502, %v5366
      %5452 = vst.msk [vmem:[%s359 + $0x58] sm:$0xff] %vm2502, %v5368
      %5453 = vst.msk [vmem:[%s359 + $0x60] sm:$0xff] %vm2502, %v5370
      %5454 = vst.msk [vmem:[%s359 + $0x68] sm:$0xff] %vm2502, %v5372
      %5455 = vst.msk [vmem:[%s359 + $0x70] sm:$0xff] %vm2502, %v5374
      %5456 = vst.msk [vmem:[%s359 + $0x78] sm:$0xff] %vm2502, %v5376
      %5457 = vst.msk [vmem:[%s359 + $0x80] sm:$0xff] %vm2502, %v5378
      %5458 = vst.msk [vmem:[%s359 + $0x88] sm:$0xff] %vm2502, %v5380
      %5459 = vst.msk [vmem:[%s359 + $0x90] sm:$0xff] %vm2502, %v5382
      %5460 = vst.msk [vmem:[%s359 + $0x98] sm:$0xff] %vm2502, %v5384
      %5461 = vst.msk [vmem:[%s359 + $0xa0] sm:$0xff] %vm2502, %v5386
      %5462 = vst.msk [vmem:[%s359 + $0xa8] sm:$0xff] %vm2502, %v5388
      %5463 = vst.msk [vmem:[%s359 + $0xb0] sm:$0xff] %vm2502, %v5390
      %5464 = vst.msk [vmem:[%s359 + $0xb8] sm:$0xff] %vm2502, %v5392
      %5465 = vst.msk [vmem:[%s359 + $0xc0] sm:$0xff] %vm2502, %v5394
      %5466 = vst.msk [vmem:[%s359 + $0xc8] sm:$0xff] %vm2502, %v5396
      %5467 = vst.msk [vmem:[%s359 + $0xd0] sm:$0xff] %vm2502, %v5398
      %5468 = vst.msk [vmem:[%s359 + $0xd8] sm:$0xff] %vm2502, %v5400
      %5469 = vst.msk [vmem:[%s359 + $0xe0] sm:$0xff] %vm2502, %v5402
      %5470 = vst.msk [vmem:[%s359 + $0xe8] sm:$0xff] %vm2502, %v5404
      %5471 = vst.msk [vmem:[%s359 + $0xf0] sm:$0xff] %vm2502, %v5406
      %5472 = vst.msk [vmem:[%s359 + $0xf8] sm:$0xff] %vm2502, %v5408
      %p5473 = scmp.lt.s32.totalorder %s21, 1
      %s5474 = scalar_select %p5473, %s21, 1
      %s5475 = smul.addr %s5474, 32
      %s5476 = smul.addr %s5475, 8
      %s5477 = scalar_lea.vmem %s10, %s5476
      // Predicated region
      $region61: #{detect_forward.1} parent=59 // pred_check
        %p5478 = pneg %p254
      $region62: #{detect_forward.1} parent=59 // pred_check_branch
        %5480 = sbr.rel (%p5478) target = $region64
      $region63: #{detect_forward.1} parent=59 // pred_region
        _
      $region64: #{detect_forward.1} parent=59 // pred_fallthru
        _
    $region60: #{detect_forward.1} parent=5 // pred_fallthru
      _
    %p5481 = scmp.le.s32.totalorder 2, %s16
    // Predicated region
    $region65: #{detect_forward.1} parent=5 // pred_check
      %p5482 = pneg %p5481
    $region66: #{detect_forward.1} parent=5 // pred_check_branch
      %5484 = sbr.rel (%p5482) target = $region68
    $region67: #{detect_forward.1} parent=5 // pred_region
      %s5485 = ssub.s32 %s16, 2
      // Predicated region
      $region69: #{detect_forward.1} parent=67 // pred_check
        %p5486 = pneg %p260
      $region70: #{detect_forward.1} parent=67 // pred_check_branch
        %5488 = sbr.rel (%p5486) target = $region72
      $region71: #{detect_forward.1} parent=67 // pred_region
        %p5489 = scmp.lt.s32.totalorder %s22, 1
        %s5490 = scalar_select %p5489, %s22, 1
        %s5491 = smul.addr %s5490, 32
        %s5492 = smul.addr %s5491, 8
        %s5493 = scalar_lea.vmem %s10, %s5492
      $region72: #{detect_forward.1} parent=67 // pred_fallthru
        _
    $region68: #{detect_forward.1} parent=5 // pred_fallthru
      _
  $region6: #{detect_forward.1} parent=0 // loop_footer
    %s20 = sadd.s32 1, %s16
  $region7: #{detect_forward.1} parent=0 // loop_footer_branch
    %15 = sbr.rel target = $region3
  $region8: #{detect_forward.1} parent=0 // loop_exit
    _

</llo_original>
